<compile_context>
chip_gen: v5e
topology: v5e:2x2
jax: 0.10.0
libtpu: 0.0.40
codegen_flags: <defaults>
</compile_context>

<pallas_src>
import numpy as np
import jax
import jax.numpy as jnp
from jax.experimental import pallas as pl
from jax.experimental.pallas import tpu as pltpu


# ---------------------------------------------------------------------------
# DCT matrices (torch_dct, norm=None convention) and their Kronecker forms.
# ---------------------------------------------------------------------------
def _dct_matrices(t):
    n = np.arange(t, dtype=np.float64)
    k = n[:, None]
    D = 2.0 * np.cos(np.pi * (2.0 * n[None, :] + 1.0) * k / (2.0 * t))
    Dinv = np.linalg.inv(D)
    K = np.kron(D, D)              # 2-D DCT as a single (T*T, T*T) matrix
    Kinv = np.kron(Dinv, Dinv)     # exact inverse
    return (jnp.asarray(D, jnp.float32), jnp.asarray(Dinv, jnp.float32),
            jnp.asarray(K, jnp.float32), jnp.asarray(Kinv, jnp.float32))


def _inv_fold_scale(ch, H, W, t, s, n):
    # fold(unfold(ones)) == per-pixel overlap count; precompute its reciprocal
    # as a lane-dense (ch, H*W) slab.
    counts = np.zeros((H, W), np.float32)
    for i in range(n):
        for j in range(n):
            counts[i * s:i * s + t, j * s:j * s + t] += 1.0
    inv = np.array(np.broadcast_to(1.0 / counts, (ch, H, W))).reshape(ch, H * W)
    return jnp.asarray(inv, jnp.float32)


def _round_up(v, m):
    return ((v + m - 1) // m) * m


# ---------------------------------------------------------------------------
# Fused per-image kernel.
# ---------------------------------------------------------------------------
def _make_kernel(*, n, t, s, C, H, W, LC, LCp):
    TT = t * t
    HW = H * W

    def kernel(x_ref, kmat_ref, kinv_ref, invs_ref,
               w1_ref, b1_ref, w2_ref, b2_ref,
               w3_ref, b3_ref, w4_ref, b4_ref,
               out_ref, tiles_sc, acc_sc):
        # Zero the channel-padding rows so padded lanes stay exactly zero
        # through the whole pipeline.  Re-done every grid step: scratch is
        # per-core state and under megacore partitioning a core may never run
        # program_id == 0.
        if LCp > LC:
            tiles_sc[LC:, :] = jnp.zeros((LCp - LC, TT), jnp.float32)

        # ---- unfold: copy each (C, t, t) sliding window into the flat slab.
        # rows = (patch, channel) = l*C + c, lanes = flattened patch pixels.
        # TODO(synk): at production size (n=53) convert to lax.fori_loop with
        # pl.ds/pl.multiple_of and a parity-grouped / 0-1-matmul gather.
        for i in range(n):
            for j in range(n):
                l = i * n + j
                tiles_sc[l * C:(l + 1) * C, :] = \
                    x_ref[0, :, i * s:i * s + t, j * s:j * s + t].reshape(C, TT)

        # ---- 2-D DCT as one Kronecker matmul, corner-turned into the
        # lane-dense transposed layout: dct_t[p, lc] = sum_q K[p, q] tiles[lc, q]
        dct_t = jnp.dot(kmat_ref[...], tiles_sc[...].T,
                        preferred_element_type=jnp.float32)        # (TT, LCp)

        # ---- CNN3: 1x1 convs as lane-dense matmuls act @ W^T.
        # Weights are pre-transposed / zero-padded / bf16; 1/(T*T) folded in w1.
        h = jnp.dot(dct_t.astype(jnp.bfloat16), w1_ref[...],
                    preferred_element_type=jnp.float32) + b1_ref[...]
        h = jnp.maximum(h, 0.0)
        h = jnp.dot(h.astype(jnp.bfloat16), w2_ref[...],
                    preferred_element_type=jnp.float32) + b2_ref[...]
        h = jnp.maximum(h, 0.0)
        h = jnp.dot(h.astype(jnp.bfloat16), w3_ref[...],
                    preferred_element_type=jnp.float32) + b3_ref[...]
        h = jnp.maximum(h, 0.0)
        logits = jnp.dot(h.astype(jnp.bfloat16), w4_ref[...],
                         preferred_element_type=jnp.float32) + b4_ref[...]
        masks = jax.nn.sigmoid(logits)                              # (TT, LCp)

        # ---- mask in the DCT domain, inverse 2-D DCT (f32), corner-turn back
        # to the patch-major row layout needed by the fold.
        clean = jnp.dot(kinv_ref[...], masks * dct_t,
                        preferred_element_type=jnp.float32).T       # (LCp, TT)

        # ---- fold: overlap-add the patches back into image layout.
        # TODO(synk): parity-grouped fold at production size (review item).
        acc_sc[...] = jnp.zeros_like(acc_sc)
        for i in range(n):
            for j in range(n):
                l = i * n + j
                acc_sc[:, i * s:i * s + t, j * s:j * s + t] += \
                    clean[l * C:(l + 1) * C, :].reshape(C, t, t)

        # ---- lane-dense epilogue: (C, H*W) store with the overlap reciprocal.
        out_ref[0] = acc_sc[...].reshape(C, HW) * invs_ref[...]

    return kernel


def _whole(a):
    nd = a.ndim
    return pl.BlockSpec(a.shape, lambda i, _nd=nd: (0,) * _nd)


# ---------------------------------------------------------------------------
# Wrapper: constants + weight prep + pallas_call.
# ---------------------------------------------------------------------------
def denoise_forward(x, params, *, tsize, stride):
    x = jnp.asarray(x, jnp.float32)
    b, ch, H, W = x.shape
    t, s = tsize, stride
    # Guard against the silent div-by-zero overlap case flagged in review.
    assert (H - t) % s == 0 and (W - t) % s == 0, \
        "patch grid must cover the image exactly (otherwise scale has zeros)"
    n = (H - t) // s + 1
    L = n * n
    LC = L * ch
    TT = t * t
    HW = H * W

    LANE = 128
    LCp = _round_up(LC, LANE)

    _, _, Kmat, Kinv = _dct_matrices(t)
    inv_scale = _inv_fold_scale(ch, H, W, t, s, n)            # (ch, H*W)

    (w1, b1), (w2, b2), (w3, b3), (w4, b4) = params
    c1, c2, c3 = w1.shape[0], w2.shape[0], w3.shape[0]
    c1p, c2p, c3p = (_round_up(c, LANE) for c in (c1, c2, c3))

    def pad_wT(w, rows, cols, scale=1.0):
        a = np.zeros((rows, cols), np.float32)
        wt = np.asarray(w, np.float32).T * scale
        a[:wt.shape[0], :wt.shape[1]] = wt
        return jnp.asarray(a, jnp.bfloat16)

    def pad_b(bvec, cols):
        a = np.zeros((1, cols), np.float32)
        bb = np.asarray(bvec, np.float32).reshape(-1)
        a[0, :bb.shape[0]] = bb
        return jnp.asarray(a, jnp.float32)

    # Transposed (Cin_pad, Cout_pad) bf16 weights; 1/(T*T) folded into w1.
    w1t = pad_wT(w1, LCp, c1p, scale=1.0 / float(t * t)); b1r = pad_b(b1, c1p)
    w2t = pad_wT(w2, c1p, c2p);                           b2r = pad_b(b2, c2p)
    w3t = pad_wT(w3, c2p, c3p);                           b3r = pad_b(b3, c3p)
    w4t = pad_wT(w4, c3p, LCp);                           b4r = pad_b(b4, LCp)

    kernel = _make_kernel(n=n, t=t, s=s, C=ch, H=H, W=W, LC=LC, LCp=LCp)

    # Explicit VMEM budget sized from the resident buffers (review item):
    # invariants + I/O blocks are double-buffered by the default pipeline.
    invariants = (Kmat, Kinv, inv_scale, w1t, b1r, w2t, b2r, w3t, b3r, w4t, b4r)
    inv_bytes = sum(int(a.size) * a.dtype.itemsize for a in invariants)
    io_bytes = ch * H * W * 4 + ch * HW * 4
    scratch_bytes = (LCp * TT + ch * H * W) * 4
    vmem_limit = int(2 * (inv_bytes + io_bytes) + scratch_bytes + (8 << 20))

    out_flat = pl.pallas_call(
        kernel,
        out_shape=jax.ShapeDtypeStruct((b, ch, HW), jnp.float32),
        grid_spec=pltpu.PrefetchScalarGridSpec(
            num_scalar_prefetch=0,
            grid=(b,),
            in_specs=[pl.BlockSpec((1, ch, H, W), lambda i: (i, 0, 0, 0)),
                      _whole(Kmat), _whole(Kinv), _whole(inv_scale),
                      _whole(w1t), _whole(b1r), _whole(w2t), _whole(b2r),
                      _whole(w3t), _whole(b3r), _whole(w4t), _whole(b4r)],
            out_specs=pl.BlockSpec((1, ch, HW), lambda i: (i, 0, 0)),
            scratch_shapes=[pltpu.VMEM((LCp, TT), jnp.float32),
                            pltpu.VMEM((ch, H, W), jnp.float32)]),
        compiler_params=pltpu.CompilerParams(
            dimension_semantics=("parallel",),
            vmem_limit_bytes=vmem_limit),
    )(x, Kmat, Kinv, inv_scale, w1t, b1r, w2t, b2r, w3t, b3r, w4t, b4r)

    return out_flat.reshape(b, ch, H, W)


# ---------------------------------------------------------------------------
# Pure-JAX f32 reference of the same math (for validation).
# ---------------------------------------------------------------------------
def denoise_reference(x, params, *, tsize, stride):
    b, ch, H, W = x.shape
    t, s = tsize, stride
    n = (H - t) // s + 1
    L = n * n
    patches = []
    for i in range(n):
        for j in range(n):
            patches.append(x[:, :, i * s:i * s + t, j * s:j * s + t])
    tiles = jnp.stack(patches, axis=1).reshape(b, L * ch, t, t)
    D, Dinv, _, _ = _dct_matrices(t)
    dct = jnp.einsum('kn,bcnm,lm->bckl', D, tiles, D)
    flat = (dct / (t * t)).reshape(b, L * ch, t * t)
    (w1, b1), (w2, b2), (w3, b3), (w4, b4) = params
    h = jax.nn.relu(jnp.einsum('oc,bcp->bop', w1, flat) + b1[None, :, None])
    h = jax.nn.relu(jnp.einsum('oc,bcp->bop', w2, h) + b2[None, :, None])
    h = jax.nn.relu(jnp.einsum('oc,bcp->bop', w3, h) + b3[None, :, None])
    logits = jnp.einsum('oc,bcp->bop', w4, h) + b4[None, :, None]
    masks = jax.nn.sigmoid(logits).reshape(b, L * ch, t, t)
    clean = jnp.einsum('nk,bckl,ml->bcnm', Dinv, masks * dct, Dinv)
    clean_r = clean.reshape(b, L, ch, t, t)
    out = jnp.zeros((b, ch, H, W), jnp.float32)
    scale = jnp.zeros((1, 1, H, W), jnp.float32)
    for i in range(n):
        for j in range(n):
            l = i * n + j
            out = out.at[:, :, i * s:i * s + t, j * s:j * s + t].add(clean_r[:, l])
            scale = scale.at[:, :, i * s:i * s + t, j * s:j * s + t].add(1.0)
    return out / scale


# ---------------------------------------------------------------------------
# Deterministic parameter init (Conv2d 1x1 weights -> dense (Cout, Cin) mats).
# ---------------------------------------------------------------------------
def init_params(key, channels):
    params = []
    for cin, cout in zip(channels[:-1], channels[1:]):
        key, kw, kb = jax.random.split(key, 3)
        bound = 1.0 / float(np.sqrt(cin))
        w = jax.random.uniform(kw, (cout, cin), jnp.float32, -bound, bound)
        bvec = jax.random.uniform(kb, (cout,), jnp.float32, -bound, bound)
        params.append((w, bvec))
    return tuple(params)


if __name__ == "__main__":
    # Small-shape instantiation of denoiseNet_adaptive_thre6(tsize, stride, in_size)
    IN_SIZE, TSIZE, STRIDE = 16, 8, 4
    B, CH = 2, 3
    n = (IN_SIZE - TSIZE) // STRIDE + 1
    L = n * n                                   # == 9
    channels = [3 * L, 3 * L // 4, 3 * L // 16, 3 * L // 4, 3 * L]

    kx, kp = jax.random.split(jax.random.PRNGKey(0))
    x = jax.random.normal(kx, (B, CH, IN_SIZE, IN_SIZE), jnp.float32)
    params = init_params(kp, channels)

    y = denoise_forward(x, params, tsize=TSIZE, stride=STRIDE)
    y = jax.block_until_ready(y)

    y_ref = denoise_reference(x, params, tsize=TSIZE, stride=STRIDE)
    np.testing.assert_allclose(np.asarray(y), np.asarray(y_ref),
                               rtol=1e-2, atol=1e-2)
    print("KERNEL_OK")
</pallas_src>

<mosaic_0001>
module attributes {stable_mosaic.version = 11 : i64} {
  func.func @kernel(%arg0: i32, %arg1: memref<1x3x16x16xf32, #tpu.memory_space<vmem>>, %arg2: memref<64x64xf32, #tpu.memory_space<vmem>>, %arg3: memref<64x64xf32, #tpu.memory_space<vmem>>, %arg4: memref<3x256xf32, #tpu.memory_space<vmem>>, %arg5: memref<128x128xbf16, #tpu.memory_space<vmem>>, %arg6: memref<1x128xf32, #tpu.memory_space<vmem>>, %arg7: memref<128x128xbf16, #tpu.memory_space<vmem>>, %arg8: memref<1x128xf32, #tpu.memory_space<vmem>>, %arg9: memref<128x128xbf16, #tpu.memory_space<vmem>>, %arg10: memref<1x128xf32, #tpu.memory_space<vmem>>, %arg11: memref<128x128xbf16, #tpu.memory_space<vmem>>, %arg12: memref<1x128xf32, #tpu.memory_space<vmem>>, %arg13: memref<1x3x256xf32, #tpu.memory_space<vmem>>, %arg14: memref<128x64xf32, #tpu.memory_space<vmem>>, %arg15: memref<3x16x16xf32, #tpu.memory_space<vmem>>) attributes {dimension_semantics = [#tpu.dimension_semantics<parallel>], iteration_bounds = array<i64: 2>, scalar_prefetch = 0 : i64, scratch_operands = 2 : i64, tpu.core_type = #tpu.core_type<tc>, window_params = [{transform_indices = @transform_0, window_bounds = array<i64: 1, 3, 16, 16>}, {pipeline_mode = #tpu.pipeline_mode<synchronous>, transform_indices = @transform_1, window_bounds = array<i64: 64, 64>}, {pipeline_mode = #tpu.pipeline_mode<synchronous>, transform_indices = @transform_2, window_bounds = array<i64: 64, 64>}, {pipeline_mode = #tpu.pipeline_mode<synchronous>, transform_indices = @transform_3, window_bounds = array<i64: 3, 256>}, {pipeline_mode = #tpu.pipeline_mode<synchronous>, transform_indices = @transform_4, window_bounds = array<i64: 128, 128>}, {pipeline_mode = #tpu.pipeline_mode<synchronous>, transform_indices = @transform_5, window_bounds = array<i64: 1, 128>}, {pipeline_mode = #tpu.pipeline_mode<synchronous>, transform_indices = @transform_6, window_bounds = array<i64: 128, 128>}, {pipeline_mode = #tpu.pipeline_mode<synchronous>, transform_indices = @transform_7, window_bounds = array<i64: 1, 128>}, {pipeline_mode = #tpu.pipeline_mode<synchronous>, transform_indices = @transform_8, window_bounds = array<i64: 128, 128>}, {pipeline_mode = #tpu.pipeline_mode<synchronous>, transform_indices = @transform_9, window_bounds = array<i64: 1, 128>}, {pipeline_mode = #tpu.pipeline_mode<synchronous>, transform_indices = @transform_10, window_bounds = array<i64: 128, 128>}, {pipeline_mode = #tpu.pipeline_mode<synchronous>, transform_indices = @transform_11, window_bounds = array<i64: 1, 128>}, {transform_indices = @transform_12, window_bounds = array<i64: 1, 3, 256>}]} {
    %cst = arith.constant 0.000000e+00 : f32
    %0 = vector.broadcast %cst : f32 to vector<101x64xf32>
    %c27 = arith.constant 27 : index
    %c0 = arith.constant 0 : index
    %1 = vector.load %arg14[%c27, %c0] : memref<128x64xf32, #tpu.memory_space<vmem>>, vector<101x64xf32>
    tpu.vector_store %arg14[%c27, %c0], %0 {strides = array<i32>} : memref<128x64xf32, #tpu.memory_space<vmem>>, vector<101x64xf32>,
    %c0_0 = arith.constant 0 : index
    %c0_1 = arith.constant 0 : index
    %c0_2 = arith.constant 0 : index
    %c0_3 = arith.constant 0 : index
    %2 = vector.load %arg1[%c0_0, %c0_1, %c0_2, %c0_3] : memref<1x3x16x16xf32, #tpu.memory_space<vmem>>, vector<1x3x8x8xf32>
    %3 = vector.shape_cast %2 : vector<1x3x8x8xf32> to vector<3x8x8xf32>
    %4 = vector.shape_cast %3 : vector<3x8x8xf32> to vector<3x64xf32>
    %c0_4 = arith.constant 0 : index
    %c0_5 = arith.constant 0 : index
    %5 = vector.load %arg14[%c0_4, %c0_5] : memref<128x64xf32, #tpu.memory_space<vmem>>, vector<3x64xf32>
    tpu.vector_store %arg14[%c0_4, %c0_5], %4 {strides = array<i32>} : memref<128x64xf32, #tpu.memory_space<vmem>>, vector<3x64xf32>,
    %c0_6 = arith.constant 0 : index
    %c0_7 = arith.constant 0 : index
    %c0_8 = arith.constant 0 : index
    %c4 = arith.constant 4 : index
    %6 = vector.load %arg1[%c0_6, %c0_7, %c0_8, %c4] : memref<1x3x16x16xf32, #tpu.memory_space<vmem>>, vector<1x3x8x8xf32>
    %7 = vector.shape_cast %6 : vector<1x3x8x8xf32> to vector<3x8x8xf32>
    %8 = vector.shape_cast %7 : vector<3x8x8xf32> to vector<3x64xf32>
    %c3 = arith.constant 3 : index
    %c0_9 = arith.constant 0 : index
    %9 = vector.load %arg14[%c3, %c0_9] : memref<128x64xf32, #tpu.memory_space<vmem>>, vector<3x64xf32>
    tpu.vector_store %arg14[%c3, %c0_9], %8 {strides = array<i32>} : memref<128x64xf32, #tpu.memory_space<vmem>>, vector<3x64xf32>,
    %c0_10 = arith.constant 0 : index
    %c0_11 = arith.constant 0 : index
    %c0_12 = arith.constant 0 : index
    %c8 = arith.constant 8 : index
    %10 = vector.load %arg1[%c0_10, %c0_11, %c0_12, %c8] : memref<1x3x16x16xf32, #tpu.memory_space<vmem>>, vector<1x3x8x8xf32>
    %11 = vector.shape_cast %10 : vector<1x3x8x8xf32> to vector<3x8x8xf32>
    %12 = vector.shape_cast %11 : vector<3x8x8xf32> to vector<3x64xf32>
    %c6 = arith.constant 6 : index
    %c0_13 = arith.constant 0 : index
    %13 = vector.load %arg14[%c6, %c0_13] : memref<128x64xf32, #tpu.memory_space<vmem>>, vector<3x64xf32>
    tpu.vector_store %arg14[%c6, %c0_13], %12 {strides = array<i32>} : memref<128x64xf32, #tpu.memory_space<vmem>>, vector<3x64xf32>,
    %c0_14 = arith.constant 0 : index
    %c0_15 = arith.constant 0 : index
    %c4_16 = arith.constant 4 : index
    %c0_17 = arith.constant 0 : index
    %14 = vector.load %arg1[%c0_14, %c0_15, %c4_16, %c0_17] : memref<1x3x16x16xf32, #tpu.memory_space<vmem>>, vector<1x3x8x8xf32>
    %15 = vector.shape_cast %14 : vector<1x3x8x8xf32> to vector<3x8x8xf32>
    %16 = vector.shape_cast %15 : vector<3x8x8xf32> to vector<3x64xf32>
    %c9 = arith.constant 9 : index
    %c0_18 = arith.constant 0 : index
    %17 = vector.load %arg14[%c9, %c0_18] : memref<128x64xf32, #tpu.memory_space<vmem>>, vector<3x64xf32>
    tpu.vector_store %arg14[%c9, %c0_18], %16 {strides = array<i32>} : memref<128x64xf32, #tpu.memory_space<vmem>>, vector<3x64xf32>,
    %c0_19 = arith.constant 0 : index
    %c0_20 = arith.constant 0 : index
    %c4_21 = arith.constant 4 : index
    %c4_22 = arith.constant 4 : index
    %18 = vector.load %arg1[%c0_19, %c0_20, %c4_21, %c4_22] : memref<1x3x16x16xf32, #tpu.memory_space<vmem>>, vector<1x3x8x8xf32>
    %19 = vector.shape_cast %18 : vector<1x3x8x8xf32> to vector<3x8x8xf32>
    %20 = vector.shape_cast %19 : vector<3x8x8xf32> to vector<3x64xf32>
    %c12 = arith.constant 12 : index
    %c0_23 = arith.constant 0 : index
    %21 = vector.load %arg14[%c12, %c0_23] : memref<128x64xf32, #tpu.memory_space<vmem>>, vector<3x64xf32>
    tpu.vector_store %arg14[%c12, %c0_23], %20 {strides = array<i32>} : memref<128x64xf32, #tpu.memory_space<vmem>>, vector<3x64xf32>,
    %c0_24 = arith.constant 0 : index
    %c0_25 = arith.constant 0 : index
    %c4_26 = arith.constant 4 : index
    %c8_27 = arith.constant 8 : index
    %22 = vector.load %arg1[%c0_24, %c0_25, %c4_26, %c8_27] : memref<1x3x16x16xf32, #tpu.memory_space<vmem>>, vector<1x3x8x8xf32>
    %23 = vector.shape_cast %22 : vector<1x3x8x8xf32> to vector<3x8x8xf32>
    %24 = vector.shape_cast %23 : vector<3x8x8xf32> to vector<3x64xf32>
    %c15 = arith.constant 15 : index
    %c0_28 = arith.constant 0 : index
    %25 = vector.load %arg14[%c15, %c0_28] : memref<128x64xf32, #tpu.memory_space<vmem>>, vector<3x64xf32>
    tpu.vector_store %arg14[%c15, %c0_28], %24 {strides = array<i32>} : memref<128x64xf32, #tpu.memory_space<vmem>>, vector<3x64xf32>,
    %c0_29 = arith.constant 0 : index
    %c0_30 = arith.constant 0 : index
    %c8_31 = arith.constant 8 : index
    %c0_32 = arith.constant 0 : index
    %26 = vector.load %arg1[%c0_29, %c0_30, %c8_31, %c0_32] : memref<1x3x16x16xf32, #tpu.memory_space<vmem>>, vector<1x3x8x8xf32>
    %27 = vector.shape_cast %26 : vector<1x3x8x8xf32> to vector<3x8x8xf32>
    %28 = vector.shape_cast %27 : vector<3x8x8xf32> to vector<3x64xf32>
    %c18 = arith.constant 18 : index
    %c0_33 = arith.constant 0 : index
    %29 = vector.load %arg14[%c18, %c0_33] : memref<128x64xf32, #tpu.memory_space<vmem>>, vector<3x64xf32>
    tpu.vector_store %arg14[%c18, %c0_33], %28 {strides = array<i32>} : memref<128x64xf32, #tpu.memory_space<vmem>>, vector<3x64xf32>,
    %c0_34 = arith.constant 0 : index
    %c0_35 = arith.constant 0 : index
    %c8_36 = arith.constant 8 : index
    %c4_37 = arith.constant 4 : index
    %30 = vector.load %arg1[%c0_34, %c0_35, %c8_36, %c4_37] : memref<1x3x16x16xf32, #tpu.memory_space<vmem>>, vector<1x3x8x8xf32>
    %31 = vector.shape_cast %30 : vector<1x3x8x8xf32> to vector<3x8x8xf32>
    %32 = vector.shape_cast %31 : vector<3x8x8xf32> to vector<3x64xf32>
    %c21 = arith.constant 21 : index
    %c0_38 = arith.constant 0 : index
    %33 = vector.load %arg14[%c21, %c0_38] : memref<128x64xf32, #tpu.memory_space<vmem>>, vector<3x64xf32>
    tpu.vector_store %arg14[%c21, %c0_38], %32 {strides = array<i32>} : memref<128x64xf32, #tpu.memory_space<vmem>>, vector<3x64xf32>,
    %c0_39 = arith.constant 0 : index
    %c0_40 = arith.constant 0 : index
    %c8_41 = arith.constant 8 : index
    %c8_42 = arith.constant 8 : index
    %34 = vector.load %arg1[%c0_39, %c0_40, %c8_41, %c8_42] : memref<1x3x16x16xf32, #tpu.memory_space<vmem>>, vector<1x3x8x8xf32>
    %35 = vector.shape_cast %34 : vector<1x3x8x8xf32> to vector<3x8x8xf32>
    %36 = vector.shape_cast %35 : vector<3x8x8xf32> to vector<3x64xf32>
    %c24 = arith.constant 24 : index
    %c0_43 = arith.constant 0 : index
    %37 = vector.load %arg14[%c24, %c0_43] : memref<128x64xf32, #tpu.memory_space<vmem>>, vector<3x64xf32>
    tpu.vector_store %arg14[%c24, %c0_43], %36 {strides = array<i32>} : memref<128x64xf32, #tpu.memory_space<vmem>>, vector<3x64xf32>,
    %c0_44 = arith.constant 0 : index
    %c0_45 = arith.constant 0 : index
    %38 = vector.load %arg2[%c0_44, %c0_45] : memref<64x64xf32, #tpu.memory_space<vmem>>, vector<64x64xf32>
    %c0_46 = arith.constant 0 : index
    %c0_47 = arith.constant 0 : index
    %39 = vector.load %arg14[%c0_46, %c0_47] : memref<128x64xf32, #tpu.memory_space<vmem>>, vector<128x64xf32>
    %40 = tpu.transpose %39, [1, 0] : vector<128x64xf32> -> vector<64x128xf32>
    %cst_48 = arith.constant dense<0.000000e+00> : vector<64x128xf32>
    %41 = tpu.matmul %38, %40, %cst_48 {dimension_numbers = #tpu.dot_dimension_numbers<[1], [0], [0], [1], [0, 0, 1, 1], [], []>} : vector<64x64xf32>, vector<64x128xf32>, vector<64x128xf32> -> vector<64x128xf32>
    %42 = arith.truncf %41 : vector<64x128xf32> to vector<64x128xbf16>
    %c0_49 = arith.constant 0 : index
    %c0_50 = arith.constant 0 : index
    %43 = vector.load %arg5[%c0_49, %c0_50] : memref<128x128xbf16, #tpu.memory_space<vmem>>, vector<128x128xbf16>
    %cst_51 = arith.constant dense<0.000000e+00> : vector<64x128xf32>
    %44 = tpu.matmul %42, %43, %cst_51 {dimension_numbers = #tpu.dot_dimension_numbers<[1], [0], [0], [1], [0, 0, 1, 1], [], []>} : vector<64x128xbf16>, vector<128x128xbf16>, vector<64x128xf32> -> vector<64x128xf32>
    %c0_52 = arith.constant 0 : index
    %c0_53 = arith.constant 0 : index
    %45 = vector.load %arg6[%c0_52, %c0_53] : memref<1x128xf32, #tpu.memory_space<vmem>>, vector<1x128xf32>
    %46 = vector.broadcast %45 : vector<1x128xf32> to vector<64x128xf32>
    %47 = arith.addf %44, %46 : vector<64x128xf32>
    %cst_54 = arith.constant 0.000000e+00 : f32
    %48 = vector.broadcast %cst_54 : f32 to vector<64x128xf32>
    %49 = arith.maximumf %47, %48 : vector<64x128xf32>
    %50 = arith.truncf %49 : vector<64x128xf32> to vector<64x128xbf16>
    %c0_55 = arith.constant 0 : index
    %c0_56 = arith.constant 0 : index
    %51 = vector.load %arg7[%c0_55, %c0_56] : memref<128x128xbf16, #tpu.memory_space<vmem>>, vector<128x128xbf16>
    %cst_57 = arith.constant dense<0.000000e+00> : vector<64x128xf32>
    %52 = tpu.matmul %50, %51, %cst_57 {dimension_numbers = #tpu.dot_dimension_numbers<[1], [0], [0], [1], [0, 0, 1, 1], [], []>} : vector<64x128xbf16>, vector<128x128xbf16>, vector<64x128xf32> -> vector<64x128xf32>
    %c0_58 = arith.constant 0 : index
    %c0_59 = arith.constant 0 : index
    %53 = vector.load %arg8[%c0_58, %c0_59] : memref<1x128xf32, #tpu.memory_space<vmem>>, vector<1x128xf32>
    %54 = vector.broadcast %53 : vector<1x128xf32> to vector<64x128xf32>
    %55 = arith.addf %52, %54 : vector<64x128xf32>
    %cst_60 = arith.constant 0.000000e+00 : f32
    %56 = vector.broadcast %cst_60 : f32 to vector<64x128xf32>
    %57 = arith.maximumf %55, %56 : vector<64x128xf32>
    %58 = arith.truncf %57 : vector<64x128xf32> to vector<64x128xbf16>
    %c0_61 = arith.constant 0 : index
    %c0_62 = arith.constant 0 : index
    %59 = vector.load %arg9[%c0_61, %c0_62] : memref<128x128xbf16, #tpu.memory_space<vmem>>, vector<128x128xbf16>
    %cst_63 = arith.constant dense<0.000000e+00> : vector<64x128xf32>
    %60 = tpu.matmul %58, %59, %cst_63 {dimension_numbers = #tpu.dot_dimension_numbers<[1], [0], [0], [1], [0, 0, 1, 1], [], []>} : vector<64x128xbf16>, vector<128x128xbf16>, vector<64x128xf32> -> vector<64x128xf32>
    %c0_64 = arith.constant 0 : index
    %c0_65 = arith.constant 0 : index
    %61 = vector.load %arg10[%c0_64, %c0_65] : memref<1x128xf32, #tpu.memory_space<vmem>>, vector<1x128xf32>
    %62 = vector.broadcast %61 : vector<1x128xf32> to vector<64x128xf32>
    %63 = arith.addf %60, %62 : vector<64x128xf32>
    %cst_66 = arith.constant 0.000000e+00 : f32
    %64 = vector.broadcast %cst_66 : f32 to vector<64x128xf32>
    %65 = arith.maximumf %63, %64 : vector<64x128xf32>
    %66 = arith.truncf %65 : vector<64x128xf32> to vector<64x128xbf16>
    %c0_67 = arith.constant 0 : index
    %c0_68 = arith.constant 0 : index
    %67 = vector.load %arg11[%c0_67, %c0_68] : memref<128x128xbf16, #tpu.memory_space<vmem>>, vector<128x128xbf16>
    %cst_69 = arith.constant dense<0.000000e+00> : vector<64x128xf32>
    %68 = tpu.matmul %66, %67, %cst_69 {dimension_numbers = #tpu.dot_dimension_numbers<[1], [0], [0], [1], [0, 0, 1, 1], [], []>} : vector<64x128xbf16>, vector<128x128xbf16>, vector<64x128xf32> -> vector<64x128xf32>
    %c0_70 = arith.constant 0 : index
    %c0_71 = arith.constant 0 : index
    %69 = vector.load %arg12[%c0_70, %c0_71] : memref<1x128xf32, #tpu.memory_space<vmem>>, vector<1x128xf32>
    %70 = vector.broadcast %69 : vector<1x128xf32> to vector<64x128xf32>
    %71 = arith.addf %68, %70 : vector<64x128xf32>
    %72 = arith.negf %71 : vector<64x128xf32>
    %73 = math.exp %72 : vector<64x128xf32>
    %cst_72 = arith.constant 1.000000e+00 : f32
    %74 = vector.broadcast %cst_72 : f32 to vector<64x128xf32>
    %75 = arith.addf %74, %73 : vector<64x128xf32>
    %76 = arith.divf %74, %75 : vector<64x128xf32>
    %c0_73 = arith.constant 0 : index
    %c0_74 = arith.constant 0 : index
    %77 = vector.load %arg3[%c0_73, %c0_74] : memref<64x64xf32, #tpu.memory_space<vmem>>, vector<64x64xf32>
    %78 = arith.mulf %76, %41 : vector<64x128xf32>
    %cst_75 = arith.constant dense<0.000000e+00> : vector<64x128xf32>
    %79 = tpu.matmul %77, %78, %cst_75 {dimension_numbers = #tpu.dot_dimension_numbers<[1], [0], [0], [1], [0, 0, 1, 1], [], []>} : vector<64x64xf32>, vector<64x128xf32>, vector<64x128xf32> -> vector<64x128xf32>
    %80 = tpu.transpose %79, [1, 0] : vector<64x128xf32> -> vector<128x64xf32>
    %cst_76 = arith.constant 0.000000e+00 : f32
    %81 = vector.broadcast %cst_76 : f32 to vector<3x16x16xf32>
    %c0_77 = arith.constant 0 : index
    %c0_78 = arith.constant 0 : index
    %c0_79 = arith.constant 0 : index
    %82 = vector.load %arg15[%c0_77, %c0_78, %c0_79] : memref<3x16x16xf32, #tpu.memory_space<vmem>>, vector<3x16x16xf32>
    tpu.vector_store %arg15[%c0_77, %c0_78, %c0_79], %81 {strides = array<i32>} : memref<3x16x16xf32, #tpu.memory_space<vmem>>, vector<3x16x16xf32>,
    %c0_80 = arith.constant 0 : index
    %c0_81 = arith.constant 0 : index
    %c0_82 = arith.constant 0 : index
    %83 = vector.load %arg15[%c0_80, %c0_81, %c0_82] : memref<3x16x16xf32, #tpu.memory_space<vmem>>, vector<3x8x8xf32>
    %84 = vector.extract_strided_slice %80 {offsets = [0, 0], sizes = [3, 64], strides = [1, 1]} : vector<128x64xf32> to vector<3x64xf32>
    %85 = vector.shape_cast %84 : vector<3x64xf32> to vector<3x8x8xf32>
    %86 = arith.addf %83, %85 : vector<3x8x8xf32>
    %c0_83 = arith.constant 0 : index
    %c0_84 = arith.constant 0 : index
    %c0_85 = arith.constant 0 : index
    %87 = vector.load %arg15[%c0_83, %c0_84, %c0_85] : memref<3x16x16xf32, #tpu.memory_space<vmem>>, vector<3x8x8xf32>
    tpu.vector_store %arg15[%c0_83, %c0_84, %c0_85], %86 {strides = array<i32>} : memref<3x16x16xf32, #tpu.memory_space<vmem>>, vector<3x8x8xf32>,
    %c0_86 = arith.constant 0 : index
    %c0_87 = arith.constant 0 : index
    %c4_88 = arith.constant 4 : index
    %88 = vector.load %arg15[%c0_86, %c0_87, %c4_88] : memref<3x16x16xf32, #tpu.memory_space<vmem>>, vector<3x8x8xf32>
    %89 = vector.extract_strided_slice %80 {offsets = [3, 0], sizes = [3, 64], strides = [1, 1]} : vector<128x64xf32> to vector<3x64xf32>
    %90 = vector.shape_cast %89 : vector<3x64xf32> to vector<3x8x8xf32>
    %91 = arith.addf %88, %90 : vector<3x8x8xf32>
    %c0_89 = arith.constant 0 : index
    %c0_90 = arith.constant 0 : index
    %c4_91 = arith.constant 4 : index
    %92 = vector.load %arg15[%c0_89, %c0_90, %c4_91] : memref<3x16x16xf32, #tpu.memory_space<vmem>>, vector<3x8x8xf32>
    tpu.vector_store %arg15[%c0_89, %c0_90, %c4_91], %91 {strides = array<i32>} : memref<3x16x16xf32, #tpu.memory_space<vmem>>, vector<3x8x8xf32>,
    %c0_92 = arith.constant 0 : index
    %c0_93 = arith.constant 0 : index
    %c8_94 = arith.constant 8 : index
    %93 = vector.load %arg15[%c0_92, %c0_93, %c8_94] : memref<3x16x16xf32, #tpu.memory_space<vmem>>, vector<3x8x8xf32>
    %94 = vector.extract_strided_slice %80 {offsets = [6, 0], sizes = [3, 64], strides = [1, 1]} : vector<128x64xf32> to vector<3x64xf32>
    %95 = vector.shape_cast %94 : vector<3x64xf32> to vector<3x8x8xf32>
    %96 = arith.addf %93, %95 : vector<3x8x8xf32>
    %c0_95 = arith.constant 0 : index
    %c0_96 = arith.constant 0 : index
    %c8_97 = arith.constant 8 : index
    %97 = vector.load %arg15[%c0_95, %c0_96, %c8_97] : memref<3x16x16xf32, #tpu.memory_space<vmem>>, vector<3x8x8xf32>
    tpu.vector_store %arg15[%c0_95, %c0_96, %c8_97], %96 {strides = array<i32>} : memref<3x16x16xf32, #tpu.memory_space<vmem>>, vector<3x8x8xf32>,
    %c0_98 = arith.constant 0 : index
    %c4_99 = arith.constant 4 : index
    %c0_100 = arith.constant 0 : index
    %98 = vector.load %arg15[%c0_98, %c4_99, %c0_100] : memref<3x16x16xf32, #tpu.memory_space<vmem>>, vector<3x8x8xf32>
    %99 = vector.extract_strided_slice %80 {offsets = [9, 0], sizes = [3, 64], strides = [1, 1]} : vector<128x64xf32> to vector<3x64xf32>
    %100 = vector.shape_cast %99 : vector<3x64xf32> to vector<3x8x8xf32>
    %101 = arith.addf %98, %100 : vector<3x8x8xf32>
    %c0_101 = arith.constant 0 : index
    %c4_102 = arith.constant 4 : index
    %c0_103 = arith.constant 0 : index
    %102 = vector.load %arg15[%c0_101, %c4_102, %c0_103] : memref<3x16x16xf32, #tpu.memory_space<vmem>>, vector<3x8x8xf32>
    tpu.vector_store %arg15[%c0_101, %c4_102, %c0_103], %101 {strides = array<i32>} : memref<3x16x16xf32, #tpu.memory_space<vmem>>, vector<3x8x8xf32>,
    %c0_104 = arith.constant 0 : index
    %c4_105 = arith.constant 4 : index
    %c4_106 = arith.constant 4 : index
    %103 = vector.load %arg15[%c0_104, %c4_105, %c4_106] : memref<3x16x16xf32, #tpu.memory_space<vmem>>, vector<3x8x8xf32>
    %104 = vector.extract_strided_slice %80 {offsets = [12, 0], sizes = [3, 64], strides = [1, 1]} : vector<128x64xf32> to vector<3x64xf32>
    %105 = vector.shape_cast %104 : vector<3x64xf32> to vector<3x8x8xf32>
    %106 = arith.addf %103, %105 : vector<3x8x8xf32>
    %c0_107 = arith.constant 0 : index
    %c4_108 = arith.constant 4 : index
    %c4_109 = arith.constant 4 : index
    %107 = vector.load %arg15[%c0_107, %c4_108, %c4_109] : memref<3x16x16xf32, #tpu.memory_space<vmem>>, vector<3x8x8xf32>
    tpu.vector_store %arg15[%c0_107, %c4_108, %c4_109], %106 {strides = array<i32>} : memref<3x16x16xf32, #tpu.memory_space<vmem>>, vector<3x8x8xf32>,
    %c0_110 = arith.constant 0 : index
    %c4_111 = arith.constant 4 : index
    %c8_112 = arith.constant 8 : index
    %108 = vector.load %arg15[%c0_110, %c4_111, %c8_112] : memref<3x16x16xf32, #tpu.memory_space<vmem>>, vector<3x8x8xf32>
    %109 = vector.extract_strided_slice %80 {offsets = [15, 0], sizes = [3, 64], strides = [1, 1]} : vector<128x64xf32> to vector<3x64xf32>
    %110 = vector.shape_cast %109 : vector<3x64xf32> to vector<3x8x8xf32>
    %111 = arith.addf %108, %110 : vector<3x8x8xf32>
    %c0_113 = arith.constant 0 : index
    %c4_114 = arith.constant 4 : index
    %c8_115 = arith.constant 8 : index
    %112 = vector.load %arg15[%c0_113, %c4_114, %c8_115] : memref<3x16x16xf32, #tpu.memory_space<vmem>>, vector<3x8x8xf32>
    tpu.vector_store %arg15[%c0_113, %c4_114, %c8_115], %111 {strides = array<i32>} : memref<3x16x16xf32, #tpu.memory_space<vmem>>, vector<3x8x8xf32>,
    %c0_116 = arith.constant 0 : index
    %c8_117 = arith.constant 8 : index
    %c0_118 = arith.constant 0 : index
    %113 = vector.load %arg15[%c0_116, %c8_117, %c0_118] : memref<3x16x16xf32, #tpu.memory_space<vmem>>, vector<3x8x8xf32>
    %114 = vector.extract_strided_slice %80 {offsets = [18, 0], sizes = [3, 64], strides = [1, 1]} : vector<128x64xf32> to vector<3x64xf32>
    %115 = vector.shape_cast %114 : vector<3x64xf32> to vector<3x8x8xf32>
    %116 = arith.addf %113, %115 : vector<3x8x8xf32>
    %c0_119 = arith.constant 0 : index
    %c8_120 = arith.constant 8 : index
    %c0_121 = arith.constant 0 : index
    %117 = vector.load %arg15[%c0_119, %c8_120, %c0_121] : memref<3x16x16xf32, #tpu.memory_space<vmem>>, vector<3x8x8xf32>
    tpu.vector_store %arg15[%c0_119, %c8_120, %c0_121], %116 {strides = array<i32>} : memref<3x16x16xf32, #tpu.memory_space<vmem>>, vector<3x8x8xf32>,
    %c0_122 = arith.constant 0 : index
    %c8_123 = arith.constant 8 : index
    %c4_124 = arith.constant 4 : index
    %118 = vector.load %arg15[%c0_122, %c8_123, %c4_124] : memref<3x16x16xf32, #tpu.memory_space<vmem>>, vector<3x8x8xf32>
    %119 = vector.extract_strided_slice %80 {offsets = [21, 0], sizes = [3, 64], strides = [1, 1]} : vector<128x64xf32> to vector<3x64xf32>
    %120 = vector.shape_cast %119 : vector<3x64xf32> to vector<3x8x8xf32>
    %121 = arith.addf %118, %120 : vector<3x8x8xf32>
    %c0_125 = arith.constant 0 : index
    %c8_126 = arith.constant 8 : index
    %c4_127 = arith.constant 4 : index
    %122 = vector.load %arg15[%c0_125, %c8_126, %c4_127] : memref<3x16x16xf32, #tpu.memory_space<vmem>>, vector<3x8x8xf32>
    tpu.vector_store %arg15[%c0_125, %c8_126, %c4_127], %121 {strides = array<i32>} : memref<3x16x16xf32, #tpu.memory_space<vmem>>, vector<3x8x8xf32>,
    %c0_128 = arith.constant 0 : index
    %c8_129 = arith.constant 8 : index
    %c8_130 = arith.constant 8 : index
    %123 = vector.load %arg15[%c0_128, %c8_129, %c8_130] : memref<3x16x16xf32, #tpu.memory_space<vmem>>, vector<3x8x8xf32>
    %124 = vector.extract_strided_slice %80 {offsets = [24, 0], sizes = [3, 64], strides = [1, 1]} : vector<128x64xf32> to vector<3x64xf32>
    %125 = vector.shape_cast %124 : vector<3x64xf32> to vector<3x8x8xf32>
    %126 = arith.addf %123, %125 : vector<3x8x8xf32>
    %c0_131 = arith.constant 0 : index
    %c8_132 = arith.constant 8 : index
    %c8_133 = arith.constant 8 : index
    %127 = vector.load %arg15[%c0_131, %c8_132, %c8_133] : memref<3x16x16xf32, #tpu.memory_space<vmem>>, vector<3x8x8xf32>
    tpu.vector_store %arg15[%c0_131, %c8_132, %c8_133], %126 {strides = array<i32>} : memref<3x16x16xf32, #tpu.memory_space<vmem>>, vector<3x8x8xf32>,
    %c0_134 = arith.constant 0 : index
    %c0_135 = arith.constant 0 : index
    %c0_136 = arith.constant 0 : index
    %128 = vector.load %arg15[%c0_134, %c0_135, %c0_136] : memref<3x16x16xf32, #tpu.memory_space<vmem>>, vector<3x16x16xf32>
    %129 = vector.shape_cast %128 : vector<3x16x16xf32> to vector<3x256xf32>
    %c0_137 = arith.constant 0 : index
    %c0_138 = arith.constant 0 : index
    %130 = vector.load %arg4[%c0_137, %c0_138] : memref<3x256xf32, #tpu.memory_space<vmem>>, vector<3x256xf32>
    %131 = arith.mulf %129, %130 : vector<3x256xf32>
    %c0_139 = arith.constant 0 : index
    %c0_140 = arith.constant 0 : index
    %c0_141 = arith.constant 0 : index
    %132 = vector.load %arg13[%c0_139, %c0_140, %c0_141] : memref<1x3x256xf32, #tpu.memory_space<vmem>>, vector<1x3x256xf32>
    %133 = vector.shape_cast %132 : vector<1x3x256xf32> to vector<3x256xf32>
    %134 = vector.shape_cast %131 : vector<3x256xf32> to vector<1x3x256xf32>
    tpu.vector_store %arg13[%c0_139, %c0_140, %c0_141], %134 {strides = array<i32>} : memref<1x3x256xf32, #tpu.memory_space<vmem>>, vector<1x3x256xf32>,
    return
  }
  func.func @transform_0(%arg0: i32) -> (i32, i32, i32, i32) {
    %c0_i32 = arith.constant 0 : i32
    %c0_i32_0 = arith.constant 0 : i32
    %c0_i32_1 = arith.constant 0 : i32
    %c0_i32_2 = arith.constant 0 : i32
    return %arg0, %c0_i32, %c0_i32_0, %c0_i32_1 : i32, i32, i32, i32
  }
  func.func @transform_1(%arg0: i32) -> (i32, i32) {
    %c0_i32 = arith.constant 0 : i32
    %c0_i32_0 = arith.constant 0 : i32
    %c0_i32_1 = arith.constant 0 : i32
    return %c0_i32, %c0_i32_0 : i32, i32
  }
  func.func @transform_2(%arg0: i32) -> (i32, i32) {
    %c0_i32 = arith.constant 0 : i32
    %c0_i32_0 = arith.constant 0 : i32
    %c0_i32_1 = arith.constant 0 : i32
    return %c0_i32, %c0_i32_0 : i32, i32
  }
  func.func @transform_3(%arg0: i32) -> (i32, i32) {
    %c0_i32 = arith.constant 0 : i32
    %c0_i32_0 = arith.constant 0 : i32
    %c0_i32_1 = arith.constant 0 : i32
    return %c0_i32, %c0_i32_0 : i32, i32
  }
  func.func @transform_4(%arg0: i32) -> (i32, i32) {
    %c0_i32 = arith.constant 0 : i32
    %c0_i32_0 = arith.constant 0 : i32
    %c0_i32_1 = arith.constant 0 : i32
    return %c0_i32, %c0_i32_0 : i32, i32
  }
  func.func @transform_5(%arg0: i32) -> (i32, i32) {
    %c0_i32 = arith.constant 0 : i32
    %c0_i32_0 = arith.constant 0 : i32
    %c0_i32_1 = arith.constant 0 : i32
    return %c0_i32, %c0_i32_0 : i32, i32
  }
  func.func @transform_6(%arg0: i32) -> (i32, i32) {
    %c0_i32 = arith.constant 0 : i32
    %c0_i32_0 = arith.constant 0 : i32
    %c0_i32_1 = arith.constant 0 : i32
    return %c0_i32, %c0_i32_0 : i32, i32
  }
  func.func @transform_7(%arg0: i32) -> (i32, i32) {
    %c0_i32 = arith.constant 0 : i32
    %c0_i32_0 = arith.constant 0 : i32
    %c0_i32_1 = arith.constant 0 : i32
    return %c0_i32, %c0_i32_0 : i32, i32
  }
  func.func @transform_8(%arg0: i32) -> (i32, i32) {
    %c0_i32 = arith.constant 0 : i32
    %c0_i32_0 = arith.constant 0 : i32
    %c0_i32_1 = arith.constant 0 : i32
    return %c0_i32, %c0_i32_0 : i32, i32
  }
  func.func @transform_9(%arg0: i32) -> (i32, i32) {
    %c0_i32 = arith.constant 0 : i32
    %c0_i32_0 = arith.constant 0 : i32
    %c0_i32_1 = arith.constant 0 : i32
    return %c0_i32, %c0_i32_0 : i32, i32
  }
  func.func @transform_10(%arg0: i32) -> (i32, i32) {
    %c0_i32 = arith.constant 0 : i32
    %c0_i32_0 = arith.constant 0 : i32
    %c0_i32_1 = arith.constant 0 : i32
    return %c0_i32, %c0_i32_0 : i32, i32
  }
  func.func @transform_11(%arg0: i32) -> (i32, i32) {
    %c0_i32 = arith.constant 0 : i32
    %c0_i32_0 = arith.constant 0 : i32
    %c0_i32_1 = arith.constant 0 : i32
    return %c0_i32, %c0_i32_0 : i32, i32
  }
  func.func @transform_12(%arg0: i32) -> (i32, i32, i32) {
    %c0_i32 = arith.constant 0 : i32
    %c0_i32_0 = arith.constant 0 : i32
    %c0_i32_1 = arith.constant 0 : i32
    return %arg0, %c0_i32, %c0_i32_0 : i32, i32, i32
  }
}

</mosaic_0001>

<llo_original>
// kernel: tpu_custom_call.1
$region0: #{tpu_custom_call.1}
  #allocation0 [shape = 'u32[]', space=smem, size = 0x4, offset = 0x4, fixed_abs, tag = 'smem constant byte address 0x4 - core index']
  #allocation1 [shape = 'u32[72,128]{1,0:T(1,128)}', space=vmem, size = 0x9000, scoped, tag = 'internal scratch']
  #allocation2 [shape = 'f32[128,64]{1,0:T(8,128)}', space=vmem, size = 0x10000, scoped, tag = 'scratch operand']
  #allocation3 [shape = 'f32[3,16,16]{2,1,0:T(8,128)}', space=vmem, size = 0x6000, scoped, tag = 'scratch operand']
  %s0 = inlined_call_operand.hbm [shape: f32[2,3,16,16], index: 0, kind: input, shape index: {}]
  %s1 = inlined_call_operand.hbm [shape: f32[64,64], index: 1, kind: input, shape index: {}]
  %s2 = inlined_call_operand.hbm [shape: f32[64,64], index: 2, kind: input, shape index: {}]
  %s3 = inlined_call_operand.hbm [shape: f32[3,256], index: 3, kind: input, shape index: {}]
  %s4 = inlined_call_operand.hbm [shape: bf16[128,128], index: 4, kind: input, shape index: {}]
  %s5 = inlined_call_operand.vmem [shape: f32[1,128], index: 5, kind: input, shape index: {}]
  %s6 = inlined_call_operand.hbm [shape: bf16[128,128], index: 6, kind: input, shape index: {}]
  %s7 = inlined_call_operand.vmem [shape: f32[1,128], index: 7, kind: input, shape index: {}]
  %s8 = inlined_call_operand.hbm [shape: bf16[128,128], index: 8, kind: input, shape index: {}]
  %s9 = inlined_call_operand.vmem [shape: f32[1,128], index: 9, kind: input, shape index: {}]
  %s10 = inlined_call_operand.hbm [shape: bf16[128,128], index: 10, kind: input, shape index: {}]
  %s11 = inlined_call_operand.vmem [shape: f32[1,128], index: 11, kind: input, shape index: {}]
  %s12 = inlined_call_operand.vmem [shape: f32[2,3,256], index: 12, kind: output, shape index: {}]
  %s13 = sld [smem:[#allocation0]]
  $region113: #{tpu_custom_call.1} parent=0
    _
  %s15 = ssub.s32 1, %s13
  %s16 = scalar_select 0, %s15, %s13
  $region1: #{tpu_custom_call.1} parent=0
    #allocation4 [shape = 'u8[49152]{0}', space=vmem, size = 0xc000, scoped, tag = 'input window, operand 0']
    #allocation5 [shape = 's32[2]{0}', space=sflag, size = 0x8, scoped, tag = 'scoped memory for tpu_custom_call.1']
    #allocation6 [shape = 'u8[32768]{0}', space=vmem, size = 0x8000, scoped, tag = 'input window, operand 1, single buffered']
    #allocation7 [shape = 's32[1]{0}', space=sflag, size = 0x4, scoped, tag = 'scoped memory for tpu_custom_call.1']
    #allocation8 [shape = 'u8[32768]{0}', space=vmem, size = 0x8000, scoped, tag = 'input window, operand 2, single buffered']
    #allocation9 [shape = 'u8[4096]{0}', space=vmem, size = 0x1000, scoped, tag = 'input window, operand 3, single buffered']
    #allocation10 [shape = 's32[1]{0}', space=sflag, size = 0x4, scoped, tag = 'scoped memory for tpu_custom_call.1']
    #allocation11 [shape = 'u8[32768]{0}', space=vmem, size = 0x8000, scoped, tag = 'input window, operand 4, single buffered']
    #allocation12 [shape = 'u8[32768]{0}', space=vmem, size = 0x8000, scoped, tag = 'input window, operand 6, single buffered']
    #allocation13 [shape = 's32[1]{0}', space=sflag, size = 0x4, scoped, tag = 'scoped memory for tpu_custom_call.1']
    #allocation14 [shape = 'u8[32768]{0}', space=vmem, size = 0x8000, scoped, tag = 'input window, operand 8, single buffered']
    #allocation15 [shape = 'u8[32768]{0}', space=vmem, size = 0x8000, scoped, tag = 'input window, operand 10, single buffered']
    #allocation16 [shape = 's32[1]{0}', space=sflag, size = 0x4, scoped, tag = 'scoped memory for tpu_custom_call.1']
    %17 = vsyncpa [#allocation5], 0
    %s18 = scalar_lea.sflag [#allocation5], 1
    %19 = vsyncpa %s18, 0
    %20 = vsyncpa [#allocation7], 0
    %21 = vsyncpa [#allocation10], 0
    %22 = vsyncpa [#allocation13], 0
    %23 = vsyncpa [#allocation16], 0
    loop: start=0, step=1, limit=4
    $region2: #{tpu_custom_call.1} parent=1 // loop_pre_header
      _
    $region3: #{tpu_custom_call.1} parent=1 // loop_header
      %s25 = sphi 0, %s29
      %p26 = scmp.ge.s32.totalorder %s25, 4
      %s35 = sphi 0, %s37
      %s38 = sphi 0, %s35
      %s39 = sphi 0, %s38
      %s55 = sphi 0, %s39
      %s59 = sphi 0, %s59
      %s61 = sphi 0, %s59
      %s62 = sphi 0, %s61
      %s76 = sphi 0, %s62
      %s80 = sphi 0, %s80
      %s82 = sphi 0, %s80
      %s83 = sphi 0, %s82
      %s97 = sphi 0, %s83
      %s101 = sphi 0, %s101
      %s103 = sphi 0, %s101
      %s104 = sphi 0, %s103
      %s118 = sphi 0, %s104
      %s122 = sphi 0, %s122
      %s124 = sphi 0, %s122
      %s125 = sphi 0, %s124
      %s139 = sphi 0, %s125
      %s143 = sphi 0, %s143
      %s145 = sphi 0, %s143
      %s146 = sphi 0, %s145
      %s160 = sphi 0, %s146
      %s164 = sphi 0, %s164
      %s166 = sphi 0, %s164
      %s167 = sphi 0, %s166
      %s181 = sphi 0, %s167
      %s185 = sphi 0, %s185
      %s187 = sphi 0, %s185
      %s188 = sphi 0, %s187
      %s202 = sphi 0, %s188
      %s206 = sphi 0, %s206
      %s208 = sphi 0, %s206
      %s209 = sphi 0, %s208
      %s223 = sphi 0, %s209
      %s227 = sphi 0, %s227
      %s229 = sphi 0, %s227
      %s230 = sphi 0, %s229
      %s244 = sphi 0, %s230
      %s248 = sphi 0, %s248
      %s250 = sphi 0, %s248
      %s251 = sphi 0, %s250
      %s265 = sphi 0, %s251
      %s269 = sphi 0, %s269
      %s271 = sphi 0, %s269
      %s272 = sphi 0, %s271
      %s286 = sphi 0, %s272
      %s292 = sphi 0, %s294
      %s295 = sphi 0, %s292
      %s296 = sphi 0, %s295
      %s312 = sphi 0, %s296
    $region4: #{tpu_custom_call.1} parent=1 // loop_header_branch
      %28 = sbr.rel (%p26) target = $region8
    $region5: #{tpu_custom_call.1} parent=1 // loop_body
      %s30 = ssub.s32 %s25, 1
      %s31 = ssub.s32 %s25, 2
      %s32 = sadd.s32 %s25, 1
      %s33 = ssub.s32 %s25, %s32
      %p34 = scmp.eq.s32.totalorder %s33, 0
      %s36 = sadd.s32 %s35, 1
      %s37 = scalar_select %p34, %s35, %s36
      %p40 = pneg %p34
      %p41 = scmp.eq.s32.totalorder %s25, 1
      %p42 = por %p40, %p41
      %p43 = scmp.ne.s32.totalorder %s35, %s38
      %p44 = scmp.eq.s32.totalorder %s25, 0
      %p45 = por %p43, %p44
      %p46 = scmp.ne.s32.totalorder %s35, %s38
      %p47 = scmp.eq.s32.totalorder %s30, 1
      %p48 = por %p46, %p47
      %p49 = scmp.ne.s32.totalorder %s38, %s39
      %p50 = scmp.eq.s32.totalorder %s30, 0
      %p51 = por %p49, %p50
      %p52 = scmp.ne.s32.totalorder %s38, %s39
      %p53 = scmp.eq.s32.totalorder %s31, 1
      %p54 = por %p52, %p53
      %p56 = scmp.ne.s32.totalorder %s39, %s55
      %p57 = scmp.eq.s32.totalorder %s31, 0
      %p58 = por %p56, %p57
      %s60 = sadd.s32 %s59, 1
      %p63 = scmp.eq.s32.totalorder %s25, 1
      %p64 = scmp.ne.s32.totalorder %s59, %s61
      %p65 = scmp.eq.s32.totalorder %s25, 0
      %p66 = por %p64, %p65
      %p67 = scmp.ne.s32.totalorder %s59, %s61
      %p68 = scmp.eq.s32.totalorder %s30, 1
      %p69 = por %p67, %p68
      %p70 = scmp.ne.s32.totalorder %s61, %s62
      %p71 = scmp.eq.s32.totalorder %s30, 0
      %p72 = por %p70, %p71
      %p73 = scmp.ne.s32.totalorder %s61, %s62
      %p74 = scmp.eq.s32.totalorder %s31, 1
      %p75 = por %p73, %p74
      %p77 = scmp.ne.s32.totalorder %s62, %s76
      %p78 = scmp.eq.s32.totalorder %s31, 0
      %p79 = por %p77, %p78
      %s81 = sadd.s32 %s80, 1
      %p84 = scmp.eq.s32.totalorder %s25, 1
      %p85 = scmp.ne.s32.totalorder %s80, %s82
      %p86 = scmp.eq.s32.totalorder %s25, 0
      %p87 = por %p85, %p86
      %p88 = scmp.ne.s32.totalorder %s80, %s82
      %p89 = scmp.eq.s32.totalorder %s30, 1
      %p90 = por %p88, %p89
      %p91 = scmp.ne.s32.totalorder %s82, %s83
      %p92 = scmp.eq.s32.totalorder %s30, 0
      %p93 = por %p91, %p92
      %p94 = scmp.ne.s32.totalorder %s82, %s83
      %p95 = scmp.eq.s32.totalorder %s31, 1
      %p96 = por %p94, %p95
      %p98 = scmp.ne.s32.totalorder %s83, %s97
      %p99 = scmp.eq.s32.totalorder %s31, 0
      %p100 = por %p98, %p99
      %s102 = sadd.s32 %s101, 1
      %p105 = scmp.eq.s32.totalorder %s25, 1
      %p106 = scmp.ne.s32.totalorder %s101, %s103
      %p107 = scmp.eq.s32.totalorder %s25, 0
      %p108 = por %p106, %p107
      %p109 = scmp.ne.s32.totalorder %s101, %s103
      %p110 = scmp.eq.s32.totalorder %s30, 1
      %p111 = por %p109, %p110
      %p112 = scmp.ne.s32.totalorder %s103, %s104
      %p113 = scmp.eq.s32.totalorder %s30, 0
      %p114 = por %p112, %p113
      %p115 = scmp.ne.s32.totalorder %s103, %s104
      %p116 = scmp.eq.s32.totalorder %s31, 1
      %p117 = por %p115, %p116
      %p119 = scmp.ne.s32.totalorder %s104, %s118
      %p120 = scmp.eq.s32.totalorder %s31, 0
      %p121 = por %p119, %p120
      %s123 = sadd.s32 %s122, 1
      %p126 = scmp.eq.s32.totalorder %s25, 1
      %p127 = scmp.ne.s32.totalorder %s122, %s124
      %p128 = scmp.eq.s32.totalorder %s25, 0
      %p129 = por %p127, %p128
      %p130 = scmp.ne.s32.totalorder %s122, %s124
      %p131 = scmp.eq.s32.totalorder %s30, 1
      %p132 = por %p130, %p131
      %p133 = scmp.ne.s32.totalorder %s124, %s125
      %p134 = scmp.eq.s32.totalorder %s30, 0
      %p135 = por %p133, %p134
      %p136 = scmp.ne.s32.totalorder %s124, %s125
      %p137 = scmp.eq.s32.totalorder %s31, 1
      %p138 = por %p136, %p137
      %p140 = scmp.ne.s32.totalorder %s125, %s139
      %p141 = scmp.eq.s32.totalorder %s31, 0
      %p142 = por %p140, %p141
      %s144 = sadd.s32 %s143, 1
      %p147 = scmp.eq.s32.totalorder %s25, 1
      %p148 = scmp.ne.s32.totalorder %s143, %s145
      %p149 = scmp.eq.s32.totalorder %s25, 0
      %p150 = por %p148, %p149
      %p151 = scmp.ne.s32.totalorder %s143, %s145
      %p152 = scmp.eq.s32.totalorder %s30, 1
      %p153 = por %p151, %p152
      %p154 = scmp.ne.s32.totalorder %s145, %s146
      %p155 = scmp.eq.s32.totalorder %s30, 0
      %p156 = por %p154, %p155
      %p157 = scmp.ne.s32.totalorder %s145, %s146
      %p158 = scmp.eq.s32.totalorder %s31, 1
      %p159 = por %p157, %p158
      %p161 = scmp.ne.s32.totalorder %s146, %s160
      %p162 = scmp.eq.s32.totalorder %s31, 0
      %p163 = por %p161, %p162
      %s165 = sadd.s32 %s164, 1
      %p168 = scmp.eq.s32.totalorder %s25, 1
      %p169 = scmp.ne.s32.totalorder %s164, %s166
      %p170 = scmp.eq.s32.totalorder %s25, 0
      %p171 = por %p169, %p170
      %p172 = scmp.ne.s32.totalorder %s164, %s166
      %p173 = scmp.eq.s32.totalorder %s30, 1
      %p174 = por %p172, %p173
      %p175 = scmp.ne.s32.totalorder %s166, %s167
      %p176 = scmp.eq.s32.totalorder %s30, 0
      %p177 = por %p175, %p176
      %p178 = scmp.ne.s32.totalorder %s166, %s167
      %p179 = scmp.eq.s32.totalorder %s31, 1
      %p180 = por %p178, %p179
      %p182 = scmp.ne.s32.totalorder %s167, %s181
      %p183 = scmp.eq.s32.totalorder %s31, 0
      %p184 = por %p182, %p183
      %s186 = sadd.s32 %s185, 1
      %p189 = scmp.eq.s32.totalorder %s25, 1
      %p190 = scmp.ne.s32.totalorder %s185, %s187
      %p191 = scmp.eq.s32.totalorder %s25, 0
      %p192 = por %p190, %p191
      %p193 = scmp.ne.s32.totalorder %s185, %s187
      %p194 = scmp.eq.s32.totalorder %s30, 1
      %p195 = por %p193, %p194
      %p196 = scmp.ne.s32.totalorder %s187, %s188
      %p197 = scmp.eq.s32.totalorder %s30, 0
      %p198 = por %p196, %p197
      %p199 = scmp.ne.s32.totalorder %s187, %s188
      %p200 = scmp.eq.s32.totalorder %s31, 1
      %p201 = por %p199, %p200
      %p203 = scmp.ne.s32.totalorder %s188, %s202
      %p204 = scmp.eq.s32.totalorder %s31, 0
      %p205 = por %p203, %p204
      %s207 = sadd.s32 %s206, 1
      %p210 = scmp.eq.s32.totalorder %s25, 1
      %p211 = scmp.ne.s32.totalorder %s206, %s208
      %p212 = scmp.eq.s32.totalorder %s25, 0
      %p213 = por %p211, %p212
      %p214 = scmp.ne.s32.totalorder %s206, %s208
      %p215 = scmp.eq.s32.totalorder %s30, 1
      %p216 = por %p214, %p215
      %p217 = scmp.ne.s32.totalorder %s208, %s209
      %p218 = scmp.eq.s32.totalorder %s30, 0
      %p219 = por %p217, %p218
      %p220 = scmp.ne.s32.totalorder %s208, %s209
      %p221 = scmp.eq.s32.totalorder %s31, 1
      %p222 = por %p220, %p221
      %p224 = scmp.ne.s32.totalorder %s209, %s223
      %p225 = scmp.eq.s32.totalorder %s31, 0
      %p226 = por %p224, %p225
      %s228 = sadd.s32 %s227, 1
      %p231 = scmp.eq.s32.totalorder %s25, 1
      %p232 = scmp.ne.s32.totalorder %s227, %s229
      %p233 = scmp.eq.s32.totalorder %s25, 0
      %p234 = por %p232, %p233
      %p235 = scmp.ne.s32.totalorder %s227, %s229
      %p236 = scmp.eq.s32.totalorder %s30, 1
      %p237 = por %p235, %p236
      %p238 = scmp.ne.s32.totalorder %s229, %s230
      %p239 = scmp.eq.s32.totalorder %s30, 0
      %p240 = por %p238, %p239
      %p241 = scmp.ne.s32.totalorder %s229, %s230
      %p242 = scmp.eq.s32.totalorder %s31, 1
      %p243 = por %p241, %p242
      %p245 = scmp.ne.s32.totalorder %s230, %s244
      %p246 = scmp.eq.s32.totalorder %s31, 0
      %p247 = por %p245, %p246
      %s249 = sadd.s32 %s248, 1
      %p252 = scmp.eq.s32.totalorder %s25, 1
      %p253 = scmp.ne.s32.totalorder %s248, %s250
      %p254 = scmp.eq.s32.totalorder %s25, 0
      %p255 = por %p253, %p254
      %p256 = scmp.ne.s32.totalorder %s248, %s250
      %p257 = scmp.eq.s32.totalorder %s30, 1
      %p258 = por %p256, %p257
      %p259 = scmp.ne.s32.totalorder %s250, %s251
      %p260 = scmp.eq.s32.totalorder %s30, 0
      %p261 = por %p259, %p260
      %p262 = scmp.ne.s32.totalorder %s250, %s251
      %p263 = scmp.eq.s32.totalorder %s31, 1
      %p264 = por %p262, %p263
      %p266 = scmp.ne.s32.totalorder %s251, %s265
      %p267 = scmp.eq.s32.totalorder %s31, 0
      %p268 = por %p266, %p267
      %s270 = sadd.s32 %s269, 1
      %p273 = scmp.eq.s32.totalorder %s25, 1
      %p274 = scmp.ne.s32.totalorder %s269, %s271
      %p275 = scmp.eq.s32.totalorder %s25, 0
      %p276 = por %p274, %p275
      %p277 = scmp.ne.s32.totalorder %s269, %s271
      %p278 = scmp.eq.s32.totalorder %s30, 1
      %p279 = por %p277, %p278
      %p280 = scmp.ne.s32.totalorder %s271, %s272
      %p281 = scmp.eq.s32.totalorder %s30, 0
      %p282 = por %p280, %p281
      %p283 = scmp.ne.s32.totalorder %s271, %s272
      %p284 = scmp.eq.s32.totalorder %s31, 1
      %p285 = por %p283, %p284
      %p287 = scmp.ne.s32.totalorder %s272, %s286
      %p288 = scmp.eq.s32.totalorder %s31, 0
      %p289 = por %p287, %p288
      %s290 = ssub.s32 %s25, %s32
      %p291 = scmp.eq.s32.totalorder %s290, 0
      %s293 = sadd.s32 %s292, 1
      %s294 = scalar_select %p291, %s292, %s293
      %p297 = pneg %p291
      %p298 = scmp.eq.s32.totalorder %s25, 1
      %p299 = por %p297, %p298
      %p300 = scmp.ne.s32.totalorder %s292, %s295
      %p301 = scmp.eq.s32.totalorder %s25, 0
      %p302 = por %p300, %p301
      %p303 = scmp.ne.s32.totalorder %s292, %s295
      %p304 = scmp.eq.s32.totalorder %s30, 1
      %p305 = por %p303, %p304
      %p306 = scmp.ne.s32.totalorder %s295, %s296
      %p307 = scmp.eq.s32.totalorder %s30, 0
      %p308 = por %p306, %p307
      %p309 = scmp.ne.s32.totalorder %s295, %s296
      %p310 = scmp.eq.s32.totalorder %s31, 1
      %p311 = por %p309, %p310
      %p313 = scmp.ne.s32.totalorder %s296, %s312
      %p314 = scmp.eq.s32.totalorder %s31, 0
      %p315 = por %p313, %p314
      %p316 = scmp.le.s32.totalorder 1, %s25
      %p317 = scmp.lt.s32.totalorder %s25, 3
      %p318 = pnand %p316, %p317
      %p319 = pneg %p318
      // Predicated region
      $region9: #{tpu_custom_call.1} parent=5 // pred_check
        _
      $region10: #{tpu_custom_call.1} parent=5 // pred_check_branch
        %321 = sbr.rel (%p318) target = $region12
      $region11: #{tpu_custom_call.1} parent=5 // pred_region
        %s322 = ssub.s32 %s25, 1
        // Predicated region
        $region13: #{tpu_custom_call.1} parent=11 // pred_check
          %p323 = pneg %p72
        $region14: #{tpu_custom_call.1} parent=11 // pred_check_branch
          %325 = sbr.rel (%p323) target = $region16
        $region15: #{tpu_custom_call.1} parent=11 // pred_region
          %327 = vsyncadd [#allocation7], 0
          %s328 = sshll.u32 %s1, 4
          %s329 = int_to_ptr.hbm [resolvable:$true] %s328
          %s330 = sshll.u32 [#allocation6], 4
          %s331 = int_to_ptr.vmem [resolvable:$true] %s330
          %336 = dma.hbm_to_vmem [thread:$0]  %s329, 1024, %s331, [#allocation7], 128, 128, 8
        $region16: #{tpu_custom_call.1} parent=11 // pred_fallthru
          _
        // Predicated region
        $region17: #{tpu_custom_call.1} parent=11 // pred_check
          %p337 = pneg %p93
        $region18: #{tpu_custom_call.1} parent=11 // pred_check_branch
          %339 = sbr.rel (%p337) target = $region20
        $region19: #{tpu_custom_call.1} parent=11 // pred_region
          %341 = vsyncadd [#allocation7], 0
          %s342 = sshll.u32 %s2, 4
          %s343 = int_to_ptr.hbm [resolvable:$true] %s342
          %s344 = sshll.u32 [#allocation8], 4
          %s345 = int_to_ptr.vmem [resolvable:$true] %s344
          %350 = dma.hbm_to_vmem [thread:$0]  %s343, 1024, %s345, [#allocation7], 128, 128, 8
        $region20: #{tpu_custom_call.1} parent=11 // pred_fallthru
          _
        // Predicated region
        $region21: #{tpu_custom_call.1} parent=11 // pred_check
          %p351 = pneg %p114
        $region22: #{tpu_custom_call.1} parent=11 // pred_check_branch
          %353 = sbr.rel (%p351) target = $region24
        $region23: #{tpu_custom_call.1} parent=11 // pred_region
          %355 = vsyncadd [#allocation10], 0
          %s357 = sshll.u32 %s3, 4
          %s358 = int_to_ptr.hbm [resolvable:$true] %s357
          %s359 = sshll.u32 [#allocation9], 4
          %s360 = int_to_ptr.vmem [resolvable:$true] %s359
          %362 = dma.hbm_to_vmem [thread:$0]  %s358, 128, %s360, [#allocation10]
        $region24: #{tpu_custom_call.1} parent=11 // pred_fallthru
          _
        // Predicated region
        $region25: #{tpu_custom_call.1} parent=11 // pred_check
          %p363 = pneg %p135
        $region26: #{tpu_custom_call.1} parent=11 // pred_check_branch
          %365 = sbr.rel (%p363) target = $region28
        $region27: #{tpu_custom_call.1} parent=11 // pred_region
          %367 = vsyncadd [#allocation10], 0
          %s368 = sshll.u32 %s4, 4
          %s369 = int_to_ptr.hbm [resolvable:$true] %s368
          %s370 = sshll.u32 [#allocation11], 4
          %s371 = int_to_ptr.vmem [resolvable:$true] %s370
          %376 = dma.hbm_to_vmem [thread:$0]  %s369, 1024, %s371, [#allocation10], 64, 64, 4
        $region28: #{tpu_custom_call.1} parent=11 // pred_fallthru
          _
        // Predicated region
        $region29: #{tpu_custom_call.1} parent=11 // pred_check
          %p377 = pneg %p156
        $region30: #{tpu_custom_call.1} parent=11 // pred_check_branch
          %379 = sbr.rel (%p377) target = $region32
        $region31: #{tpu_custom_call.1} parent=11 // pred_region
          _
        $region32: #{tpu_custom_call.1} parent=11 // pred_fallthru
          _
        // Predicated region
        $region33: #{tpu_custom_call.1} parent=11 // pred_check
          %p380 = pneg %p177
        $region34: #{tpu_custom_call.1} parent=11 // pred_check_branch
          %382 = sbr.rel (%p380) target = $region36
        $region35: #{tpu_custom_call.1} parent=11 // pred_region
          %384 = vsyncadd [#allocation13], 0
          %s385 = sshll.u32 %s6, 4
          %s386 = int_to_ptr.hbm [resolvable:$true] %s385
          %s387 = sshll.u32 [#allocation12], 4
          %s388 = int_to_ptr.vmem [resolvable:$true] %s387
          %393 = dma.hbm_to_vmem [thread:$0]  %s386, 1024, %s388, [#allocation13], 64, 64, 4
        $region36: #{tpu_custom_call.1} parent=11 // pred_fallthru
          _
        // Predicated region
        $region37: #{tpu_custom_call.1} parent=11 // pred_check
          %p394 = pneg %p198
        $region38: #{tpu_custom_call.1} parent=11 // pred_check_branch
          %396 = sbr.rel (%p394) target = $region40
        $region39: #{tpu_custom_call.1} parent=11 // pred_region
          _
        $region40: #{tpu_custom_call.1} parent=11 // pred_fallthru
          _
        // Predicated region
        $region41: #{tpu_custom_call.1} parent=11 // pred_check
          %p397 = pneg %p219
        $region42: #{tpu_custom_call.1} parent=11 // pred_check_branch
          %399 = sbr.rel (%p397) target = $region44
        $region43: #{tpu_custom_call.1} parent=11 // pred_region
          %401 = vsyncadd [#allocation13], 0
          %s402 = sshll.u32 %s8, 4
          %s403 = int_to_ptr.hbm [resolvable:$true] %s402
          %s404 = sshll.u32 [#allocation14], 4
          %s405 = int_to_ptr.vmem [resolvable:$true] %s404
          %410 = dma.hbm_to_vmem [thread:$0]  %s403, 1024, %s405, [#allocation13], 64, 64, 4
        $region44: #{tpu_custom_call.1} parent=11 // pred_fallthru
          _
        // Predicated region
        $region45: #{tpu_custom_call.1} parent=11 // pred_check
          %p411 = pneg %p240
        $region46: #{tpu_custom_call.1} parent=11 // pred_check_branch
          %413 = sbr.rel (%p411) target = $region48
        $region47: #{tpu_custom_call.1} parent=11 // pred_region
          _
        $region48: #{tpu_custom_call.1} parent=11 // pred_fallthru
          _
        // Predicated region
        $region49: #{tpu_custom_call.1} parent=11 // pred_check
          %p414 = pneg %p261
        $region50: #{tpu_custom_call.1} parent=11 // pred_check_branch
          %416 = sbr.rel (%p414) target = $region52
        $region51: #{tpu_custom_call.1} parent=11 // pred_region
          %418 = vsyncadd [#allocation16], 0
          %s419 = sshll.u32 %s10, 4
          %s420 = int_to_ptr.hbm [resolvable:$true] %s419
          %s421 = sshll.u32 [#allocation15], 4
          %s422 = int_to_ptr.vmem [resolvable:$true] %s421
          %427 = dma.hbm_to_vmem [thread:$0]  %s420, 1024, %s422, [#allocation16], 64, 64, 4
        $region52: #{tpu_custom_call.1} parent=11 // pred_fallthru
          _
        // Predicated region
        $region53: #{tpu_custom_call.1} parent=11 // pred_check
          %p428 = pneg %p282
        $region54: #{tpu_custom_call.1} parent=11 // pred_check_branch
          %430 = sbr.rel (%p428) target = $region56
        $region55: #{tpu_custom_call.1} parent=11 // pred_region
          _
        $region56: #{tpu_custom_call.1} parent=11 // pred_fallthru
          _
      $region12: #{tpu_custom_call.1} parent=5 // pred_fallthru
        _
      %p431 = scmp.lt.s32.totalorder %s25, 2
      // Predicated region
      $region57: #{tpu_custom_call.1} parent=5 // pred_check
        %p432 = pneg %p431
      $region58: #{tpu_custom_call.1} parent=5 // pred_check_branch
        %434 = sbr.rel (%p432) target = $region60
      $region59: #{tpu_custom_call.1} parent=5 // pred_region
        // Predicated region
        $region61: #{tpu_custom_call.1} parent=59 // pred_check
          %p435 = pneg %p45
        $region62: #{tpu_custom_call.1} parent=59 // pred_check_branch
          %437 = sbr.rel (%p435) target = $region64
        $region63: #{tpu_custom_call.1} parent=59 // pred_region
          %s438 = sand.u32 %s35, 1
          %s439 = scalar_lea.sflag [#allocation5], %s438
          %s440 = sand.u32 %s35, 1
          %s441 = smul.addr %s440, 48
          %s442 = scalar_lea.vmem [#allocation4], %s441
          %444 = vsyncadd %s439, 0
          %s445 = smul.addr %s25, 6
          %s446 = smul.addr %s445, 8
          %s447 = scalar_lea.hbm %s0, %s446
          %s448 = sshll.u32 %s447, 4
          %s449 = int_to_ptr.hbm [resolvable:$true] %s448
          %s450 = sshll.u32 %s442, 4
          %s451 = int_to_ptr.vmem [resolvable:$true] %s450
          %456 = dma.hbm_to_vmem [thread:$0]  %s449, 768, %s451, %s439, 128, 128, 8
        $region64: #{tpu_custom_call.1} parent=59 // pred_fallthru
          _
      $region60: #{tpu_custom_call.1} parent=5 // pred_fallthru
        _
      %p457 = scmp.le.s32.totalorder 1, %s25
      %p458 = scmp.lt.s32.totalorder %s25, 3
      %p459 = pnand %p457, %p458
      %p460 = pneg %p459
      // Predicated region
      $region65: #{tpu_custom_call.1} parent=5 // pred_check
        _
      $region66: #{tpu_custom_call.1} parent=5 // pred_check_branch
        %462 = sbr.rel (%p459) target = $region68
      $region67: #{tpu_custom_call.1} parent=5 // pred_region
        %s463 = ssub.s32 %s25, 1
        %s464 = sand.u32 %s38, 1
        %s465 = scalar_lea.sflag [#allocation5], %s464
        %s466 = sand.u32 %s38, 1
        %s467 = smul.addr %s466, 48
        %s468 = scalar_lea.vmem [#allocation4], %s467
        // Predicated region
        $region69: #{tpu_custom_call.1} parent=67 // pred_check
          %p469 = pneg %p51
        $region70: #{tpu_custom_call.1} parent=67 // pred_check_branch
          %471 = sbr.rel (%p469) target = $region72
        $region71: #{tpu_custom_call.1} parent=67 // pred_region
          %473 = dma.done %s465, 768
        $region72: #{tpu_custom_call.1} parent=67 // pred_fallthru
          _
        // Predicated region
        $region73: #{tpu_custom_call.1} parent=67 // pred_check
          %p474 = pneg %p72
        $region74: #{tpu_custom_call.1} parent=67 // pred_check_branch
          %476 = sbr.rel (%p474) target = $region76
        $region75: #{tpu_custom_call.1} parent=67 // pred_region
          %478 = dma.done [#allocation7], 1024
        $region76: #{tpu_custom_call.1} parent=67 // pred_fallthru
          _
        // Predicated region
        $region77: #{tpu_custom_call.1} parent=67 // pred_check
          %p479 = pneg %p93
        $region78: #{tpu_custom_call.1} parent=67 // pred_check_branch
          %481 = sbr.rel (%p479) target = $region80
        $region79: #{tpu_custom_call.1} parent=67 // pred_region
          %483 = dma.done [#allocation7], 1024
        $region80: #{tpu_custom_call.1} parent=67 // pred_fallthru
          _
        // Predicated region
        $region81: #{tpu_custom_call.1} parent=67 // pred_check
          %p484 = pneg %p114
        $region82: #{tpu_custom_call.1} parent=67 // pred_check_branch
          %486 = sbr.rel (%p484) target = $region84
        $region83: #{tpu_custom_call.1} parent=67 // pred_region
          %488 = dma.done [#allocation10], 128
        $region84: #{tpu_custom_call.1} parent=67 // pred_fallthru
          _
        // Predicated region
        $region85: #{tpu_custom_call.1} parent=67 // pred_check
          %p489 = pneg %p135
        $region86: #{tpu_custom_call.1} parent=67 // pred_check_branch
          %491 = sbr.rel (%p489) target = $region88
        $region87: #{tpu_custom_call.1} parent=67 // pred_region
          %493 = dma.done [#allocation10], 1024
        $region88: #{tpu_custom_call.1} parent=67 // pred_fallthru
          _
        // Predicated region
        $region89: #{tpu_custom_call.1} parent=67 // pred_check
          %p494 = pneg %p177
        $region90: #{tpu_custom_call.1} parent=67 // pred_check_branch
          %496 = sbr.rel (%p494) target = $region92
        $region91: #{tpu_custom_call.1} parent=67 // pred_region
          %498 = dma.done [#allocation13], 1024
        $region92: #{tpu_custom_call.1} parent=67 // pred_fallthru
          _
        // Predicated region
        $region93: #{tpu_custom_call.1} parent=67 // pred_check
          %p499 = pneg %p219
        $region94: #{tpu_custom_call.1} parent=67 // pred_check_branch
          %501 = sbr.rel (%p499) target = $region96
        $region95: #{tpu_custom_call.1} parent=67 // pred_region
          %503 = dma.done [#allocation13], 1024
        $region96: #{tpu_custom_call.1} parent=67 // pred_fallthru
          _
        // Predicated region
        $region97: #{tpu_custom_call.1} parent=67 // pred_check
          %p504 = pneg %p261
        $region98: #{tpu_custom_call.1} parent=67 // pred_check_branch
          %506 = sbr.rel (%p504) target = $region100
        $region99: #{tpu_custom_call.1} parent=67 // pred_region
          %508 = dma.done [#allocation16], 1024
        $region100: #{tpu_custom_call.1} parent=67 // pred_fallthru
          _
        %s509 = sand.u32 %s38, 1
        %s510 = scalar_lea.sflag [#allocation5], %s509
        %s511 = sand.u32 %s38, 1
        %s512 = smul.addr %s511, 48
        %s513 = scalar_lea.vmem [#allocation4], %s512
        %p514 = pneg %p51
        %p515 = pneg %p48
        %p516 = pneg %p72
        %p517 = pneg %p69
        %p518 = pneg %p93
        %p519 = pneg %p90
        %p520 = pneg %p114
        %p521 = pneg %p111
        %p522 = pneg %p135
        %p523 = pneg %p132
        %p524 = pneg %p156
        %p525 = pneg %p153
        %p526 = pneg %p177
        %p527 = pneg %p174
        %p528 = pneg %p198
        %p529 = pneg %p195
        %p530 = pneg %p219
        %p531 = pneg %p216
        %p532 = pneg %p240
        %p533 = pneg %p237
        %p534 = pneg %p261
        %p535 = pneg %p258
        %p536 = pneg %p282
        %p537 = pneg %p279
        %p538 = pneg %p308
        %p539 = pneg %p305
        %p540 = scmp.lt.s32.totalorder %s30, 1
        %s541 = scalar_select %p540, %s30, 1
        %s542 = smul.addr %s541, 2
        %s543 = smul.addr %s542, 4
        %s544 = scalar_lea.vmem %s12, %s543
        %p545 = scmp.lt.s32.totalorder %s30, 1
        %s546 = scalar_select %p545, %s30, 1
        %s547 = smul.addr %s546, 2
        %s548 = smul.addr %s547, 4
        %s549 = scalar_lea.vmem %s12, %s548
        %vm550 = vcmask 523264
        %551 = vst.msk [vmem:[#allocation2 + $0x1b] sm:$0xff] %vm550, 0.0
        %552 = vst.msk [vmem:[#allocation2 + $0x23] sm:$0xff] %vm550, 0.0
        %553 = vst.msk [vmem:[#allocation2 + $0x2b] sm:$0xff] %vm550, 0.0
        %554 = vst.msk [vmem:[#allocation2 + $0x33] sm:$0xff] %vm550, 0.0
        %555 = vst.msk [vmem:[#allocation2 + $0x3b] sm:$0xff] %vm550, 0.0
        %556 = vst.msk [vmem:[#allocation2 + $0x43] sm:$0xff] %vm550, 0.0
        %557 = vst.msk [vmem:[#allocation2 + $0x4b] sm:$0xff] %vm550, 0.0
        %558 = vst.msk [vmem:[#allocation2 + $0x53] sm:$0xff] %vm550, 0.0
        %559 = vst.msk [vmem:[#allocation2 + $0x5b] sm:$0xff] %vm550, 0.0
        %560 = vst.msk [vmem:[#allocation2 + $0x63] sm:$0xff] %vm550, 0.0
        %561 = vst.msk [vmem:[#allocation2 + $0x6b] sm:$0xff] %vm550, 0.0
        %562 = vst.msk [vmem:[#allocation2 + $0x73] sm:$0xff] %vm550, 0.0
        %vm563 = vcmask 520192
        %564 = vst.msk [vmem:[#allocation2 + $0x7b] sm:$0x1f] %vm563, 0.0
        %v565 = vld [vmem:[%s468] sm:$0xff]
        %v566 = vld [vmem:[%s468 + $0x10] sm:$0xff]
        %v567 = vld [vmem:[%s468 + $0x20] sm:$0xff]
        %v568 = vrot.slane %v567, 4
        %vm569 = vcmask 1047556
        %v570 = vsel %vm569, %v568, %v565
        %v571 = vrot.slane %v565, 4
        %v572 = vsel %vm569, %v567, %v571
        %v574 = vunpack.c.l.s4 1983009808
        %v575 = vunpack.c.0.s8 %v574
        %v576 = vperm.slane %v570, %v575
        %v578 = vunpack.c.l.s4 1983009808
        %v579 = vunpack.c.0.s8 %v578
        %v580 = vperm.slane %v572, %v579
        %v581 = vrot.slane %v566, 4
        %v582 = vsel %vm569, 0.0, %v581
        %v584 = vunpack.c.l.s4 1983009808
        %v585 = vunpack.c.0.s8 %v584
        %v586 = vperm.slane %v566, %v585
        %v588 = vunpack.c.l.s4 1983009808
        %v589 = vunpack.c.0.s8 %v588
        %v590 = vperm.slane %v582, %v589
        %v591 = vrot.slane %v586, 4
        %v592 = vsel %vm569, %v591, %v576
        %v593 = vrot.slane %v576, 4
        %v594 = vsel %vm569, %v586, %v593
        %v596 = vunpack.c.l.s4 1934713408
        %v597 = vunpack.c.0.s8 %v596
        %v598 = vperm.slane %v592, %v597
        %v600 = vunpack.c.l.s4 1934713408
        %v601 = vunpack.c.0.s8 %v600
        %v602 = vperm.slane %v594, %v601
        %v603 = vrot.slane %v590, 4
        %v604 = vsel %vm569, %v603, %v580
        %v605 = vrot.slane %v580, 4
        %v606 = vsel %vm569, %v590, %v605
        %v608 = vunpack.c.l.s4 1934713408
        %v609 = vunpack.c.0.s8 %v608
        %v610 = vperm.slane %v604, %v609
        %v612 = vunpack.c.l.s4 1934713408
        %v613 = vunpack.c.0.s8 %v612
        %v614 = vperm.slane %v606, %v613
        %v615 = vrot.slane %v598, 4
        %v616 = vsel %vm569, 0.0, %v615
        %v617 = vrot.slane %v602, 4
        %v618 = vsel %vm569, 0.0, %v617
        %v619 = vrot.slane %v610, 4
        %v620 = vsel %vm569, 0.0, %v619
        %v621 = vrot.slane %v614, 4
        %v622 = vsel %vm569, 0.0, %v621
        %624 = vrot.lane.b32.xlu0 %v616, 8
        %v625 = vpop.permute.xlu0 %624
        %628 = vrot.lane.b32.xlu0 %v602, 16
        %v629 = vpop.permute.xlu0 %628
        %632 = vrot.lane.b32.xlu0 %v618, 24
        %v633 = vpop.permute.xlu0 %632
        %636 = vrot.lane.b32.xlu0 %v610, 32
        %v637 = vpop.permute.xlu0 %636
        %640 = vrot.lane.b32.xlu0 %v620, 40
        %v641 = vpop.permute.xlu0 %640
        %644 = vrot.lane.b32.xlu0 %v614, 48
        %v645 = vpop.permute.xlu0 %644
        %648 = vrot.lane.b32.xlu0 %v622, 56
        %v649 = vpop.permute.xlu0 %648
        %vm651 = vcmask 64512
        %v652 = vsel %vm651, %v598, %v625
        %vm653 = vcmask 130048
        %v654 = vsel %vm653, %v652, %v629
        %vm655 = vcmask 195584
        %v656 = vsel %vm655, %v654, %v633
        %vm657 = vcmask 261120
        %v658 = vsel %vm657, %v656, %v637
        %vm659 = vcmask 326656
        %v660 = vsel %vm659, %v658, %v641
        %vm661 = vcmask 392192
        %v662 = vsel %vm661, %v660, %v645
        %vm663 = vcmask 457728
        %v664 = vsel %vm663, %v662, %v649
        %vm665 = vcmask 518144
        %666 = vst.msk [vmem:[#allocation2] sm:$0x7] %vm665, %v664
        %v667 = vld [vmem:[%s468] sm:$0xff]
        %v668 = vld [vmem:[%s468 + $0x10] sm:$0xff]
        %v669 = vld [vmem:[%s468 + $0x20] sm:$0xff]
        %673 = vrot.lane.b32.xlu0 %v667, 124
        %v674 = vpop.permute.xlu0 %673
        %675 = vrot.lane.b32.xlu0 %v668, 124
        %v676 = vpop.permute.xlu0 %675
        %677 = vrot.lane.b32.xlu0 %v669, 124
        %v678 = vpop.permute.xlu0 %677
        %v682 = vrot.slane %v678, 4
        %v683 = vsel %vm569, %v682, %v674
        %v684 = vrot.slane %v674, 4
        %v685 = vsel %vm569, %v678, %v684
        %v687 = vunpack.c.l.s4 1983009808
        %v688 = vunpack.c.0.s8 %v687
        %v689 = vperm.slane %v683, %v688
        %v691 = vunpack.c.l.s4 1983009808
        %v692 = vunpack.c.0.s8 %v691
        %v693 = vperm.slane %v685, %v692
        %v694 = vrot.slane %v676, 4
        %v695 = vsel %vm569, 0.0, %v694
        %v697 = vunpack.c.l.s4 1983009808
        %v698 = vunpack.c.0.s8 %v697
        %v699 = vperm.slane %v676, %v698
        %v701 = vunpack.c.l.s4 1983009808
        %v702 = vunpack.c.0.s8 %v701
        %v703 = vperm.slane %v695, %v702
        %v704 = vrot.slane %v699, 4
        %v705 = vsel %vm569, %v704, %v689
        %v706 = vrot.slane %v689, 4
        %v707 = vsel %vm569, %v699, %v706
        %v709 = vunpack.c.l.s4 1934713408
        %v710 = vunpack.c.0.s8 %v709
        %v711 = vperm.slane %v705, %v710
        %v713 = vunpack.c.l.s4 1934713408
        %v714 = vunpack.c.0.s8 %v713
        %v715 = vperm.slane %v707, %v714
        %v716 = vrot.slane %v703, 4
        %v717 = vsel %vm569, %v716, %v693
        %v718 = vrot.slane %v693, 4
        %v719 = vsel %vm569, %v703, %v718
        %v721 = vunpack.c.l.s4 1934713408
        %v722 = vunpack.c.0.s8 %v721
        %v723 = vperm.slane %v717, %v722
        %v725 = vunpack.c.l.s4 1934713408
        %v726 = vunpack.c.0.s8 %v725
        %v727 = vperm.slane %v719, %v726
        %v728 = vrot.slane %v711, 4
        %v729 = vsel %vm569, 0.0, %v728
        %v730 = vrot.slane %v715, 4
        %v731 = vsel %vm569, 0.0, %v730
        %v732 = vrot.slane %v723, 4
        %v733 = vsel %vm569, 0.0, %v732
        %v734 = vrot.slane %v727, 4
        %v735 = vsel %vm569, 0.0, %v734
        %737 = vrot.lane.b32.xlu0 %v729, 8
        %v738 = vpop.permute.xlu0 %737
        %741 = vrot.lane.b32.xlu0 %v715, 16
        %v742 = vpop.permute.xlu0 %741
        %745 = vrot.lane.b32.xlu0 %v731, 24
        %v746 = vpop.permute.xlu0 %745
        %749 = vrot.lane.b32.xlu0 %v723, 32
        %v750 = vpop.permute.xlu0 %749
        %753 = vrot.lane.b32.xlu0 %v733, 40
        %v754 = vpop.permute.xlu0 %753
        %757 = vrot.lane.b32.xlu0 %v727, 48
        %v758 = vpop.permute.xlu0 %757
        %761 = vrot.lane.b32.xlu0 %v735, 56
        %v762 = vpop.permute.xlu0 %761
        %v764 = vsel %vm651, %v711, %v738
        %v765 = vsel %vm653, %v764, %v742
        %v766 = vsel %vm655, %v765, %v746
        %v767 = vsel %vm657, %v766, %v750
        %v768 = vsel %vm659, %v767, %v754
        %v769 = vsel %vm661, %v768, %v758
        %v770 = vsel %vm663, %v769, %v762
        %771 = vst.msk [vmem:[#allocation2 + $0x3] sm:$0x7] %vm665, %v770
        %v772 = vld [vmem:[%s468] sm:$0xff]
        %v773 = vld [vmem:[%s468 + $0x10] sm:$0xff]
        %v774 = vld [vmem:[%s468 + $0x20] sm:$0xff]
        %778 = vrot.lane.b32.xlu0 %v772, 120
        %v779 = vpop.permute.xlu0 %778
        %780 = vrot.lane.b32.xlu0 %v773, 120
        %v781 = vpop.permute.xlu0 %780
        %782 = vrot.lane.b32.xlu0 %v774, 120
        %v783 = vpop.permute.xlu0 %782
        %v787 = vrot.slane %v783, 4
        %v788 = vsel %vm569, %v787, %v779
        %v789 = vrot.slane %v779, 4
        %v790 = vsel %vm569, %v783, %v789
        %v792 = vunpack.c.l.s4 1983009808
        %v793 = vunpack.c.0.s8 %v792
        %v794 = vperm.slane %v788, %v793
        %v796 = vunpack.c.l.s4 1983009808
        %v797 = vunpack.c.0.s8 %v796
        %v798 = vperm.slane %v790, %v797
        %v799 = vrot.slane %v781, 4
        %v800 = vsel %vm569, 0.0, %v799
        %v802 = vunpack.c.l.s4 1983009808
        %v803 = vunpack.c.0.s8 %v802
        %v804 = vperm.slane %v781, %v803
        %v806 = vunpack.c.l.s4 1983009808
        %v807 = vunpack.c.0.s8 %v806
        %v808 = vperm.slane %v800, %v807
        %v809 = vrot.slane %v804, 4
        %v810 = vsel %vm569, %v809, %v794
        %v811 = vrot.slane %v794, 4
        %v812 = vsel %vm569, %v804, %v811
        %v814 = vunpack.c.l.s4 1934713408
        %v815 = vunpack.c.0.s8 %v814
        %v816 = vperm.slane %v810, %v815
        %v818 = vunpack.c.l.s4 1934713408
        %v819 = vunpack.c.0.s8 %v818
        %v820 = vperm.slane %v812, %v819
        %v821 = vrot.slane %v808, 4
        %v822 = vsel %vm569, %v821, %v798
        %v823 = vrot.slane %v798, 4
        %v824 = vsel %vm569, %v808, %v823
        %v826 = vunpack.c.l.s4 1934713408
        %v827 = vunpack.c.0.s8 %v826
        %v828 = vperm.slane %v822, %v827
        %v830 = vunpack.c.l.s4 1934713408
        %v831 = vunpack.c.0.s8 %v830
        %v832 = vperm.slane %v824, %v831
        %v833 = vrot.slane %v816, 4
        %v834 = vsel %vm569, 0.0, %v833
        %v835 = vrot.slane %v820, 4
        %v836 = vsel %vm569, 0.0, %v835
        %v837 = vrot.slane %v828, 4
        %v838 = vsel %vm569, 0.0, %v837
        %v839 = vrot.slane %v832, 4
        %v840 = vsel %vm569, 0.0, %v839
        %842 = vrot.lane.b32.xlu0 %v834, 8
        %v843 = vpop.permute.xlu0 %842
        %846 = vrot.lane.b32.xlu0 %v820, 16
        %v847 = vpop.permute.xlu0 %846
        %850 = vrot.lane.b32.xlu0 %v836, 24
        %v851 = vpop.permute.xlu0 %850
        %854 = vrot.lane.b32.xlu0 %v828, 32
        %v855 = vpop.permute.xlu0 %854
        %858 = vrot.lane.b32.xlu0 %v838, 40
        %v859 = vpop.permute.xlu0 %858
        %862 = vrot.lane.b32.xlu0 %v832, 48
        %v863 = vpop.permute.xlu0 %862
        %866 = vrot.lane.b32.xlu0 %v840, 56
        %v867 = vpop.permute.xlu0 %866
        %v869 = vsel %vm651, %v816, %v843
        %v870 = vsel %vm653, %v869, %v847
        %v871 = vsel %vm655, %v870, %v851
        %v872 = vsel %vm657, %v871, %v855
        %v873 = vsel %vm659, %v872, %v859
        %v874 = vsel %vm661, %v873, %v863
        %v875 = vsel %vm663, %v874, %v867
        %876 = vst.msk [vmem:[#allocation2 + $0x6] sm:$0x7] %vm665, %v875
        %v877 = vld [vmem:[%s468 + $0x4] sm:$0xff]
        %v878 = vld [vmem:[%s468 + $0x14] sm:$0xff]
        %v879 = vld [vmem:[%s468 + $0x24] sm:$0xff]
        %v880 = vrot.slane %v879, 4
        %v881 = vsel %vm569, %v880, %v877
        %v882 = vrot.slane %v877, 4
        %v883 = vsel %vm569, %v879, %v882
        %v885 = vunpack.c.l.s4 1983009808
        %v886 = vunpack.c.0.s8 %v885
        %v887 = vperm.slane %v881, %v886
        %v889 = vunpack.c.l.s4 1983009808
        %v890 = vunpack.c.0.s8 %v889
        %v891 = vperm.slane %v883, %v890
        %v892 = vrot.slane %v878, 4
        %v893 = vsel %vm569, 0.0, %v892
        %v895 = vunpack.c.l.s4 1983009808
        %v896 = vunpack.c.0.s8 %v895
        %v897 = vperm.slane %v878, %v896
        %v899 = vunpack.c.l.s4 1983009808
        %v900 = vunpack.c.0.s8 %v899
        %v901 = vperm.slane %v893, %v900
        %v902 = vrot.slane %v897, 4
        %v903 = vsel %vm569, %v902, %v887
        %v904 = vrot.slane %v887, 4
        %v905 = vsel %vm569, %v897, %v904
        %v907 = vunpack.c.l.s4 1934713408
        %v908 = vunpack.c.0.s8 %v907
        %v909 = vperm.slane %v903, %v908
        %v911 = vunpack.c.l.s4 1934713408
        %v912 = vunpack.c.0.s8 %v911
        %v913 = vperm.slane %v905, %v912
        %v914 = vrot.slane %v901, 4
        %v915 = vsel %vm569, %v914, %v891
        %v916 = vrot.slane %v891, 4
        %v917 = vsel %vm569, %v901, %v916
        %v919 = vunpack.c.l.s4 1934713408
        %v920 = vunpack.c.0.s8 %v919
        %v921 = vperm.slane %v915, %v920
        %v923 = vunpack.c.l.s4 1934713408
        %v924 = vunpack.c.0.s8 %v923
        %v925 = vperm.slane %v917, %v924
        %v926 = vrot.slane %v909, 4
        %v927 = vsel %vm569, 0.0, %v926
        %v928 = vrot.slane %v913, 4
        %v929 = vsel %vm569, 0.0, %v928
        %v930 = vrot.slane %v921, 4
        %v931 = vsel %vm569, 0.0, %v930
        %v932 = vrot.slane %v925, 4
        %v933 = vsel %vm569, 0.0, %v932
        %935 = vrot.lane.b32.xlu0 %v927, 8
        %v936 = vpop.permute.xlu0 %935
        %939 = vrot.lane.b32.xlu0 %v913, 16
        %v940 = vpop.permute.xlu0 %939
        %943 = vrot.lane.b32.xlu0 %v929, 24
        %v944 = vpop.permute.xlu0 %943
        %947 = vrot.lane.b32.xlu0 %v921, 32
        %v948 = vpop.permute.xlu0 %947
        %951 = vrot.lane.b32.xlu0 %v931, 40
        %v952 = vpop.permute.xlu0 %951
        %955 = vrot.lane.b32.xlu0 %v925, 48
        %v956 = vpop.permute.xlu0 %955
        %959 = vrot.lane.b32.xlu0 %v933, 56
        %v960 = vpop.permute.xlu0 %959
        %v962 = vsel %vm651, %v909, %v936
        %v963 = vsel %vm653, %v962, %v940
        %v964 = vsel %vm655, %v963, %v944
        %v965 = vsel %vm657, %v964, %v948
        %v966 = vsel %vm659, %v965, %v952
        %v967 = vsel %vm661, %v966, %v956
        %v968 = vsel %vm663, %v967, %v960
        %969 = vst.msk [vmem:[#allocation2 + $0x9] sm:$0x7] %vm665, %v968
        %v970 = vld [vmem:[%s468 + $0x4] sm:$0xff]
        %v971 = vld [vmem:[%s468 + $0x14] sm:$0xff]
        %v972 = vld [vmem:[%s468 + $0x24] sm:$0xff]
        %976 = vrot.lane.b32.xlu0 %v970, 124
        %v977 = vpop.permute.xlu0 %976
        %978 = vrot.lane.b32.xlu0 %v971, 124
        %v979 = vpop.permute.xlu0 %978
        %980 = vrot.lane.b32.xlu0 %v972, 124
        %v981 = vpop.permute.xlu0 %980
        %v985 = vrot.slane %v981, 4
        %v986 = vsel %vm569, %v985, %v977
        %v987 = vrot.slane %v977, 4
        %v988 = vsel %vm569, %v981, %v987
        %v990 = vunpack.c.l.s4 1983009808
        %v991 = vunpack.c.0.s8 %v990
        %v992 = vperm.slane %v986, %v991
        %v994 = vunpack.c.l.s4 1983009808
        %v995 = vunpack.c.0.s8 %v994
        %v996 = vperm.slane %v988, %v995
        %v997 = vrot.slane %v979, 4
        %v998 = vsel %vm569, 0.0, %v997
        %v1000 = vunpack.c.l.s4 1983009808
        %v1001 = vunpack.c.0.s8 %v1000
        %v1002 = vperm.slane %v979, %v1001
        %v1004 = vunpack.c.l.s4 1983009808
        %v1005 = vunpack.c.0.s8 %v1004
        %v1006 = vperm.slane %v998, %v1005
        %v1007 = vrot.slane %v1002, 4
        %v1008 = vsel %vm569, %v1007, %v992
        %v1009 = vrot.slane %v992, 4
        %v1010 = vsel %vm569, %v1002, %v1009
        %v1012 = vunpack.c.l.s4 1934713408
        %v1013 = vunpack.c.0.s8 %v1012
        %v1014 = vperm.slane %v1008, %v1013
        %v1016 = vunpack.c.l.s4 1934713408
        %v1017 = vunpack.c.0.s8 %v1016
        %v1018 = vperm.slane %v1010, %v1017
        %v1019 = vrot.slane %v1006, 4
        %v1020 = vsel %vm569, %v1019, %v996
        %v1021 = vrot.slane %v996, 4
        %v1022 = vsel %vm569, %v1006, %v1021
        %v1024 = vunpack.c.l.s4 1934713408
        %v1025 = vunpack.c.0.s8 %v1024
        %v1026 = vperm.slane %v1020, %v1025
        %v1028 = vunpack.c.l.s4 1934713408
        %v1029 = vunpack.c.0.s8 %v1028
        %v1030 = vperm.slane %v1022, %v1029
        %v1031 = vrot.slane %v1014, 4
        %v1032 = vsel %vm569, 0.0, %v1031
        %v1033 = vrot.slane %v1018, 4
        %v1034 = vsel %vm569, 0.0, %v1033
        %v1035 = vrot.slane %v1026, 4
        %v1036 = vsel %vm569, 0.0, %v1035
        %v1037 = vrot.slane %v1030, 4
        %v1038 = vsel %vm569, 0.0, %v1037
        %1040 = vrot.lane.b32.xlu0 %v1032, 8
        %v1041 = vpop.permute.xlu0 %1040
        %1044 = vrot.lane.b32.xlu0 %v1018, 16
        %v1045 = vpop.permute.xlu0 %1044
        %1048 = vrot.lane.b32.xlu0 %v1034, 24
        %v1049 = vpop.permute.xlu0 %1048
        %1052 = vrot.lane.b32.xlu0 %v1026, 32
        %v1053 = vpop.permute.xlu0 %1052
        %1056 = vrot.lane.b32.xlu0 %v1036, 40
        %v1057 = vpop.permute.xlu0 %1056
        %1060 = vrot.lane.b32.xlu0 %v1030, 48
        %v1061 = vpop.permute.xlu0 %1060
        %1064 = vrot.lane.b32.xlu0 %v1038, 56
        %v1065 = vpop.permute.xlu0 %1064
        %v1067 = vsel %vm651, %v1014, %v1041
        %v1068 = vsel %vm653, %v1067, %v1045
        %v1069 = vsel %vm655, %v1068, %v1049
        %v1070 = vsel %vm657, %v1069, %v1053
        %v1071 = vsel %vm659, %v1070, %v1057
        %v1072 = vsel %vm661, %v1071, %v1061
        %v1073 = vsel %vm663, %v1072, %v1065
        %1074 = vst.msk [vmem:[#allocation2 + $0xc] sm:$0x7] %vm665, %v1073
        %v1075 = vld [vmem:[%s468 + $0x4] sm:$0xff]
        %v1076 = vld [vmem:[%s468 + $0x14] sm:$0xff]
        %v1077 = vld [vmem:[%s468 + $0x24] sm:$0xff]
        %1081 = vrot.lane.b32.xlu0 %v1075, 120
        %v1082 = vpop.permute.xlu0 %1081
        %1083 = vrot.lane.b32.xlu0 %v1076, 120
        %v1084 = vpop.permute.xlu0 %1083
        %1085 = vrot.lane.b32.xlu0 %v1077, 120
        %v1086 = vpop.permute.xlu0 %1085
        %v1090 = vrot.slane %v1086, 4
        %v1091 = vsel %vm569, %v1090, %v1082
        %v1092 = vrot.slane %v1082, 4
        %v1093 = vsel %vm569, %v1086, %v1092
        %v1095 = vunpack.c.l.s4 1983009808
        %v1096 = vunpack.c.0.s8 %v1095
        %v1097 = vperm.slane %v1091, %v1096
        %v1099 = vunpack.c.l.s4 1983009808
        %v1100 = vunpack.c.0.s8 %v1099
        %v1101 = vperm.slane %v1093, %v1100
        %v1102 = vrot.slane %v1084, 4
        %v1103 = vsel %vm569, 0.0, %v1102
        %v1105 = vunpack.c.l.s4 1983009808
        %v1106 = vunpack.c.0.s8 %v1105
        %v1107 = vperm.slane %v1084, %v1106
        %v1109 = vunpack.c.l.s4 1983009808
        %v1110 = vunpack.c.0.s8 %v1109
        %v1111 = vperm.slane %v1103, %v1110
        %v1112 = vrot.slane %v1107, 4
        %v1113 = vsel %vm569, %v1112, %v1097
        %v1114 = vrot.slane %v1097, 4
        %v1115 = vsel %vm569, %v1107, %v1114
        %v1117 = vunpack.c.l.s4 1934713408
        %v1118 = vunpack.c.0.s8 %v1117
        %v1119 = vperm.slane %v1113, %v1118
        %v1121 = vunpack.c.l.s4 1934713408
        %v1122 = vunpack.c.0.s8 %v1121
        %v1123 = vperm.slane %v1115, %v1122
        %v1124 = vrot.slane %v1111, 4
        %v1125 = vsel %vm569, %v1124, %v1101
        %v1126 = vrot.slane %v1101, 4
        %v1127 = vsel %vm569, %v1111, %v1126
        %v1129 = vunpack.c.l.s4 1934713408
        %v1130 = vunpack.c.0.s8 %v1129
        %v1131 = vperm.slane %v1125, %v1130
        %v1133 = vunpack.c.l.s4 1934713408
        %v1134 = vunpack.c.0.s8 %v1133
        %v1135 = vperm.slane %v1127, %v1134
        %v1136 = vrot.slane %v1119, 4
        %v1137 = vsel %vm569, 0.0, %v1136
        %v1138 = vrot.slane %v1123, 4
        %v1139 = vsel %vm569, 0.0, %v1138
        %v1140 = vrot.slane %v1131, 4
        %v1141 = vsel %vm569, 0.0, %v1140
        %v1142 = vrot.slane %v1135, 4
        %v1143 = vsel %vm569, 0.0, %v1142
        %1145 = vrot.lane.b32.xlu0 %v1137, 8
        %v1146 = vpop.permute.xlu0 %1145
        %1149 = vrot.lane.b32.xlu0 %v1123, 16
        %v1150 = vpop.permute.xlu0 %1149
        %1153 = vrot.lane.b32.xlu0 %v1139, 24
        %v1154 = vpop.permute.xlu0 %1153
        %1157 = vrot.lane.b32.xlu0 %v1131, 32
        %v1158 = vpop.permute.xlu0 %1157
        %1161 = vrot.lane.b32.xlu0 %v1141, 40
        %v1162 = vpop.permute.xlu0 %1161
        %1165 = vrot.lane.b32.xlu0 %v1135, 48
        %v1166 = vpop.permute.xlu0 %1165
        %1169 = vrot.lane.b32.xlu0 %v1143, 56
        %v1170 = vpop.permute.xlu0 %1169
        %v1172 = vsel %vm651, %v1119, %v1146
        %v1173 = vsel %vm653, %v1172, %v1150
        %v1174 = vsel %vm655, %v1173, %v1154
        %v1175 = vsel %vm657, %v1174, %v1158
        %v1176 = vsel %vm659, %v1175, %v1162
        %v1177 = vsel %vm661, %v1176, %v1166
        %v1178 = vsel %vm663, %v1177, %v1170
        %1179 = vst.msk [vmem:[#allocation2 + $0xf] sm:$0x7] %vm665, %v1178
        %v1180 = vld [vmem:[%s468 + $0x8] sm:$0xff]
        %v1181 = vld [vmem:[%s468 + $0x18] sm:$0xff]
        %v1182 = vld [vmem:[%s468 + $0x28] sm:$0xff]
        %v1183 = vrot.slane %v1182, 4
        %v1184 = vsel %vm569, %v1183, %v1180
        %v1185 = vrot.slane %v1180, 4
        %v1186 = vsel %vm569, %v1182, %v1185
        %v1188 = vunpack.c.l.s4 1983009808
        %v1189 = vunpack.c.0.s8 %v1188
        %v1190 = vperm.slane %v1184, %v1189
        %v1192 = vunpack.c.l.s4 1983009808
        %v1193 = vunpack.c.0.s8 %v1192
        %v1194 = vperm.slane %v1186, %v1193
        %v1195 = vrot.slane %v1181, 4
        %v1196 = vsel %vm569, 0.0, %v1195
        %v1198 = vunpack.c.l.s4 1983009808
        %v1199 = vunpack.c.0.s8 %v1198
        %v1200 = vperm.slane %v1181, %v1199
        %v1202 = vunpack.c.l.s4 1983009808
        %v1203 = vunpack.c.0.s8 %v1202
        %v1204 = vperm.slane %v1196, %v1203
        %v1205 = vrot.slane %v1200, 4
        %v1206 = vsel %vm569, %v1205, %v1190
        %v1207 = vrot.slane %v1190, 4
        %v1208 = vsel %vm569, %v1200, %v1207
        %v1210 = vunpack.c.l.s4 1934713408
        %v1211 = vunpack.c.0.s8 %v1210
        %v1212 = vperm.slane %v1206, %v1211
        %v1214 = vunpack.c.l.s4 1934713408
        %v1215 = vunpack.c.0.s8 %v1214
        %v1216 = vperm.slane %v1208, %v1215
        %v1217 = vrot.slane %v1204, 4
        %v1218 = vsel %vm569, %v1217, %v1194
        %v1219 = vrot.slane %v1194, 4
        %v1220 = vsel %vm569, %v1204, %v1219
        %v1222 = vunpack.c.l.s4 1934713408
        %v1223 = vunpack.c.0.s8 %v1222
        %v1224 = vperm.slane %v1218, %v1223
        %v1226 = vunpack.c.l.s4 1934713408
        %v1227 = vunpack.c.0.s8 %v1226
        %v1228 = vperm.slane %v1220, %v1227
        %v1229 = vrot.slane %v1212, 4
        %v1230 = vsel %vm569, 0.0, %v1229
        %v1231 = vrot.slane %v1216, 4
        %v1232 = vsel %vm569, 0.0, %v1231
        %v1233 = vrot.slane %v1224, 4
        %v1234 = vsel %vm569, 0.0, %v1233
        %v1235 = vrot.slane %v1228, 4
        %v1236 = vsel %vm569, 0.0, %v1235
        %1238 = vrot.lane.b32.xlu0 %v1230, 8
        %v1239 = vpop.permute.xlu0 %1238
        %1242 = vrot.lane.b32.xlu0 %v1216, 16
        %v1243 = vpop.permute.xlu0 %1242
        %1246 = vrot.lane.b32.xlu0 %v1232, 24
        %v1247 = vpop.permute.xlu0 %1246
        %1250 = vrot.lane.b32.xlu0 %v1224, 32
        %v1251 = vpop.permute.xlu0 %1250
        %1254 = vrot.lane.b32.xlu0 %v1234, 40
        %v1255 = vpop.permute.xlu0 %1254
        %1258 = vrot.lane.b32.xlu0 %v1228, 48
        %v1259 = vpop.permute.xlu0 %1258
        %1262 = vrot.lane.b32.xlu0 %v1236, 56
        %v1263 = vpop.permute.xlu0 %1262
        %v1265 = vsel %vm651, %v1212, %v1239
        %v1266 = vsel %vm653, %v1265, %v1243
        %v1267 = vsel %vm655, %v1266, %v1247
        %v1268 = vsel %vm657, %v1267, %v1251
        %v1269 = vsel %vm659, %v1268, %v1255
        %v1270 = vsel %vm661, %v1269, %v1259
        %v1271 = vsel %vm663, %v1270, %v1263
        %1272 = vst.msk [vmem:[#allocation2 + $0x12] sm:$0x7] %vm665, %v1271
        %v1273 = vld [vmem:[%s468 + $0x8] sm:$0xff]
        %v1274 = vld [vmem:[%s468 + $0x18] sm:$0xff]
        %v1275 = vld [vmem:[%s468 + $0x28] sm:$0xff]
        %1279 = vrot.lane.b32.xlu0 %v1273, 124
        %v1280 = vpop.permute.xlu0 %1279
        %1281 = vrot.lane.b32.xlu0 %v1274, 124
        %v1282 = vpop.permute.xlu0 %1281
        %1283 = vrot.lane.b32.xlu0 %v1275, 124
        %v1284 = vpop.permute.xlu0 %1283
        %v1288 = vrot.slane %v1284, 4
        %v1289 = vsel %vm569, %v1288, %v1280
        %v1290 = vrot.slane %v1280, 4
        %v1291 = vsel %vm569, %v1284, %v1290
        %v1293 = vunpack.c.l.s4 1983009808
        %v1294 = vunpack.c.0.s8 %v1293
        %v1295 = vperm.slane %v1289, %v1294
        %v1297 = vunpack.c.l.s4 1983009808
        %v1298 = vunpack.c.0.s8 %v1297
        %v1299 = vperm.slane %v1291, %v1298
        %v1300 = vrot.slane %v1282, 4
        %v1301 = vsel %vm569, 0.0, %v1300
        %v1303 = vunpack.c.l.s4 1983009808
        %v1304 = vunpack.c.0.s8 %v1303
        %v1305 = vperm.slane %v1282, %v1304
        %v1307 = vunpack.c.l.s4 1983009808
        %v1308 = vunpack.c.0.s8 %v1307
        %v1309 = vperm.slane %v1301, %v1308
        %v1310 = vrot.slane %v1305, 4
        %v1311 = vsel %vm569, %v1310, %v1295
        %v1312 = vrot.slane %v1295, 4
        %v1313 = vsel %vm569, %v1305, %v1312
        %v1315 = vunpack.c.l.s4 1934713408
        %v1316 = vunpack.c.0.s8 %v1315
        %v1317 = vperm.slane %v1311, %v1316
        %v1319 = vunpack.c.l.s4 1934713408
        %v1320 = vunpack.c.0.s8 %v1319
        %v1321 = vperm.slane %v1313, %v1320
        %v1322 = vrot.slane %v1309, 4
        %v1323 = vsel %vm569, %v1322, %v1299
        %v1324 = vrot.slane %v1299, 4
        %v1325 = vsel %vm569, %v1309, %v1324
        %v1327 = vunpack.c.l.s4 1934713408
        %v1328 = vunpack.c.0.s8 %v1327
        %v1329 = vperm.slane %v1323, %v1328
        %v1331 = vunpack.c.l.s4 1934713408
        %v1332 = vunpack.c.0.s8 %v1331
        %v1333 = vperm.slane %v1325, %v1332
        %v1334 = vrot.slane %v1317, 4
        %v1335 = vsel %vm569, 0.0, %v1334
        %v1336 = vrot.slane %v1321, 4
        %v1337 = vsel %vm569, 0.0, %v1336
        %v1338 = vrot.slane %v1329, 4
        %v1339 = vsel %vm569, 0.0, %v1338
        %v1340 = vrot.slane %v1333, 4
        %v1341 = vsel %vm569, 0.0, %v1340
        %1343 = vrot.lane.b32.xlu0 %v1335, 8
        %v1344 = vpop.permute.xlu0 %1343
        %1347 = vrot.lane.b32.xlu0 %v1321, 16
        %v1348 = vpop.permute.xlu0 %1347
        %1351 = vrot.lane.b32.xlu0 %v1337, 24
        %v1352 = vpop.permute.xlu0 %1351
        %1355 = vrot.lane.b32.xlu0 %v1329, 32
        %v1356 = vpop.permute.xlu0 %1355
        %1359 = vrot.lane.b32.xlu0 %v1339, 40
        %v1360 = vpop.permute.xlu0 %1359
        %1363 = vrot.lane.b32.xlu0 %v1333, 48
        %v1364 = vpop.permute.xlu0 %1363
        %1367 = vrot.lane.b32.xlu0 %v1341, 56
        %v1368 = vpop.permute.xlu0 %1367
        %v1370 = vsel %vm651, %v1317, %v1344
        %v1371 = vsel %vm653, %v1370, %v1348
        %v1372 = vsel %vm655, %v1371, %v1352
        %v1373 = vsel %vm657, %v1372, %v1356
        %v1374 = vsel %vm659, %v1373, %v1360
        %v1375 = vsel %vm661, %v1374, %v1364
        %v1376 = vsel %vm663, %v1375, %v1368
        %1377 = vst.msk [vmem:[#allocation2 + $0x15] sm:$0x7] %vm665, %v1376
        %v1378 = vld [vmem:[%s468 + $0x8] sm:$0xff]
        %v1379 = vld [vmem:[%s468 + $0x18] sm:$0xff]
        %v1380 = vld [vmem:[%s468 + $0x28] sm:$0xff]
        %1384 = vrot.lane.b32.xlu0 %v1378, 120
        %v1385 = vpop.permute.xlu0 %1384
        %1386 = vrot.lane.b32.xlu0 %v1379, 120
        %v1387 = vpop.permute.xlu0 %1386
        %1388 = vrot.lane.b32.xlu0 %v1380, 120
        %v1389 = vpop.permute.xlu0 %1388
        %v1393 = vrot.slane %v1389, 4
        %v1394 = vsel %vm569, %v1393, %v1385
        %v1395 = vrot.slane %v1385, 4
        %v1396 = vsel %vm569, %v1389, %v1395
        %v1398 = vunpack.c.l.s4 1983009808
        %v1399 = vunpack.c.0.s8 %v1398
        %v1400 = vperm.slane %v1394, %v1399
        %v1402 = vunpack.c.l.s4 1983009808
        %v1403 = vunpack.c.0.s8 %v1402
        %v1404 = vperm.slane %v1396, %v1403
        %v1405 = vrot.slane %v1387, 4
        %v1406 = vsel %vm569, 0.0, %v1405
        %v1408 = vunpack.c.l.s4 1983009808
        %v1409 = vunpack.c.0.s8 %v1408
        %v1410 = vperm.slane %v1387, %v1409
        %v1412 = vunpack.c.l.s4 1983009808
        %v1413 = vunpack.c.0.s8 %v1412
        %v1414 = vperm.slane %v1406, %v1413
        %v1415 = vrot.slane %v1410, 4
        %v1416 = vsel %vm569, %v1415, %v1400
        %v1417 = vrot.slane %v1400, 4
        %v1418 = vsel %vm569, %v1410, %v1417
        %v1420 = vunpack.c.l.s4 1934713408
        %v1421 = vunpack.c.0.s8 %v1420
        %v1422 = vperm.slane %v1416, %v1421
        %v1424 = vunpack.c.l.s4 1934713408
        %v1425 = vunpack.c.0.s8 %v1424
        %v1426 = vperm.slane %v1418, %v1425
        %v1427 = vrot.slane %v1414, 4
        %v1428 = vsel %vm569, %v1427, %v1404
        %v1429 = vrot.slane %v1404, 4
        %v1430 = vsel %vm569, %v1414, %v1429
        %v1432 = vunpack.c.l.s4 1934713408
        %v1433 = vunpack.c.0.s8 %v1432
        %v1434 = vperm.slane %v1428, %v1433
        %v1436 = vunpack.c.l.s4 1934713408
        %v1437 = vunpack.c.0.s8 %v1436
        %v1438 = vperm.slane %v1430, %v1437
        %v1439 = vrot.slane %v1422, 4
        %v1440 = vsel %vm569, 0.0, %v1439
        %v1441 = vrot.slane %v1426, 4
        %v1442 = vsel %vm569, 0.0, %v1441
        %v1443 = vrot.slane %v1434, 4
        %v1444 = vsel %vm569, 0.0, %v1443
        %v1445 = vrot.slane %v1438, 4
        %v1446 = vsel %vm569, 0.0, %v1445
        %1448 = vrot.lane.b32.xlu0 %v1440, 8
        %v1449 = vpop.permute.xlu0 %1448
        %1452 = vrot.lane.b32.xlu0 %v1426, 16
        %v1453 = vpop.permute.xlu0 %1452
        %1456 = vrot.lane.b32.xlu0 %v1442, 24
        %v1457 = vpop.permute.xlu0 %1456
        %1460 = vrot.lane.b32.xlu0 %v1434, 32
        %v1461 = vpop.permute.xlu0 %1460
        %1464 = vrot.lane.b32.xlu0 %v1444, 40
        %v1465 = vpop.permute.xlu0 %1464
        %1468 = vrot.lane.b32.xlu0 %v1438, 48
        %v1469 = vpop.permute.xlu0 %1468
        %1472 = vrot.lane.b32.xlu0 %v1446, 56
        %v1473 = vpop.permute.xlu0 %1472
        %v1475 = vsel %vm651, %v1422, %v1449
        %v1476 = vsel %vm653, %v1475, %v1453
        %v1477 = vsel %vm655, %v1476, %v1457
        %v1478 = vsel %vm657, %v1477, %v1461
        %v1479 = vsel %vm659, %v1478, %v1465
        %v1480 = vsel %vm661, %v1479, %v1469
        %v1481 = vsel %vm663, %v1480, %v1473
        %1482 = vst.msk [vmem:[#allocation2 + $0x18] sm:$0x7] %vm665, %v1481
        %v1483 = vld [vmem:[#allocation6] sm:$0xff]
        %v1484 = vld [vmem:[#allocation6 + $0x8] sm:$0xff]
        %v1485 = vld [vmem:[#allocation6 + $0x10] sm:$0xff]
        %v1486 = vld [vmem:[#allocation6 + $0x18] sm:$0xff]
        %v1487 = vld [vmem:[#allocation6 + $0x20] sm:$0xff]
        %v1488 = vld [vmem:[#allocation6 + $0x28] sm:$0xff]
        %v1489 = vld [vmem:[#allocation6 + $0x30] sm:$0xff]
        %v1490 = vld [vmem:[#allocation6 + $0x38] sm:$0xff]
        %v1491 = vld [vmem:[#allocation2] sm:$0xff]
        %v1492 = vld [vmem:[#allocation2 + $0x8] sm:$0xff]
        %v1493 = vld [vmem:[#allocation2 + $0x10] sm:$0xff]
        %v1494 = vld [vmem:[#allocation2 + $0x18] sm:$0xff]
        %v1495 = vld [vmem:[#allocation2 + $0x20] sm:$0xff]
        %v1496 = vld [vmem:[#allocation2 + $0x28] sm:$0xff]
        %v1497 = vld [vmem:[#allocation2 + $0x30] sm:$0xff]
        %v1498 = vld [vmem:[#allocation2 + $0x38] sm:$0xff]
        %v1499 = vld [vmem:[#allocation2 + $0x40] sm:$0xff]
        %v1500 = vld [vmem:[#allocation2 + $0x48] sm:$0xff]
        %v1501 = vld [vmem:[#allocation2 + $0x50] sm:$0xff]
        %v1502 = vld [vmem:[#allocation2 + $0x58] sm:$0xff]
        %v1503 = vld [vmem:[#allocation2 + $0x60] sm:$0xff]
        %v1504 = vld [vmem:[#allocation2 + $0x68] sm:$0xff]
        %v1505 = vld [vmem:[#allocation2 + $0x70] sm:$0xff]
        %v1506 = vld [vmem:[#allocation2 + $0x78] sm:$0xff]
        %v1508 = vsel %vm550, %v1483, 0
        %v1511 = vsel %vm550, %v1484, 0
        %v1514 = vsel %vm550, %v1485, 0
        %v1517 = vsel %vm550, %v1486, 0
        %v1520 = vsel %vm550, %v1487, 0
        %v1523 = vsel %vm550, %v1488, 0
        %v1526 = vsel %vm550, %v1489, 0
        %v1529 = vsel %vm550, %v1490, 0
        %v1532 = vsel %vm550, %v1491, 0
        %v1535 = vsel %vm550, %v1492, 0
        %v1538 = vsel %vm550, %v1493, 0
        %v1541 = vsel %vm550, %v1494, 0
        %v1544 = vsel %vm550, %v1495, 0
        %v1547 = vsel %vm550, %v1496, 0
        %v1550 = vsel %vm550, %v1497, 0
        %v1553 = vsel %vm550, %v1498, 0
        %v1556 = vsel %vm550, %v1499, 0
        %v1559 = vsel %vm550, %v1500, 0
        %v1562 = vsel %vm550, %v1501, 0
        %v1565 = vsel %vm550, %v1502, 0
        %v1568 = vsel %vm550, %v1503, 0
        %v1571 = vsel %vm550, %v1504, 0
        %v1574 = vsel %vm550, %v1505, 0
        %v1577 = vsel %vm550, %v1506, 0
        %1579 = vmatpush.xpose.msra.mxu0 %v1577
        %1580 = vmatpush.xpose.msra.mxu0 %v1574
        %1581 = vmatpush.xpose.msra.mxu0 %v1571
        %1582 = vmatpush.xpose.msra.mxu0 %v1568
        %1583 = vmatpush.xpose.msra.mxu0 %v1565
        %1584 = vmatpush.xpose.msra.mxu0 %v1562
        %1585 = vmatpush.xpose.msra.mxu0 %v1559
        %1586 = vmatpush.xpose.msra.mxu0 %v1556
        %1587 = vmatpush.xpose.msra.mxu0 %v1553
        %1588 = vmatpush.xpose.msra.mxu0 %v1550
        %1589 = vmatpush.xpose.msra.mxu0 %v1547
        %1590 = vmatpush.xpose.msra.mxu0 %v1544
        %1591 = vmatpush.xpose.msra.mxu0 %v1541
        %1592 = vmatpush.xpose.msra.mxu0 %v1538
        %1593 = vmatpush.xpose.msra.mxu0 %v1535
        %1594 = vmatpush.xpose.msra.mxu0 %v1532
        %1595 = vmatmul.f32.gmra.mxu0 %v1508
        %v1596 = vpop.f32.mrf.mxu0
        %v1597 = vadd.f32 0.0, %v1596
        %1598 = vmatmul.f32.gmra.mxu0 %v1511
        %v1599 = vpop.f32.mrf.mxu0
        %v1600 = vadd.f32 0.0, %v1599
        %1601 = vmatmul.f32.gmra.mxu0 %v1514
        %v1602 = vpop.f32.mrf.mxu0
        %v1603 = vadd.f32 0.0, %v1602
        %1604 = vmatmul.f32.gmra.mxu0 %v1517
        %v1605 = vpop.f32.mrf.mxu0
        %v1606 = vadd.f32 0.0, %v1605
        %1607 = vmatmul.f32.gmra.mxu0 %v1520
        %v1608 = vpop.f32.mrf.mxu0
        %v1609 = vadd.f32 0.0, %v1608
        %1610 = vmatmul.f32.gmra.mxu0 %v1523
        %v1611 = vpop.f32.mrf.mxu0
        %v1612 = vadd.f32 0.0, %v1611
        %1613 = vmatmul.f32.gmra.mxu0 %v1526
        %v1614 = vpop.f32.mrf.mxu0
        %v1615 = vadd.f32 0.0, %v1614
        %1616 = vmatmul.f32.gmra.mxu0 %v1529
        %v1617 = vpop.f32.mrf.mxu0
        %v1618 = vadd.f32 0.0, %v1617
        %1619 = vdwg.mxu0
        %v1620 = vpack.c.bf16 %v1600, %v1597
        %v1621 = vpack.c.bf16 %v1606, %v1603
        %v1622 = vpack.c.bf16 %v1612, %v1609
        %v1623 = vpack.c.bf16 %v1618, %v1615
        %v1624 = vld [vmem:[#allocation11] sm:$0xf]
        %v1625 = vld [vmem:[#allocation11 + $0x4] sm:$0xf]
        %v1626 = vld [vmem:[#allocation11 + $0x8] sm:$0xf]
        %v1627 = vld [vmem:[#allocation11 + $0xc] sm:$0xf]
        %v1628 = vld [vmem:[#allocation11 + $0x10] sm:$0xf]
        %v1629 = vld [vmem:[#allocation11 + $0x14] sm:$0xf]
        %v1630 = vld [vmem:[#allocation11 + $0x18] sm:$0xf]
        %v1631 = vld [vmem:[#allocation11 + $0x1c] sm:$0xf]
        %v1632 = vld [vmem:[#allocation11 + $0x20] sm:$0xf]
        %v1633 = vld [vmem:[#allocation11 + $0x24] sm:$0xf]
        %v1634 = vld [vmem:[#allocation11 + $0x28] sm:$0xf]
        %v1635 = vld [vmem:[#allocation11 + $0x2c] sm:$0xf]
        %v1636 = vld [vmem:[#allocation11 + $0x30] sm:$0xf]
        %v1637 = vld [vmem:[#allocation11 + $0x34] sm:$0xf]
        %v1638 = vld [vmem:[#allocation11 + $0x38] sm:$0xf]
        %v1639 = vld [vmem:[#allocation11 + $0x3c] sm:$0xf]
        %v1640 = vld [vmem:[%s5] sm:$0x1]
        %v1642 = vperm.slane %v1640, 0
        %v1660 = vunpack.c.l.b16 %v1624
        %v1661 = vunpack.c.l.b16 %v1625
        %v1662 = vunpack.c.l.b16 %v1626
        %v1663 = vunpack.c.l.b16 %v1627
        %v1664 = vunpack.c.l.b16 %v1628
        %v1665 = vunpack.c.l.b16 %v1629
        %v1666 = vunpack.c.l.b16 %v1630
        %v1667 = vunpack.c.l.b16 %v1631
        %v1668 = vunpack.c.l.b16 %v1632
        %v1669 = vunpack.c.l.b16 %v1633
        %v1670 = vunpack.c.l.b16 %v1634
        %v1671 = vunpack.c.l.b16 %v1635
        %v1672 = vunpack.c.l.b16 %v1636
        %v1673 = vunpack.c.l.b16 %v1637
        %v1674 = vunpack.c.l.b16 %v1638
        %v1675 = vunpack.c.l.b16 %v1639
        %v1676 = vpack.c.b16 %v1661, %v1660
        %v1677 = vpack.c.b16 %v1663, %v1662
        %v1678 = vpack.c.b16 %v1665, %v1664
        %v1679 = vpack.c.b16 %v1667, %v1666
        %v1680 = vpack.c.b16 %v1669, %v1668
        %v1681 = vpack.c.b16 %v1671, %v1670
        %v1682 = vpack.c.b16 %v1673, %v1672
        %v1683 = vpack.c.b16 %v1675, %v1674
        %1692 = vmatpush.bf16.msra.mxu0 %v1683
        %1693 = vmatpush.bf16.msra.mxu0 %v1682
        %1694 = vmatpush.bf16.msra.mxu0 %v1681
        %1695 = vmatpush.bf16.msra.mxu0 %v1680
        %1696 = vmatpush.bf16.msra.mxu0 %v1679
        %1697 = vmatpush.bf16.msra.mxu0 %v1678
        %1698 = vmatpush.bf16.msra.mxu0 %v1677
        %1699 = vmatpush.bf16.msra.mxu0 %v1676
        %1700 = vmatmul.bf16.gmra.mxu0 %v1620
        %v1701 = vpop.f32.mrf.mxu0
        %v1702 = vadd.f32 %v1642, %v1701
        %v1703 = vpop.f32.mrf.mxu0
        %v1704 = vadd.f32 %v1642, %v1703
        %1705 = vmatmul.bf16.gmra.mxu0 %v1621
        %v1706 = vpop.f32.mrf.mxu0
        %v1707 = vadd.f32 %v1642, %v1706
        %v1708 = vpop.f32.mrf.mxu0
        %v1709 = vadd.f32 %v1642, %v1708
        %1710 = vmatmul.bf16.gmra.mxu0 %v1622
        %v1711 = vpop.f32.mrf.mxu0
        %v1712 = vadd.f32 %v1642, %v1711
        %v1713 = vpop.f32.mrf.mxu0
        %v1714 = vadd.f32 %v1642, %v1713
        %1715 = vmatmul.bf16.gmra.mxu0 %v1623
        %v1716 = vpop.f32.mrf.mxu0
        %v1717 = vadd.f32 %v1642, %v1716
        %v1718 = vpop.f32.mrf.mxu0
        %v1719 = vadd.f32 %v1642, %v1718
        %1720 = vdwg.mxu0
        %v1721 = vmax.f32 %v1702, 0.0
        %v1722 = vmax.f32 %v1704, 0.0
        %v1723 = vmax.f32 %v1707, 0.0
        %v1724 = vmax.f32 %v1709, 0.0
        %v1725 = vmax.f32 %v1712, 0.0
        %v1726 = vmax.f32 %v1714, 0.0
        %v1727 = vmax.f32 %v1717, 0.0
        %v1728 = vmax.f32 %v1719, 0.0
        %v1729 = vpack.c.bf16 %v1722, %v1721
        %v1730 = vpack.c.bf16 %v1724, %v1723
        %v1731 = vpack.c.bf16 %v1726, %v1725
        %v1732 = vpack.c.bf16 %v1728, %v1727
        %v1733 = vld [vmem:[#allocation12] sm:$0xf]
        %v1734 = vld [vmem:[#allocation12 + $0x4] sm:$0xf]
        %v1735 = vld [vmem:[#allocation12 + $0x8] sm:$0xf]
        %v1736 = vld [vmem:[#allocation12 + $0xc] sm:$0xf]
        %v1737 = vld [vmem:[#allocation12 + $0x10] sm:$0xf]
        %v1738 = vld [vmem:[#allocation12 + $0x14] sm:$0xf]
        %v1739 = vld [vmem:[#allocation12 + $0x18] sm:$0xf]
        %v1740 = vld [vmem:[#allocation12 + $0x1c] sm:$0xf]
        %v1741 = vld [vmem:[#allocation12 + $0x20] sm:$0xf]
        %v1742 = vld [vmem:[#allocation12 + $0x24] sm:$0xf]
        %v1743 = vld [vmem:[#allocation12 + $0x28] sm:$0xf]
        %v1744 = vld [vmem:[#allocation12 + $0x2c] sm:$0xf]
        %v1745 = vld [vmem:[#allocation12 + $0x30] sm:$0xf]
        %v1746 = vld [vmem:[#allocation12 + $0x34] sm:$0xf]
        %v1747 = vld [vmem:[#allocation12 + $0x38] sm:$0xf]
        %v1748 = vld [vmem:[#allocation12 + $0x3c] sm:$0xf]
        %v1749 = vld [vmem:[%s7] sm:$0x1]
        %v1751 = vperm.slane %v1749, 0
        %v1769 = vunpack.c.l.b16 %v1733
        %v1770 = vunpack.c.l.b16 %v1734
        %v1771 = vunpack.c.l.b16 %v1735
        %v1772 = vunpack.c.l.b16 %v1736
        %v1773 = vunpack.c.l.b16 %v1737
        %v1774 = vunpack.c.l.b16 %v1738
        %v1775 = vunpack.c.l.b16 %v1739
        %v1776 = vunpack.c.l.b16 %v1740
        %v1777 = vunpack.c.l.b16 %v1741
        %v1778 = vunpack.c.l.b16 %v1742
        %v1779 = vunpack.c.l.b16 %v1743
        %v1780 = vunpack.c.l.b16 %v1744
        %v1781 = vunpack.c.l.b16 %v1745
        %v1782 = vunpack.c.l.b16 %v1746
        %v1783 = vunpack.c.l.b16 %v1747
        %v1784 = vunpack.c.l.b16 %v1748
        %v1785 = vpack.c.b16 %v1770, %v1769
        %v1786 = vpack.c.b16 %v1772, %v1771
        %v1787 = vpack.c.b16 %v1774, %v1773
        %v1788 = vpack.c.b16 %v1776, %v1775
        %v1789 = vpack.c.b16 %v1778, %v1777
        %v1790 = vpack.c.b16 %v1780, %v1779
        %v1791 = vpack.c.b16 %v1782, %v1781
        %v1792 = vpack.c.b16 %v1784, %v1783
        %1801 = vmatpush.bf16.msra.mxu0 %v1792
        %1802 = vmatpush.bf16.msra.mxu0 %v1791
        %1803 = vmatpush.bf16.msra.mxu0 %v1790
        %1804 = vmatpush.bf16.msra.mxu0 %v1789
        %1805 = vmatpush.bf16.msra.mxu0 %v1788
        %1806 = vmatpush.bf16.msra.mxu0 %v1787
        %1807 = vmatpush.bf16.msra.mxu0 %v1786
        %1808 = vmatpush.bf16.msra.mxu0 %v1785
        %1809 = vmatmul.bf16.gmra.mxu0 %v1729
        %v1810 = vpop.f32.mrf.mxu0
        %v1811 = vadd.f32 %v1751, %v1810
        %v1812 = vpop.f32.mrf.mxu0
        %v1813 = vadd.f32 %v1751, %v1812
        %1814 = vmatmul.bf16.gmra.mxu0 %v1730
        %v1815 = vpop.f32.mrf.mxu0
        %v1816 = vadd.f32 %v1751, %v1815
        %v1817 = vpop.f32.mrf.mxu0
        %v1818 = vadd.f32 %v1751, %v1817
        %1819 = vmatmul.bf16.gmra.mxu0 %v1731
        %v1820 = vpop.f32.mrf.mxu0
        %v1821 = vadd.f32 %v1751, %v1820
        %v1822 = vpop.f32.mrf.mxu0
        %v1823 = vadd.f32 %v1751, %v1822
        %1824 = vmatmul.bf16.gmra.mxu0 %v1732
        %v1825 = vpop.f32.mrf.mxu0
        %v1826 = vadd.f32 %v1751, %v1825
        %v1827 = vpop.f32.mrf.mxu0
        %v1828 = vadd.f32 %v1751, %v1827
        %1829 = vdwg.mxu0
        %v1830 = vmax.f32 %v1811, 0.0
        %v1831 = vmax.f32 %v1813, 0.0
        %v1832 = vmax.f32 %v1816, 0.0
        %v1833 = vmax.f32 %v1818, 0.0
        %v1834 = vmax.f32 %v1821, 0.0
        %v1835 = vmax.f32 %v1823, 0.0
        %v1836 = vmax.f32 %v1826, 0.0
        %v1837 = vmax.f32 %v1828, 0.0
        %v1838 = vpack.c.bf16 %v1831, %v1830
        %v1839 = vpack.c.bf16 %v1833, %v1832
        %v1840 = vpack.c.bf16 %v1835, %v1834
        %v1841 = vpack.c.bf16 %v1837, %v1836
        %v1842 = vld [vmem:[#allocation14] sm:$0xf]
        %v1843 = vld [vmem:[#allocation14 + $0x4] sm:$0xf]
        %v1844 = vld [vmem:[#allocation14 + $0x8] sm:$0xf]
        %v1845 = vld [vmem:[#allocation14 + $0xc] sm:$0xf]
        %v1846 = vld [vmem:[#allocation14 + $0x10] sm:$0xf]
        %v1847 = vld [vmem:[#allocation14 + $0x14] sm:$0xf]
        %v1848 = vld [vmem:[#allocation14 + $0x18] sm:$0xf]
        %v1849 = vld [vmem:[#allocation14 + $0x1c] sm:$0xf]
        %v1850 = vld [vmem:[#allocation14 + $0x20] sm:$0xf]
        %v1851 = vld [vmem:[#allocation14 + $0x24] sm:$0xf]
        %v1852 = vld [vmem:[#allocation14 + $0x28] sm:$0xf]
        %v1853 = vld [vmem:[#allocation14 + $0x2c] sm:$0xf]
        %v1854 = vld [vmem:[#allocation14 + $0x30] sm:$0xf]
        %v1855 = vld [vmem:[#allocation14 + $0x34] sm:$0xf]
        %v1856 = vld [vmem:[#allocation14 + $0x38] sm:$0xf]
        %v1857 = vld [vmem:[#allocation14 + $0x3c] sm:$0xf]
        %v1858 = vld [vmem:[%s9] sm:$0x1]
        %v1860 = vperm.slane %v1858, 0
        %v1878 = vunpack.c.l.b16 %v1842
        %v1879 = vunpack.c.l.b16 %v1843
        %v1880 = vunpack.c.l.b16 %v1844
        %v1881 = vunpack.c.l.b16 %v1845
        %v1882 = vunpack.c.l.b16 %v1846
        %v1883 = vunpack.c.l.b16 %v1847
        %v1884 = vunpack.c.l.b16 %v1848
        %v1885 = vunpack.c.l.b16 %v1849
        %v1886 = vunpack.c.l.b16 %v1850
        %v1887 = vunpack.c.l.b16 %v1851
        %v1888 = vunpack.c.l.b16 %v1852
        %v1889 = vunpack.c.l.b16 %v1853
        %v1890 = vunpack.c.l.b16 %v1854
        %v1891 = vunpack.c.l.b16 %v1855
        %v1892 = vunpack.c.l.b16 %v1856
        %v1893 = vunpack.c.l.b16 %v1857
        %v1894 = vpack.c.b16 %v1879, %v1878
        %v1895 = vpack.c.b16 %v1881, %v1880
        %v1896 = vpack.c.b16 %v1883, %v1882
        %v1897 = vpack.c.b16 %v1885, %v1884
        %v1898 = vpack.c.b16 %v1887, %v1886
        %v1899 = vpack.c.b16 %v1889, %v1888
        %v1900 = vpack.c.b16 %v1891, %v1890
        %v1901 = vpack.c.b16 %v1893, %v1892
        %1910 = vmatpush.bf16.msra.mxu0 %v1901
        %1911 = vmatpush.bf16.msra.mxu0 %v1900
        %1912 = vmatpush.bf16.msra.mxu0 %v1899
        %1913 = vmatpush.bf16.msra.mxu0 %v1898
        %1914 = vmatpush.bf16.msra.mxu0 %v1897
        %1915 = vmatpush.bf16.msra.mxu0 %v1896
        %1916 = vmatpush.bf16.msra.mxu0 %v1895
        %1917 = vmatpush.bf16.msra.mxu0 %v1894
        %1918 = vmatmul.bf16.gmra.mxu0 %v1838
        %v1919 = vpop.f32.mrf.mxu0
        %v1920 = vadd.f32 %v1860, %v1919
        %v1921 = vpop.f32.mrf.mxu0
        %v1922 = vadd.f32 %v1860, %v1921
        %1923 = vmatmul.bf16.gmra.mxu0 %v1839
        %v1924 = vpop.f32.mrf.mxu0
        %v1925 = vadd.f32 %v1860, %v1924
        %v1926 = vpop.f32.mrf.mxu0
        %v1927 = vadd.f32 %v1860, %v1926
        %1928 = vmatmul.bf16.gmra.mxu0 %v1840
        %v1929 = vpop.f32.mrf.mxu0
        %v1930 = vadd.f32 %v1860, %v1929
        %v1931 = vpop.f32.mrf.mxu0
        %v1932 = vadd.f32 %v1860, %v1931
        %1933 = vmatmul.bf16.gmra.mxu0 %v1841
        %v1934 = vpop.f32.mrf.mxu0
        %v1935 = vadd.f32 %v1860, %v1934
        %v1936 = vpop.f32.mrf.mxu0
        %v1937 = vadd.f32 %v1860, %v1936
        %1938 = vdwg.mxu0
        %v1939 = vmax.f32 %v1920, 0.0
        %v1940 = vmax.f32 %v1922, 0.0
        %v1941 = vmax.f32 %v1925, 0.0
        %v1942 = vmax.f32 %v1927, 0.0
        %v1943 = vmax.f32 %v1930, 0.0
        %v1944 = vmax.f32 %v1932, 0.0
        %v1945 = vmax.f32 %v1935, 0.0
        %v1946 = vmax.f32 %v1937, 0.0
        %v1947 = vpack.c.bf16 %v1940, %v1939
        %v1948 = vpack.c.bf16 %v1942, %v1941
        %v1949 = vpack.c.bf16 %v1944, %v1943
        %v1950 = vpack.c.bf16 %v1946, %v1945
        %v1951 = vld [vmem:[#allocation15] sm:$0xf]
        %v1952 = vld [vmem:[#allocation15 + $0x4] sm:$0xf]
        %v1953 = vld [vmem:[#allocation15 + $0x8] sm:$0xf]
        %v1954 = vld [vmem:[#allocation15 + $0xc] sm:$0xf]
        %v1955 = vld [vmem:[#allocation15 + $0x10] sm:$0xf]
        %v1956 = vld [vmem:[#allocation15 + $0x14] sm:$0xf]
        %v1957 = vld [vmem:[#allocation15 + $0x18] sm:$0xf]
        %v1958 = vld [vmem:[#allocation15 + $0x1c] sm:$0xf]
        %v1959 = vld [vmem:[#allocation15 + $0x20] sm:$0xf]
        %v1960 = vld [vmem:[#allocation15 + $0x24] sm:$0xf]
        %v1961 = vld [vmem:[#allocation15 + $0x28] sm:$0xf]
        %v1962 = vld [vmem:[#allocation15 + $0x2c] sm:$0xf]
        %v1963 = vld [vmem:[#allocation15 + $0x30] sm:$0xf]
        %v1964 = vld [vmem:[#allocation15 + $0x34] sm:$0xf]
        %v1965 = vld [vmem:[#allocation15 + $0x38] sm:$0xf]
        %v1966 = vld [vmem:[#allocation15 + $0x3c] sm:$0xf]
        %v1967 = vld [vmem:[%s11] sm:$0x1]
        %v1969 = vperm.slane %v1967, 0
        %v1987 = vunpack.c.l.b16 %v1951
        %v1988 = vunpack.c.l.b16 %v1952
        %v1989 = vunpack.c.l.b16 %v1953
        %v1990 = vunpack.c.l.b16 %v1954
        %v1991 = vunpack.c.l.b16 %v1955
        %v1992 = vunpack.c.l.b16 %v1956
        %v1993 = vunpack.c.l.b16 %v1957
        %v1994 = vunpack.c.l.b16 %v1958
        %v1995 = vunpack.c.l.b16 %v1959
        %v1996 = vunpack.c.l.b16 %v1960
        %v1997 = vunpack.c.l.b16 %v1961
        %v1998 = vunpack.c.l.b16 %v1962
        %v1999 = vunpack.c.l.b16 %v1963
        %v2000 = vunpack.c.l.b16 %v1964
        %v2001 = vunpack.c.l.b16 %v1965
        %v2002 = vunpack.c.l.b16 %v1966
        %v2003 = vpack.c.b16 %v1988, %v1987
        %v2004 = vpack.c.b16 %v1990, %v1989
        %v2005 = vpack.c.b16 %v1992, %v1991
        %v2006 = vpack.c.b16 %v1994, %v1993
        %v2007 = vpack.c.b16 %v1996, %v1995
        %v2008 = vpack.c.b16 %v1998, %v1997
        %v2009 = vpack.c.b16 %v2000, %v1999
        %v2010 = vpack.c.b16 %v2002, %v2001
        %2019 = vmatpush.bf16.msra.mxu0 %v2010
        %2020 = vmatpush.bf16.msra.mxu0 %v2009
        %2021 = vmatpush.bf16.msra.mxu0 %v2008
        %2022 = vmatpush.bf16.msra.mxu0 %v2007
        %2023 = vmatpush.bf16.msra.mxu0 %v2006
        %2024 = vmatpush.bf16.msra.mxu0 %v2005
        %2025 = vmatpush.bf16.msra.mxu0 %v2004
        %2026 = vmatpush.bf16.msra.mxu0 %v2003
        %2027 = vmatmul.bf16.gmra.mxu0 %v1947
        %v2028 = vpop.f32.mrf.mxu0
        %v2029 = vadd.f32 %v1969, %v2028
        %v2030 = vpop.f32.mrf.mxu0
        %v2031 = vadd.f32 %v1969, %v2030
        %2032 = vmatmul.bf16.gmra.mxu0 %v1948
        %v2033 = vpop.f32.mrf.mxu0
        %v2034 = vadd.f32 %v1969, %v2033
        %v2035 = vpop.f32.mrf.mxu0
        %v2036 = vadd.f32 %v1969, %v2035
        %2037 = vmatmul.bf16.gmra.mxu0 %v1949
        %v2038 = vpop.f32.mrf.mxu0
        %v2039 = vadd.f32 %v1969, %v2038
        %v2040 = vpop.f32.mrf.mxu0
        %v2041 = vadd.f32 %v1969, %v2040
        %2042 = vmatmul.bf16.gmra.mxu0 %v1950
        %v2043 = vpop.f32.mrf.mxu0
        %v2044 = vadd.f32 %v1969, %v2043
        %v2045 = vpop.f32.mrf.mxu0
        %v2046 = vadd.f32 %v1969, %v2045
        %2047 = vdwg.mxu0
        %v2048 = vxor.u32 %v2029, 2147483648
        %v2049 = vxor.u32 %v2031, 2147483648
        %v2050 = vxor.u32 %v2034, 2147483648
        %v2051 = vxor.u32 %v2036, 2147483648
        %v2052 = vxor.u32 %v2039, 2147483648
        %v2053 = vxor.u32 %v2041, 2147483648
        %v2054 = vxor.u32 %v2044, 2147483648
        %v2055 = vxor.u32 %v2046, 2147483648
        %v2056 = vmul.f32 %v2048, 1.442695
        %v2057 = vpow.pop %v2056
        %v2058 = vmul.f32 %v2049, 1.442695
        %v2059 = vpow.pop %v2058
        %v2060 = vmul.f32 %v2050, 1.442695
        %v2061 = vpow.pop %v2060
        %v2062 = vmul.f32 %v2051, 1.442695
        %v2063 = vpow.pop %v2062
        %v2064 = vmul.f32 %v2052, 1.442695
        %v2065 = vpow.pop %v2064
        %v2066 = vmul.f32 %v2053, 1.442695
        %v2067 = vpow.pop %v2066
        %v2068 = vmul.f32 %v2054, 1.442695
        %v2069 = vpow.pop %v2068
        %v2070 = vmul.f32 %v2055, 1.442695
        %v2071 = vpow.pop %v2070
        %v2072 = vadd.f32 %v2057, 1.0
        %v2073 = vadd.f32 %v2059, 1.0
        %v2074 = vadd.f32 %v2061, 1.0
        %v2075 = vadd.f32 %v2063, 1.0
        %v2076 = vadd.f32 %v2065, 1.0
        %v2077 = vadd.f32 %v2067, 1.0
        %v2078 = vadd.f32 %v2069, 1.0
        %v2079 = vadd.f32 %v2071, 1.0
        %v2080 = vrcp.pop %v2072
        %v2081 = vmul.f32 %v2072, %v2080
        %v2082 = vsub.f32 1.0, %v2081
        %v2083 = vmul.f32 %v2080, %v2082
        %v2084 = vadd.f32 %v2080, %v2083
        %vm2085 = vweird.f32 %v2072
        %vm2086 = vweird.f32 %v2080
        %vm2087 = vmor %vm2085, %vm2086
        %v2088 = vsel %vm2087, %v2080, %v2084
        %v2089 = vand.u32 2147483647, %v2072
        %vm2090 = vcmp.eq.f32.partialorder %v2089, 8.507059e+37
        %v2091 = vand.u32 %v2072, 2147483648
        %v2092 = vor.u32 1.1754944e-38, %v2091
        %v2093 = vsel %vm2090, %v2092, %v2088
        %v2094 = vmul.f32 1.0, %v2093
        %v2095 = vrcp.pop %v2073
        %v2096 = vmul.f32 %v2073, %v2095
        %v2097 = vsub.f32 1.0, %v2096
        %v2098 = vmul.f32 %v2095, %v2097
        %v2099 = vadd.f32 %v2095, %v2098
        %vm2100 = vweird.f32 %v2073
        %vm2101 = vweird.f32 %v2095
        %vm2102 = vmor %vm2100, %vm2101
        %v2103 = vsel %vm2102, %v2095, %v2099
        %v2104 = vand.u32 2147483647, %v2073
        %vm2105 = vcmp.eq.f32.partialorder %v2104, 8.507059e+37
        %v2106 = vand.u32 %v2073, 2147483648
        %v2107 = vor.u32 1.1754944e-38, %v2106
        %v2108 = vsel %vm2105, %v2107, %v2103
        %v2109 = vmul.f32 1.0, %v2108
        %v2110 = vrcp.pop %v2074
        %v2111 = vmul.f32 %v2074, %v2110
        %v2112 = vsub.f32 1.0, %v2111
        %v2113 = vmul.f32 %v2110, %v2112
        %v2114 = vadd.f32 %v2110, %v2113
        %vm2115 = vweird.f32 %v2074
        %vm2116 = vweird.f32 %v2110
        %vm2117 = vmor %vm2115, %vm2116
        %v2118 = vsel %vm2117, %v2110, %v2114
        %v2119 = vand.u32 2147483647, %v2074
        %vm2120 = vcmp.eq.f32.partialorder %v2119, 8.507059e+37
        %v2121 = vand.u32 %v2074, 2147483648
        %v2122 = vor.u32 1.1754944e-38, %v2121
        %v2123 = vsel %vm2120, %v2122, %v2118
        %v2124 = vmul.f32 1.0, %v2123
        %v2125 = vrcp.pop %v2075
        %v2126 = vmul.f32 %v2075, %v2125
        %v2127 = vsub.f32 1.0, %v2126
        %v2128 = vmul.f32 %v2125, %v2127
        %v2129 = vadd.f32 %v2125, %v2128
        %vm2130 = vweird.f32 %v2075
        %vm2131 = vweird.f32 %v2125
        %vm2132 = vmor %vm2130, %vm2131
        %v2133 = vsel %vm2132, %v2125, %v2129
        %v2134 = vand.u32 2147483647, %v2075
        %vm2135 = vcmp.eq.f32.partialorder %v2134, 8.507059e+37
        %v2136 = vand.u32 %v2075, 2147483648
        %v2137 = vor.u32 1.1754944e-38, %v2136
        %v2138 = vsel %vm2135, %v2137, %v2133
        %v2139 = vmul.f32 1.0, %v2138
        %v2140 = vrcp.pop %v2076
        %v2141 = vmul.f32 %v2076, %v2140
        %v2142 = vsub.f32 1.0, %v2141
        %v2143 = vmul.f32 %v2140, %v2142
        %v2144 = vadd.f32 %v2140, %v2143
        %vm2145 = vweird.f32 %v2076
        %vm2146 = vweird.f32 %v2140
        %vm2147 = vmor %vm2145, %vm2146
        %v2148 = vsel %vm2147, %v2140, %v2144
        %v2149 = vand.u32 2147483647, %v2076
        %vm2150 = vcmp.eq.f32.partialorder %v2149, 8.507059e+37
        %v2151 = vand.u32 %v2076, 2147483648
        %v2152 = vor.u32 1.1754944e-38, %v2151
        %v2153 = vsel %vm2150, %v2152, %v2148
        %v2154 = vmul.f32 1.0, %v2153
        %v2155 = vrcp.pop %v2077
        %v2156 = vmul.f32 %v2077, %v2155
        %v2157 = vsub.f32 1.0, %v2156
        %v2158 = vmul.f32 %v2155, %v2157
        %v2159 = vadd.f32 %v2155, %v2158
        %vm2160 = vweird.f32 %v2077
        %vm2161 = vweird.f32 %v2155
        %vm2162 = vmor %vm2160, %vm2161
        %v2163 = vsel %vm2162, %v2155, %v2159
        %v2164 = vand.u32 2147483647, %v2077
        %vm2165 = vcmp.eq.f32.partialorder %v2164, 8.507059e+37
        %v2166 = vand.u32 %v2077, 2147483648
        %v2167 = vor.u32 1.1754944e-38, %v2166
        %v2168 = vsel %vm2165, %v2167, %v2163
        %v2169 = vmul.f32 1.0, %v2168
        %v2170 = vrcp.pop %v2078
        %v2171 = vmul.f32 %v2078, %v2170
        %v2172 = vsub.f32 1.0, %v2171
        %v2173 = vmul.f32 %v2170, %v2172
        %v2174 = vadd.f32 %v2170, %v2173
        %vm2175 = vweird.f32 %v2078
        %vm2176 = vweird.f32 %v2170
        %vm2177 = vmor %vm2175, %vm2176
        %v2178 = vsel %vm2177, %v2170, %v2174
        %v2179 = vand.u32 2147483647, %v2078
        %vm2180 = vcmp.eq.f32.partialorder %v2179, 8.507059e+37
        %v2181 = vand.u32 %v2078, 2147483648
        %v2182 = vor.u32 1.1754944e-38, %v2181
        %v2183 = vsel %vm2180, %v2182, %v2178
        %v2184 = vmul.f32 1.0, %v2183
        %v2185 = vrcp.pop %v2079
        %v2186 = vmul.f32 %v2079, %v2185
        %v2187 = vsub.f32 1.0, %v2186
        %v2188 = vmul.f32 %v2185, %v2187
        %v2189 = vadd.f32 %v2185, %v2188
        %vm2190 = vweird.f32 %v2079
        %vm2191 = vweird.f32 %v2185
        %vm2192 = vmor %vm2190, %vm2191
        %v2193 = vsel %vm2192, %v2185, %v2189
        %v2194 = vand.u32 2147483647, %v2079
        %vm2195 = vcmp.eq.f32.partialorder %v2194, 8.507059e+37
        %v2196 = vand.u32 %v2079, 2147483648
        %v2197 = vor.u32 1.1754944e-38, %v2196
        %v2198 = vsel %vm2195, %v2197, %v2193
        %v2199 = vmul.f32 1.0, %v2198
        %v2200 = vld [vmem:[#allocation8] sm:$0xff]
        %v2201 = vld [vmem:[#allocation8 + $0x8] sm:$0xff]
        %v2202 = vld [vmem:[#allocation8 + $0x10] sm:$0xff]
        %v2203 = vld [vmem:[#allocation8 + $0x18] sm:$0xff]
        %v2204 = vld [vmem:[#allocation8 + $0x20] sm:$0xff]
        %v2205 = vld [vmem:[#allocation8 + $0x28] sm:$0xff]
        %v2206 = vld [vmem:[#allocation8 + $0x30] sm:$0xff]
        %v2207 = vld [vmem:[#allocation8 + $0x38] sm:$0xff]
        %v2208 = vmul.f32 %v2094, %v1597
        %v2209 = vmul.f32 %v2109, %v1600
        %v2210 = vmul.f32 %v2124, %v1603
        %v2211 = vmul.f32 %v2139, %v1606
        %v2212 = vmul.f32 %v2154, %v1609
        %v2213 = vmul.f32 %v2169, %v1612
        %v2214 = vmul.f32 %v2184, %v1615
        %v2215 = vmul.f32 %v2199, %v1618
        %v2217 = vsel %vm550, %v2200, 0
        %v2220 = vsel %vm550, %v2201, 0
        %v2223 = vsel %vm550, %v2202, 0
        %v2226 = vsel %vm550, %v2203, 0
        %v2229 = vsel %vm550, %v2204, 0
        %v2232 = vsel %vm550, %v2205, 0
        %v2235 = vsel %vm550, %v2206, 0
        %v2238 = vsel %vm550, %v2207, 0
        %2240 = vmatpush.msra.mxu0 0.0
        %2241 = vmatpush.msra.mxu0 0.0
        %2242 = vmatpush.msra.mxu0 0.0
        %2243 = vmatpush.msra.mxu0 0.0
        %2244 = vmatpush.msra.mxu0 0.0
        %2245 = vmatpush.msra.mxu0 0.0
        %2246 = vmatpush.msra.mxu0 0.0
        %2247 = vmatpush.msra.mxu0 0.0
        %2248 = vmatpush.msra.mxu0 %v2215
        %2249 = vmatpush.msra.mxu0 %v2214
        %2250 = vmatpush.msra.mxu0 %v2213
        %2251 = vmatpush.msra.mxu0 %v2212
        %2252 = vmatpush.msra.mxu0 %v2211
        %2253 = vmatpush.msra.mxu0 %v2210
        %2254 = vmatpush.msra.mxu0 %v2209
        %2255 = vmatpush.msra.mxu0 %v2208
        %2256 = vmatmul.f32.gmra.mxu0 %v2217
        %v2257 = vpop.f32.mrf.mxu0
        %v2258 = vadd.f32 0.0, %v2257
        %2259 = vmatmul.f32.gmra.mxu0 %v2220
        %v2260 = vpop.f32.mrf.mxu0
        %v2261 = vadd.f32 0.0, %v2260
        %2262 = vmatmul.f32.gmra.mxu0 %v2223
        %v2263 = vpop.f32.mrf.mxu0
        %v2264 = vadd.f32 0.0, %v2263
        %2265 = vmatmul.f32.gmra.mxu0 %v2226
        %v2266 = vpop.f32.mrf.mxu0
        %v2267 = vadd.f32 0.0, %v2266
        %2268 = vmatmul.f32.gmra.mxu0 %v2229
        %v2269 = vpop.f32.mrf.mxu0
        %v2270 = vadd.f32 0.0, %v2269
        %2271 = vmatmul.f32.gmra.mxu0 %v2232
        %v2272 = vpop.f32.mrf.mxu0
        %v2273 = vadd.f32 0.0, %v2272
        %2274 = vmatmul.f32.gmra.mxu0 %v2235
        %v2275 = vpop.f32.mrf.mxu0
        %v2276 = vadd.f32 0.0, %v2275
        %2277 = vmatmul.f32.gmra.mxu0 %v2238
        %v2278 = vpop.f32.mrf.mxu0
        %v2279 = vadd.f32 0.0, %v2278
        %2280 = vdwg.mxu0
        %2281 = vxpose.xlu0.b32.start [1/16] %v2258, 128
        %2282 = vxpose.xlu0.b32.cont [2/16] %v2261, 128
        %2283 = vxpose.xlu0.b32.cont [3/16] %v2264, 128
        %2284 = vxpose.xlu0.b32.cont [4/16] %v2267, 128
        %2285 = vxpose.xlu0.b32.cont [5/16] %v2270, 128
        %2286 = vxpose.xlu0.b32.cont [6/16] %v2273, 128
        %2287 = vxpose.xlu0.b32.cont [7/16] %v2276, 128
        %2288 = vxpose.xlu0.b32.cont [8/16] %v2279, 128
        %2289 = vxpose.xlu0.b32.cont [9/16] 0.0, 128
        %2290 = vxpose.xlu0.b32.cont [10/16] 0.0, 128
        %2291 = vxpose.xlu0.b32.cont [11/16] 0.0, 128
        %2292 = vxpose.xlu0.b32.cont [12/16] 0.0, 128
        %2293 = vxpose.xlu0.b32.cont [13/16] 0.0, 128
        %2294 = vxpose.xlu0.b32.cont [14/16] 0.0, 128
        %2295 = vxpose.xlu0.b32.cont [15/16] 0.0, 128
        %2296 = vxpose.xlu0.b32.end [16/16] 0.0, 128
        %v2297 = vpop.trf.xlu0
        %v2298 = vpop.trf.xlu0
        %v2299 = vpop.trf.xlu0
        %v2300 = vpop.trf.xlu0
        %v2301 = vpop.trf.xlu0
        %v2302 = vpop.trf.xlu0
        %v2303 = vpop.trf.xlu0
        %v2304 = vpop.trf.xlu0
        %v2305 = vpop.trf.xlu0
        %v2306 = vpop.trf.xlu0
        %v2307 = vpop.trf.xlu0
        %v2308 = vpop.trf.xlu0
        %v2309 = vpop.trf.xlu0
        %v2310 = vpop.trf.xlu0
        %v2311 = vpop.trf.xlu0
        %v2312 = vpop.trf.xlu0
        %2313 = vst.msk [vmem:[#allocation3] sm:$0xff] %vm653, 0.0
        %2314 = vst.msk [vmem:[#allocation3 + $0x8] sm:$0xff] %vm653, 0.0
        %2315 = vst.msk [vmem:[#allocation3 + $0x10] sm:$0xff] %vm653, 0.0
        %2316 = vst.msk [vmem:[#allocation3 + $0x18] sm:$0xff] %vm653, 0.0
        %2317 = vst.msk [vmem:[#allocation3 + $0x20] sm:$0xff] %vm653, 0.0
        %2318 = vst.msk [vmem:[#allocation3 + $0x28] sm:$0xff] %vm653, 0.0
        %v2319 = vld [vmem:[#allocation3] sm:$0xff]
        %v2320 = vld [vmem:[#allocation3 + $0x10] sm:$0xff]
        %v2321 = vld [vmem:[#allocation3 + $0x20] sm:$0xff]
        %2323 = vrot.lane.b32.xlu0 %v2297, 120
        %v2324 = vpop.permute.xlu0 %2323
        %2326 = vrot.lane.b32.xlu0 %v2297, 112
        %v2327 = vpop.permute.xlu0 %2326
        %2329 = vrot.lane.b32.xlu0 %v2297, 104
        %v2330 = vpop.permute.xlu0 %2329
        %2332 = vrot.lane.b32.xlu0 %v2297, 96
        %v2333 = vpop.permute.xlu0 %2332
        %2335 = vrot.lane.b32.xlu0 %v2297, 88
        %v2336 = vpop.permute.xlu0 %2335
        %2338 = vrot.lane.b32.xlu0 %v2297, 80
        %v2339 = vpop.permute.xlu0 %2338
        %2341 = vrot.lane.b32.xlu0 %v2297, 72
        %v2342 = vpop.permute.xlu0 %2341
        %v2344 = vrot.slane %v2327, 4
        %v2345 = vsel %vm569, %v2344, %v2297
        %v2347 = vunpack.c.l.s4 1983009808
        %v2348 = vunpack.c.0.s8 %v2347
        %v2349 = vperm.slane %v2345, %v2348
        %v2350 = vrot.slane %v2330, 4
        %v2351 = vsel %vm569, %v2350, %v2324
        %v2353 = vunpack.c.l.s4 1983009808
        %v2354 = vunpack.c.0.s8 %v2353
        %v2355 = vperm.slane %v2351, %v2354
        %v2356 = vrot.slane %v2339, 4
        %v2357 = vsel %vm569, %v2356, %v2333
        %v2359 = vunpack.c.l.s4 1983009808
        %v2360 = vunpack.c.0.s8 %v2359
        %v2361 = vperm.slane %v2357, %v2360
        %v2362 = vrot.slane %v2342, 4
        %v2363 = vsel %vm569, %v2362, %v2336
        %v2365 = vunpack.c.l.s4 1983009808
        %v2366 = vunpack.c.0.s8 %v2365
        %v2367 = vperm.slane %v2363, %v2366
        %v2368 = vrot.slane %v2355, 4
        %v2369 = vsel %vm569, %v2368, %v2349
        %v2370 = vrot.slane %v2349, 4
        %v2371 = vsel %vm569, %v2355, %v2370
        %v2373 = vunpack.c.l.s4 1934713408
        %v2374 = vunpack.c.0.s8 %v2373
        %v2375 = vperm.slane %v2369, %v2374
        %v2377 = vunpack.c.l.s4 1934713408
        %v2378 = vunpack.c.0.s8 %v2377
        %v2379 = vperm.slane %v2371, %v2378
        %v2380 = vrot.slane %v2367, 4
        %v2381 = vsel %vm569, %v2380, %v2361
        %v2382 = vrot.slane %v2361, 4
        %v2383 = vsel %vm569, %v2367, %v2382
        %v2385 = vunpack.c.l.s4 1934713408
        %v2386 = vunpack.c.0.s8 %v2385
        %v2387 = vperm.slane %v2381, %v2386
        %v2389 = vunpack.c.l.s4 1934713408
        %v2390 = vunpack.c.0.s8 %v2389
        %v2391 = vperm.slane %v2383, %v2390
        %v2392 = vrot.slane %v2387, 4
        %v2393 = vsel %vm569, %v2392, %v2375
        %v2394 = vrot.slane %v2375, 4
        %v2395 = vsel %vm569, %v2387, %v2394
        %v2396 = vrot.slane %v2391, 4
        %v2397 = vsel %vm569, %v2396, %v2379
        %v2398 = vadd.f32 %v2319, %v2393
        %v2399 = vadd.f32 %v2320, %v2395
        %v2400 = vadd.f32 %v2321, %v2397
        %2401 = vst.msk [vmem:[#allocation3] sm:$0xff] %vm651, %v2398
        %2402 = vst.msk [vmem:[#allocation3 + $0x10] sm:$0xff] %vm651, %v2399
        %2403 = vst.msk [vmem:[#allocation3 + $0x20] sm:$0xff] %vm651, %v2400
        %v2404 = vld [vmem:[#allocation3] sm:$0xff]
        %v2405 = vld [vmem:[#allocation3 + $0x10] sm:$0xff]
        %v2406 = vld [vmem:[#allocation3 + $0x20] sm:$0xff]
        %v2407 = vrot.slane %v2297, 3
        %v2408 = vrot.slane %v2324, 3
        %v2409 = vrot.slane %v2327, 3
        %v2410 = vrot.slane %v2330, 3
        %v2411 = vrot.slane %v2333, 3
        %v2412 = vrot.slane %v2336, 3
        %v2413 = vrot.slane %v2339, 3
        %v2414 = vrot.slane %v2342, 3
        %v2423 = vrot.slane %v2409, 4
        %v2424 = vsel %vm569, %v2423, %v2407
        %v2426 = vunpack.c.l.s4 1983009808
        %v2427 = vunpack.c.0.s8 %v2426
        %v2428 = vperm.slane %v2424, %v2427
        %v2429 = vrot.slane %v2410, 4
        %v2430 = vsel %vm569, %v2429, %v2408
        %v2432 = vunpack.c.l.s4 1983009808
        %v2433 = vunpack.c.0.s8 %v2432
        %v2434 = vperm.slane %v2430, %v2433
        %v2435 = vrot.slane %v2413, 4
        %v2436 = vsel %vm569, %v2435, %v2411
        %v2438 = vunpack.c.l.s4 1983009808
        %v2439 = vunpack.c.0.s8 %v2438
        %v2440 = vperm.slane %v2436, %v2439
        %v2441 = vrot.slane %v2414, 4
        %v2442 = vsel %vm569, %v2441, %v2412
        %v2444 = vunpack.c.l.s4 1983009808
        %v2445 = vunpack.c.0.s8 %v2444
        %v2446 = vperm.slane %v2442, %v2445
        %v2447 = vrot.slane %v2434, 4
        %v2448 = vsel %vm569, %v2447, %v2428
        %v2449 = vrot.slane %v2428, 4
        %v2450 = vsel %vm569, %v2434, %v2449
        %v2452 = vunpack.c.l.s4 1934713408
        %v2453 = vunpack.c.0.s8 %v2452
        %v2454 = vperm.slane %v2448, %v2453
        %v2456 = vunpack.c.l.s4 1934713408
        %v2457 = vunpack.c.0.s8 %v2456
        %v2458 = vperm.slane %v2450, %v2457
        %v2459 = vrot.slane %v2446, 4
        %v2460 = vsel %vm569, %v2459, %v2440
        %v2461 = vrot.slane %v2440, 4
        %v2462 = vsel %vm569, %v2446, %v2461
        %v2464 = vunpack.c.l.s4 1934713408
        %v2465 = vunpack.c.0.s8 %v2464
        %v2466 = vperm.slane %v2460, %v2465
        %v2468 = vunpack.c.l.s4 1934713408
        %v2469 = vunpack.c.0.s8 %v2468
        %v2470 = vperm.slane %v2462, %v2469
        %v2471 = vrot.slane %v2466, 4
        %v2472 = vsel %vm569, %v2471, %v2454
        %v2473 = vrot.slane %v2454, 4
        %v2474 = vsel %vm569, %v2466, %v2473
        %v2475 = vrot.slane %v2470, 4
        %v2476 = vsel %vm569, %v2475, %v2458
        %2480 = vrot.lane.b32.xlu0 %v2472, 4
        %v2481 = vpop.permute.xlu0 %2480
        %2482 = vrot.lane.b32.xlu0 %v2474, 4
        %v2483 = vpop.permute.xlu0 %2482
        %2484 = vrot.lane.b32.xlu0 %v2476, 4
        %v2485 = vpop.permute.xlu0 %2484
        %v2489 = vadd.f32 %v2404, %v2481
        %v2490 = vadd.f32 %v2405, %v2483
        %v2491 = vadd.f32 %v2406, %v2485
        %vm2492 = vcmask 97312
        %2493 = vst.msk [vmem:[#allocation3] sm:$0xff] %vm2492, %v2489
        %2494 = vst.msk [vmem:[#allocation3 + $0x10] sm:$0xff] %vm2492, %v2490
        %2495 = vst.msk [vmem:[#allocation3 + $0x20] sm:$0xff] %vm2492, %v2491
        %v2496 = vld [vmem:[#allocation3] sm:$0xff]
        %v2497 = vld [vmem:[#allocation3 + $0x10] sm:$0xff]
        %v2498 = vld [vmem:[#allocation3 + $0x20] sm:$0xff]
        %2500 = vrot.lane.b32.xlu0 %v2298, 120
        %v2501 = vpop.permute.xlu0 %2500
        %2502 = vrot.lane.b32.xlu0 %v2298, 112
        %v2503 = vpop.permute.xlu0 %2502
        %2504 = vrot.lane.b32.xlu0 %v2298, 104
        %v2505 = vpop.permute.xlu0 %2504
        %2506 = vrot.lane.b32.xlu0 %v2298, 96
        %v2507 = vpop.permute.xlu0 %2506
        %2508 = vrot.lane.b32.xlu0 %v2298, 88
        %v2509 = vpop.permute.xlu0 %2508
        %2510 = vrot.lane.b32.xlu0 %v2298, 80
        %v2511 = vpop.permute.xlu0 %2510
        %2512 = vrot.lane.b32.xlu0 %v2298, 72
        %v2513 = vpop.permute.xlu0 %2512
        %vm2514 = vcmask 1041408
        %v2515 = vrot.slane %v2297, 6
        %v2516 = vrot.slane %v2298, 6
        %v2517 = vsel %vm2514, %v2515, %v2516
        %v2518 = vrot.slane %v2324, 6
        %v2519 = vrot.slane %v2501, 6
        %v2520 = vsel %vm2514, %v2518, %v2519
        %v2521 = vrot.slane %v2327, 6
        %v2522 = vrot.slane %v2503, 6
        %v2523 = vsel %vm2514, %v2521, %v2522
        %v2524 = vrot.slane %v2330, 6
        %v2525 = vrot.slane %v2505, 6
        %v2526 = vsel %vm2514, %v2524, %v2525
        %v2527 = vrot.slane %v2333, 6
        %v2528 = vrot.slane %v2507, 6
        %v2529 = vsel %vm2514, %v2527, %v2528
        %v2530 = vrot.slane %v2336, 6
        %v2531 = vrot.slane %v2509, 6
        %v2532 = vsel %vm2514, %v2530, %v2531
        %v2533 = vrot.slane %v2339, 6
        %v2534 = vrot.slane %v2511, 6
        %v2535 = vsel %vm2514, %v2533, %v2534
        %v2536 = vrot.slane %v2342, 6
        %v2537 = vrot.slane %v2513, 6
        %v2538 = vsel %vm2514, %v2536, %v2537
        %v2547 = vrot.slane %v2523, 4
        %v2548 = vsel %vm569, %v2547, %v2517
        %v2550 = vunpack.c.l.s4 1983009808
        %v2551 = vunpack.c.0.s8 %v2550
        %v2552 = vperm.slane %v2548, %v2551
        %v2553 = vrot.slane %v2526, 4
        %v2554 = vsel %vm569, %v2553, %v2520
        %v2556 = vunpack.c.l.s4 1983009808
        %v2557 = vunpack.c.0.s8 %v2556
        %v2558 = vperm.slane %v2554, %v2557
        %v2559 = vrot.slane %v2535, 4
        %v2560 = vsel %vm569, %v2559, %v2529
        %v2562 = vunpack.c.l.s4 1983009808
        %v2563 = vunpack.c.0.s8 %v2562
        %v2564 = vperm.slane %v2560, %v2563
        %v2565 = vrot.slane %v2538, 4
        %v2566 = vsel %vm569, %v2565, %v2532
        %v2568 = vunpack.c.l.s4 1983009808
        %v2569 = vunpack.c.0.s8 %v2568
        %v2570 = vperm.slane %v2566, %v2569
        %v2571 = vrot.slane %v2558, 4
        %v2572 = vsel %vm569, %v2571, %v2552
        %v2573 = vrot.slane %v2552, 4
        %v2574 = vsel %vm569, %v2558, %v2573
        %v2576 = vunpack.c.l.s4 1934713408
        %v2577 = vunpack.c.0.s8 %v2576
        %v2578 = vperm.slane %v2572, %v2577
        %v2580 = vunpack.c.l.s4 1934713408
        %v2581 = vunpack.c.0.s8 %v2580
        %v2582 = vperm.slane %v2574, %v2581
        %v2583 = vrot.slane %v2570, 4
        %v2584 = vsel %vm569, %v2583, %v2564
        %v2585 = vrot.slane %v2564, 4
        %v2586 = vsel %vm569, %v2570, %v2585
        %v2588 = vunpack.c.l.s4 1934713408
        %v2589 = vunpack.c.0.s8 %v2588
        %v2590 = vperm.slane %v2584, %v2589
        %v2592 = vunpack.c.l.s4 1934713408
        %v2593 = vunpack.c.0.s8 %v2592
        %v2594 = vperm.slane %v2586, %v2593
        %v2595 = vrot.slane %v2590, 4
        %v2596 = vsel %vm569, %v2595, %v2578
        %v2597 = vrot.slane %v2578, 4
        %v2598 = vsel %vm569, %v2590, %v2597
        %v2599 = vrot.slane %v2594, 4
        %v2600 = vsel %vm569, %v2599, %v2582
        %2604 = vrot.lane.b32.xlu0 %v2596, 8
        %v2605 = vpop.permute.xlu0 %2604
        %2606 = vrot.lane.b32.xlu0 %v2598, 8
        %v2607 = vpop.permute.xlu0 %2606
        %2608 = vrot.lane.b32.xlu0 %v2600, 8
        %v2609 = vpop.permute.xlu0 %2608
        %v2613 = vadd.f32 %v2496, %v2605
        %v2614 = vadd.f32 %v2497, %v2607
        %v2615 = vadd.f32 %v2498, %v2609
        %vm2616 = vcmask 130112
        %2617 = vst.msk [vmem:[#allocation3] sm:$0xff] %vm2616, %v2613
        %2618 = vst.msk [vmem:[#allocation3 + $0x10] sm:$0xff] %vm2616, %v2614
        %2619 = vst.msk [vmem:[#allocation3 + $0x20] sm:$0xff] %vm2616, %v2615
        %v2620 = vld [vmem:[#allocation3 + $0x4] sm:$0xff]
        %v2621 = vld [vmem:[#allocation3 + $0x14] sm:$0xff]
        %v2622 = vld [vmem:[#allocation3 + $0x24] sm:$0xff]
        %v2623 = vrot.slane %v2298, 1
        %v2624 = vrot.slane %v2501, 1
        %v2625 = vrot.slane %v2503, 1
        %v2626 = vrot.slane %v2505, 1
        %v2627 = vrot.slane %v2507, 1
        %v2628 = vrot.slane %v2509, 1
        %v2629 = vrot.slane %v2511, 1
        %v2630 = vrot.slane %v2513, 1
        %v2639 = vrot.slane %v2625, 4
        %v2640 = vsel %vm569, %v2639, %v2623
        %v2642 = vunpack.c.l.s4 1983009808
        %v2643 = vunpack.c.0.s8 %v2642
        %v2644 = vperm.slane %v2640, %v2643
        %v2645 = vrot.slane %v2626, 4
        %v2646 = vsel %vm569, %v2645, %v2624
        %v2648 = vunpack.c.l.s4 1983009808
        %v2649 = vunpack.c.0.s8 %v2648
        %v2650 = vperm.slane %v2646, %v2649
        %v2651 = vrot.slane %v2629, 4
        %v2652 = vsel %vm569, %v2651, %v2627
        %v2654 = vunpack.c.l.s4 1983009808
        %v2655 = vunpack.c.0.s8 %v2654
        %v2656 = vperm.slane %v2652, %v2655
        %v2657 = vrot.slane %v2630, 4
        %v2658 = vsel %vm569, %v2657, %v2628
        %v2660 = vunpack.c.l.s4 1983009808
        %v2661 = vunpack.c.0.s8 %v2660
        %v2662 = vperm.slane %v2658, %v2661
        %v2663 = vrot.slane %v2650, 4
        %v2664 = vsel %vm569, %v2663, %v2644
        %v2665 = vrot.slane %v2644, 4
        %v2666 = vsel %vm569, %v2650, %v2665
        %v2668 = vunpack.c.l.s4 1934713408
        %v2669 = vunpack.c.0.s8 %v2668
        %v2670 = vperm.slane %v2664, %v2669
        %v2672 = vunpack.c.l.s4 1934713408
        %v2673 = vunpack.c.0.s8 %v2672
        %v2674 = vperm.slane %v2666, %v2673
        %v2675 = vrot.slane %v2662, 4
        %v2676 = vsel %vm569, %v2675, %v2656
        %v2677 = vrot.slane %v2656, 4
        %v2678 = vsel %vm569, %v2662, %v2677
        %v2680 = vunpack.c.l.s4 1934713408
        %v2681 = vunpack.c.0.s8 %v2680
        %v2682 = vperm.slane %v2676, %v2681
        %v2684 = vunpack.c.l.s4 1934713408
        %v2685 = vunpack.c.0.s8 %v2684
        %v2686 = vperm.slane %v2678, %v2685
        %v2687 = vrot.slane %v2682, 4
        %v2688 = vsel %vm569, %v2687, %v2670
        %v2689 = vrot.slane %v2670, 4
        %v2690 = vsel %vm569, %v2682, %v2689
        %v2691 = vrot.slane %v2686, 4
        %v2692 = vsel %vm569, %v2691, %v2674
        %v2693 = vadd.f32 %v2620, %v2688
        %v2694 = vadd.f32 %v2621, %v2690
        %v2695 = vadd.f32 %v2622, %v2692
        %2696 = vst.msk [vmem:[#allocation3 + $0x4] sm:$0xff] %vm651, %v2693
        %2697 = vst.msk [vmem:[#allocation3 + $0x14] sm:$0xff] %vm651, %v2694
        %2698 = vst.msk [vmem:[#allocation3 + $0x24] sm:$0xff] %vm651, %v2695
        %v2699 = vld [vmem:[#allocation3 + $0x4] sm:$0xff]
        %v2700 = vld [vmem:[#allocation3 + $0x14] sm:$0xff]
        %v2701 = vld [vmem:[#allocation3 + $0x24] sm:$0xff]
        %v2702 = vrot.slane %v2298, 4
        %v2703 = vrot.slane %v2501, 4
        %v2704 = vrot.slane %v2503, 4
        %v2705 = vrot.slane %v2505, 4
        %v2706 = vrot.slane %v2507, 4
        %v2707 = vrot.slane %v2509, 4
        %v2708 = vrot.slane %v2511, 4
        %v2709 = vrot.slane %v2513, 4
        %v2718 = vrot.slane %v2704, 4
        %v2719 = vsel %vm569, %v2718, %v2702
        %v2721 = vunpack.c.l.s4 1983009808
        %v2722 = vunpack.c.0.s8 %v2721
        %v2723 = vperm.slane %v2719, %v2722
        %v2724 = vrot.slane %v2705, 4
        %v2725 = vsel %vm569, %v2724, %v2703
        %v2727 = vunpack.c.l.s4 1983009808
        %v2728 = vunpack.c.0.s8 %v2727
        %v2729 = vperm.slane %v2725, %v2728
        %v2730 = vrot.slane %v2708, 4
        %v2731 = vsel %vm569, %v2730, %v2706
        %v2733 = vunpack.c.l.s4 1983009808
        %v2734 = vunpack.c.0.s8 %v2733
        %v2735 = vperm.slane %v2731, %v2734
        %v2736 = vrot.slane %v2709, 4
        %v2737 = vsel %vm569, %v2736, %v2707
        %v2739 = vunpack.c.l.s4 1983009808
        %v2740 = vunpack.c.0.s8 %v2739
        %v2741 = vperm.slane %v2737, %v2740
        %v2742 = vrot.slane %v2729, 4
        %v2743 = vsel %vm569, %v2742, %v2723
        %v2744 = vrot.slane %v2723, 4
        %v2745 = vsel %vm569, %v2729, %v2744
        %v2747 = vunpack.c.l.s4 1934713408
        %v2748 = vunpack.c.0.s8 %v2747
        %v2749 = vperm.slane %v2743, %v2748
        %v2751 = vunpack.c.l.s4 1934713408
        %v2752 = vunpack.c.0.s8 %v2751
        %v2753 = vperm.slane %v2745, %v2752
        %v2754 = vrot.slane %v2741, 4
        %v2755 = vsel %vm569, %v2754, %v2735
        %v2756 = vrot.slane %v2735, 4
        %v2757 = vsel %vm569, %v2741, %v2756
        %v2759 = vunpack.c.l.s4 1934713408
        %v2760 = vunpack.c.0.s8 %v2759
        %v2761 = vperm.slane %v2755, %v2760
        %v2763 = vunpack.c.l.s4 1934713408
        %v2764 = vunpack.c.0.s8 %v2763
        %v2765 = vperm.slane %v2757, %v2764
        %v2766 = vrot.slane %v2761, 4
        %v2767 = vsel %vm569, %v2766, %v2749
        %v2768 = vrot.slane %v2749, 4
        %v2769 = vsel %vm569, %v2761, %v2768
        %v2770 = vrot.slane %v2765, 4
        %v2771 = vsel %vm569, %v2770, %v2753
        %2775 = vrot.lane.b32.xlu0 %v2767, 4
        %v2776 = vpop.permute.xlu0 %2775
        %2777 = vrot.lane.b32.xlu0 %v2769, 4
        %v2778 = vpop.permute.xlu0 %2777
        %2779 = vrot.lane.b32.xlu0 %v2771, 4
        %v2780 = vpop.permute.xlu0 %2779
        %v2784 = vadd.f32 %v2699, %v2776
        %v2785 = vadd.f32 %v2700, %v2778
        %v2786 = vadd.f32 %v2701, %v2780
        %2787 = vst.msk [vmem:[#allocation3 + $0x4] sm:$0xff] %vm2492, %v2784
        %2788 = vst.msk [vmem:[#allocation3 + $0x14] sm:$0xff] %vm2492, %v2785
        %2789 = vst.msk [vmem:[#allocation3 + $0x24] sm:$0xff] %vm2492, %v2786
        %v2790 = vld [vmem:[#allocation3 + $0x4] sm:$0xff]
        %v2791 = vld [vmem:[#allocation3 + $0x14] sm:$0xff]
        %v2792 = vld [vmem:[#allocation3 + $0x24] sm:$0xff]
        %2794 = vrot.lane.b32.xlu0 %v2299, 120
        %v2795 = vpop.permute.xlu0 %2794
        %2796 = vrot.lane.b32.xlu0 %v2299, 112
        %v2797 = vpop.permute.xlu0 %2796
        %2798 = vrot.lane.b32.xlu0 %v2299, 104
        %v2799 = vpop.permute.xlu0 %2798
        %2800 = vrot.lane.b32.xlu0 %v2299, 96
        %v2801 = vpop.permute.xlu0 %2800
        %2802 = vrot.lane.b32.xlu0 %v2299, 88
        %v2803 = vpop.permute.xlu0 %2802
        %2804 = vrot.lane.b32.xlu0 %v2299, 80
        %v2805 = vpop.permute.xlu0 %2804
        %2806 = vrot.lane.b32.xlu0 %v2299, 72
        %v2807 = vpop.permute.xlu0 %2806
        %vm2808 = vcmask 1040384
        %v2809 = vrot.slane %v2298, 7
        %v2810 = vrot.slane %v2299, 7
        %v2811 = vsel %vm2808, %v2809, %v2810
        %v2812 = vrot.slane %v2501, 7
        %v2813 = vrot.slane %v2795, 7
        %v2814 = vsel %vm2808, %v2812, %v2813
        %v2815 = vrot.slane %v2503, 7
        %v2816 = vrot.slane %v2797, 7
        %v2817 = vsel %vm2808, %v2815, %v2816
        %v2818 = vrot.slane %v2505, 7
        %v2819 = vrot.slane %v2799, 7
        %v2820 = vsel %vm2808, %v2818, %v2819
        %v2821 = vrot.slane %v2507, 7
        %v2822 = vrot.slane %v2801, 7
        %v2823 = vsel %vm2808, %v2821, %v2822
        %v2824 = vrot.slane %v2509, 7
        %v2825 = vrot.slane %v2803, 7
        %v2826 = vsel %vm2808, %v2824, %v2825
        %v2827 = vrot.slane %v2511, 7
        %v2828 = vrot.slane %v2805, 7
        %v2829 = vsel %vm2808, %v2827, %v2828
        %v2830 = vrot.slane %v2513, 7
        %v2831 = vrot.slane %v2807, 7
        %v2832 = vsel %vm2808, %v2830, %v2831
        %v2841 = vrot.slane %v2817, 4
        %v2842 = vsel %vm569, %v2841, %v2811
        %v2844 = vunpack.c.l.s4 1983009808
        %v2845 = vunpack.c.0.s8 %v2844
        %v2846 = vperm.slane %v2842, %v2845
        %v2847 = vrot.slane %v2820, 4
        %v2848 = vsel %vm569, %v2847, %v2814
        %v2850 = vunpack.c.l.s4 1983009808
        %v2851 = vunpack.c.0.s8 %v2850
        %v2852 = vperm.slane %v2848, %v2851
        %v2853 = vrot.slane %v2829, 4
        %v2854 = vsel %vm569, %v2853, %v2823
        %v2856 = vunpack.c.l.s4 1983009808
        %v2857 = vunpack.c.0.s8 %v2856
        %v2858 = vperm.slane %v2854, %v2857
        %v2859 = vrot.slane %v2832, 4
        %v2860 = vsel %vm569, %v2859, %v2826
        %v2862 = vunpack.c.l.s4 1983009808
        %v2863 = vunpack.c.0.s8 %v2862
        %v2864 = vperm.slane %v2860, %v2863
        %v2865 = vrot.slane %v2852, 4
        %v2866 = vsel %vm569, %v2865, %v2846
        %v2867 = vrot.slane %v2846, 4
        %v2868 = vsel %vm569, %v2852, %v2867
        %v2870 = vunpack.c.l.s4 1934713408
        %v2871 = vunpack.c.0.s8 %v2870
        %v2872 = vperm.slane %v2866, %v2871
        %v2874 = vunpack.c.l.s4 1934713408
        %v2875 = vunpack.c.0.s8 %v2874
        %v2876 = vperm.slane %v2868, %v2875
        %v2877 = vrot.slane %v2864, 4
        %v2878 = vsel %vm569, %v2877, %v2858
        %v2879 = vrot.slane %v2858, 4
        %v2880 = vsel %vm569, %v2864, %v2879
        %v2882 = vunpack.c.l.s4 1934713408
        %v2883 = vunpack.c.0.s8 %v2882
        %v2884 = vperm.slane %v2878, %v2883
        %v2886 = vunpack.c.l.s4 1934713408
        %v2887 = vunpack.c.0.s8 %v2886
        %v2888 = vperm.slane %v2880, %v2887
        %v2889 = vrot.slane %v2884, 4
        %v2890 = vsel %vm569, %v2889, %v2872
        %v2891 = vrot.slane %v2872, 4
        %v2892 = vsel %vm569, %v2884, %v2891
        %v2893 = vrot.slane %v2888, 4
        %v2894 = vsel %vm569, %v2893, %v2876
        %2898 = vrot.lane.b32.xlu0 %v2890, 8
        %v2899 = vpop.permute.xlu0 %2898
        %2900 = vrot.lane.b32.xlu0 %v2892, 8
        %v2901 = vpop.permute.xlu0 %2900
        %2902 = vrot.lane.b32.xlu0 %v2894, 8
        %v2903 = vpop.permute.xlu0 %2902
        %v2907 = vadd.f32 %v2790, %v2899
        %v2908 = vadd.f32 %v2791, %v2901
        %v2909 = vadd.f32 %v2792, %v2903
        %2910 = vst.msk [vmem:[#allocation3 + $0x4] sm:$0xff] %vm2616, %v2907
        %2911 = vst.msk [vmem:[#allocation3 + $0x14] sm:$0xff] %vm2616, %v2908
        %2912 = vst.msk [vmem:[#allocation3 + $0x24] sm:$0xff] %vm2616, %v2909
        %v2913 = vld [vmem:[#allocation3 + $0x8] sm:$0xff]
        %v2914 = vld [vmem:[#allocation3 + $0x18] sm:$0xff]
        %v2915 = vld [vmem:[#allocation3 + $0x28] sm:$0xff]
        %v2916 = vrot.slane %v2299, 2
        %v2917 = vrot.slane %v2795, 2
        %v2918 = vrot.slane %v2797, 2
        %v2919 = vrot.slane %v2799, 2
        %v2920 = vrot.slane %v2801, 2
        %v2921 = vrot.slane %v2803, 2
        %v2922 = vrot.slane %v2805, 2
        %v2923 = vrot.slane %v2807, 2
        %v2932 = vrot.slane %v2918, 4
        %v2933 = vsel %vm569, %v2932, %v2916
        %v2935 = vunpack.c.l.s4 1983009808
        %v2936 = vunpack.c.0.s8 %v2935
        %v2937 = vperm.slane %v2933, %v2936
        %v2938 = vrot.slane %v2919, 4
        %v2939 = vsel %vm569, %v2938, %v2917
        %v2941 = vunpack.c.l.s4 1983009808
        %v2942 = vunpack.c.0.s8 %v2941
        %v2943 = vperm.slane %v2939, %v2942
        %v2944 = vrot.slane %v2922, 4
        %v2945 = vsel %vm569, %v2944, %v2920
        %v2947 = vunpack.c.l.s4 1983009808
        %v2948 = vunpack.c.0.s8 %v2947
        %v2949 = vperm.slane %v2945, %v2948
        %v2950 = vrot.slane %v2923, 4
        %v2951 = vsel %vm569, %v2950, %v2921
        %v2953 = vunpack.c.l.s4 1983009808
        %v2954 = vunpack.c.0.s8 %v2953
        %v2955 = vperm.slane %v2951, %v2954
        %v2956 = vrot.slane %v2943, 4
        %v2957 = vsel %vm569, %v2956, %v2937
        %v2958 = vrot.slane %v2937, 4
        %v2959 = vsel %vm569, %v2943, %v2958
        %v2961 = vunpack.c.l.s4 1934713408
        %v2962 = vunpack.c.0.s8 %v2961
        %v2963 = vperm.slane %v2957, %v2962
        %v2965 = vunpack.c.l.s4 1934713408
        %v2966 = vunpack.c.0.s8 %v2965
        %v2967 = vperm.slane %v2959, %v2966
        %v2968 = vrot.slane %v2955, 4
        %v2969 = vsel %vm569, %v2968, %v2949
        %v2970 = vrot.slane %v2949, 4
        %v2971 = vsel %vm569, %v2955, %v2970
        %v2973 = vunpack.c.l.s4 1934713408
        %v2974 = vunpack.c.0.s8 %v2973
        %v2975 = vperm.slane %v2969, %v2974
        %v2977 = vunpack.c.l.s4 1934713408
        %v2978 = vunpack.c.0.s8 %v2977
        %v2979 = vperm.slane %v2971, %v2978
        %v2980 = vrot.slane %v2975, 4
        %v2981 = vsel %vm569, %v2980, %v2963
        %v2982 = vrot.slane %v2963, 4
        %v2983 = vsel %vm569, %v2975, %v2982
        %v2984 = vrot.slane %v2979, 4
        %v2985 = vsel %vm569, %v2984, %v2967
        %v2986 = vadd.f32 %v2913, %v2981
        %v2987 = vadd.f32 %v2914, %v2983
        %v2988 = vadd.f32 %v2915, %v2985
        %2989 = vst.msk [vmem:[#allocation3 + $0x8] sm:$0xff] %vm651, %v2986
        %2990 = vst.msk [vmem:[#allocation3 + $0x18] sm:$0xff] %vm651, %v2987
        %2991 = vst.msk [vmem:[#allocation3 + $0x28] sm:$0xff] %vm651, %v2988
        %v2992 = vld [vmem:[#allocation3 + $0x8] sm:$0xff]
        %v2993 = vld [vmem:[#allocation3 + $0x18] sm:$0xff]
        %v2994 = vld [vmem:[#allocation3 + $0x28] sm:$0xff]
        %v2995 = vrot.slane %v2299, 5
        %v2996 = vrot.slane %v2795, 5
        %v2997 = vrot.slane %v2797, 5
        %v2998 = vrot.slane %v2799, 5
        %v2999 = vrot.slane %v2801, 5
        %v3000 = vrot.slane %v2803, 5
        %v3001 = vrot.slane %v2805, 5
        %v3002 = vrot.slane %v2807, 5
        %v3011 = vrot.slane %v2997, 4
        %v3012 = vsel %vm569, %v3011, %v2995
        %v3014 = vunpack.c.l.s4 1983009808
        %v3015 = vunpack.c.0.s8 %v3014
        %v3016 = vperm.slane %v3012, %v3015
        %v3017 = vrot.slane %v2998, 4
        %v3018 = vsel %vm569, %v3017, %v2996
        %v3020 = vunpack.c.l.s4 1983009808
        %v3021 = vunpack.c.0.s8 %v3020
        %v3022 = vperm.slane %v3018, %v3021
        %v3023 = vrot.slane %v3001, 4
        %v3024 = vsel %vm569, %v3023, %v2999
        %v3026 = vunpack.c.l.s4 1983009808
        %v3027 = vunpack.c.0.s8 %v3026
        %v3028 = vperm.slane %v3024, %v3027
        %v3029 = vrot.slane %v3002, 4
        %v3030 = vsel %vm569, %v3029, %v3000
        %v3032 = vunpack.c.l.s4 1983009808
        %v3033 = vunpack.c.0.s8 %v3032
        %v3034 = vperm.slane %v3030, %v3033
        %v3035 = vrot.slane %v3022, 4
        %v3036 = vsel %vm569, %v3035, %v3016
        %v3037 = vrot.slane %v3016, 4
        %v3038 = vsel %vm569, %v3022, %v3037
        %v3040 = vunpack.c.l.s4 1934713408
        %v3041 = vunpack.c.0.s8 %v3040
        %v3042 = vperm.slane %v3036, %v3041
        %v3044 = vunpack.c.l.s4 1934713408
        %v3045 = vunpack.c.0.s8 %v3044
        %v3046 = vperm.slane %v3038, %v3045
        %v3047 = vrot.slane %v3034, 4
        %v3048 = vsel %vm569, %v3047, %v3028
        %v3049 = vrot.slane %v3028, 4
        %v3050 = vsel %vm569, %v3034, %v3049
        %v3052 = vunpack.c.l.s4 1934713408
        %v3053 = vunpack.c.0.s8 %v3052
        %v3054 = vperm.slane %v3048, %v3053
        %v3056 = vunpack.c.l.s4 1934713408
        %v3057 = vunpack.c.0.s8 %v3056
        %v3058 = vperm.slane %v3050, %v3057
        %v3059 = vrot.slane %v3054, 4
        %v3060 = vsel %vm569, %v3059, %v3042
        %v3061 = vrot.slane %v3042, 4
        %v3062 = vsel %vm569, %v3054, %v3061
        %v3063 = vrot.slane %v3058, 4
        %v3064 = vsel %vm569, %v3063, %v3046
        %3068 = vrot.lane.b32.xlu0 %v3060, 4
        %v3069 = vpop.permute.xlu0 %3068
        %3070 = vrot.lane.b32.xlu0 %v3062, 4
        %v3071 = vpop.permute.xlu0 %3070
        %3072 = vrot.lane.b32.xlu0 %v3064, 4
        %v3073 = vpop.permute.xlu0 %3072
        %v3077 = vadd.f32 %v2992, %v3069
        %v3078 = vadd.f32 %v2993, %v3071
        %v3079 = vadd.f32 %v2994, %v3073
        %3080 = vst.msk [vmem:[#allocation3 + $0x8] sm:$0xff] %vm2492, %v3077
        %3081 = vst.msk [vmem:[#allocation3 + $0x18] sm:$0xff] %vm2492, %v3078
        %3082 = vst.msk [vmem:[#allocation3 + $0x28] sm:$0xff] %vm2492, %v3079
        %v3083 = vld [vmem:[#allocation3 + $0x8] sm:$0xff]
        %v3084 = vld [vmem:[#allocation3 + $0x18] sm:$0xff]
        %v3085 = vld [vmem:[#allocation3 + $0x28] sm:$0xff]
        %3087 = vrot.lane.b32.xlu0 %v2300, 120
        %v3088 = vpop.permute.xlu0 %3087
        %3090 = vrot.lane.b32.xlu0 %v2300, 112
        %v3091 = vpop.permute.xlu0 %3090
        %3093 = vrot.lane.b32.xlu0 %v2300, 104
        %v3094 = vpop.permute.xlu0 %3093
        %3096 = vrot.lane.b32.xlu0 %v2300, 96
        %v3097 = vpop.permute.xlu0 %3096
        %3099 = vrot.lane.b32.xlu0 %v2300, 88
        %v3100 = vpop.permute.xlu0 %3099
        %3102 = vrot.lane.b32.xlu0 %v2300, 80
        %v3103 = vpop.permute.xlu0 %3102
        %3105 = vrot.lane.b32.xlu0 %v2300, 72
        %v3106 = vpop.permute.xlu0 %3105
        %v3108 = vrot.slane %v3091, 4
        %v3109 = vsel %vm569, %v3108, %v2300
        %v3111 = vunpack.c.l.s4 1983009808
        %v3112 = vunpack.c.0.s8 %v3111
        %v3113 = vperm.slane %v3109, %v3112
        %v3114 = vrot.slane %v3094, 4
        %v3115 = vsel %vm569, %v3114, %v3088
        %v3117 = vunpack.c.l.s4 1983009808
        %v3118 = vunpack.c.0.s8 %v3117
        %v3119 = vperm.slane %v3115, %v3118
        %v3120 = vrot.slane %v3103, 4
        %v3121 = vsel %vm569, %v3120, %v3097
        %v3123 = vunpack.c.l.s4 1983009808
        %v3124 = vunpack.c.0.s8 %v3123
        %v3125 = vperm.slane %v3121, %v3124
        %v3126 = vrot.slane %v3106, 4
        %v3127 = vsel %vm569, %v3126, %v3100
        %v3129 = vunpack.c.l.s4 1983009808
        %v3130 = vunpack.c.0.s8 %v3129
        %v3131 = vperm.slane %v3127, %v3130
        %v3132 = vrot.slane %v3119, 4
        %v3133 = vsel %vm569, %v3132, %v3113
        %v3134 = vrot.slane %v3113, 4
        %v3135 = vsel %vm569, %v3119, %v3134
        %v3137 = vunpack.c.l.s4 1934713408
        %v3138 = vunpack.c.0.s8 %v3137
        %v3139 = vperm.slane %v3133, %v3138
        %v3141 = vunpack.c.l.s4 1934713408
        %v3142 = vunpack.c.0.s8 %v3141
        %v3143 = vperm.slane %v3135, %v3142
        %v3144 = vrot.slane %v3131, 4
        %v3145 = vsel %vm569, %v3144, %v3125
        %v3146 = vrot.slane %v3125, 4
        %v3147 = vsel %vm569, %v3131, %v3146
        %v3149 = vunpack.c.l.s4 1934713408
        %v3150 = vunpack.c.0.s8 %v3149
        %v3151 = vperm.slane %v3145, %v3150
        %v3153 = vunpack.c.l.s4 1934713408
        %v3154 = vunpack.c.0.s8 %v3153
        %v3155 = vperm.slane %v3147, %v3154
        %v3156 = vrot.slane %v3151, 4
        %v3157 = vsel %vm569, %v3156, %v3139
        %v3158 = vrot.slane %v3139, 4
        %v3159 = vsel %vm569, %v3151, %v3158
        %v3160 = vrot.slane %v3155, 4
        %v3161 = vsel %vm569, %v3160, %v3143
        %3165 = vrot.lane.b32.xlu0 %v3157, 8
        %v3166 = vpop.permute.xlu0 %3165
        %3167 = vrot.lane.b32.xlu0 %v3159, 8
        %v3168 = vpop.permute.xlu0 %3167
        %3169 = vrot.lane.b32.xlu0 %v3161, 8
        %v3170 = vpop.permute.xlu0 %3169
        %v3174 = vadd.f32 %v3083, %v3166
        %v3175 = vadd.f32 %v3084, %v3168
        %v3176 = vadd.f32 %v3085, %v3170
        %3177 = vst.msk [vmem:[#allocation3 + $0x8] sm:$0xff] %vm2616, %v3174
        %3178 = vst.msk [vmem:[#allocation3 + $0x18] sm:$0xff] %vm2616, %v3175
        %3179 = vst.msk [vmem:[#allocation3 + $0x28] sm:$0xff] %vm2616, %v3176
        %v3180 = vld [vmem:[#allocation3] sm:$0xff]
        %v3181 = vld [vmem:[#allocation3 + $0x8] sm:$0xff]
        %v3182 = vld [vmem:[#allocation3 + $0x10] sm:$0xff]
        %v3183 = vld [vmem:[#allocation3 + $0x18] sm:$0xff]
        %v3184 = vld [vmem:[#allocation3 + $0x20] sm:$0xff]
        %v3185 = vld [vmem:[#allocation3 + $0x28] sm:$0xff]
        %v3186 = vrot.slane %v3184, 4
        %v3187 = vsel %vm569, %v3186, %v3180
        %v3188 = vrot.slane %v3180, 4
        %v3189 = vsel %vm569, %v3184, %v3188
        %v3191 = vunpack.c.l.s4 1983009808
        %v3192 = vunpack.c.0.s8 %v3191
        %v3193 = vperm.slane %v3187, %v3192
        %v3195 = vunpack.c.l.s4 1983009808
        %v3196 = vunpack.c.0.s8 %v3195
        %v3197 = vperm.slane %v3189, %v3196
        %v3198 = vrot.slane %v3182, 4
        %v3199 = vsel %vm569, 0.0, %v3198
        %v3201 = vunpack.c.l.s4 1983009808
        %v3202 = vunpack.c.0.s8 %v3201
        %v3203 = vperm.slane %v3182, %v3202
        %v3205 = vunpack.c.l.s4 1983009808
        %v3206 = vunpack.c.0.s8 %v3205
        %v3207 = vperm.slane %v3199, %v3206
        %v3208 = vrot.slane %v3203, 4
        %v3209 = vsel %vm569, %v3208, %v3193
        %v3210 = vrot.slane %v3193, 4
        %v3211 = vsel %vm569, %v3203, %v3210
        %v3213 = vunpack.c.l.s4 1934713408
        %v3214 = vunpack.c.0.s8 %v3213
        %v3215 = vperm.slane %v3209, %v3214
        %v3217 = vunpack.c.l.s4 1934713408
        %v3218 = vunpack.c.0.s8 %v3217
        %v3219 = vperm.slane %v3211, %v3218
        %v3220 = vrot.slane %v3207, 4
        %v3221 = vsel %vm569, %v3220, %v3197
        %v3222 = vrot.slane %v3197, 4
        %v3223 = vsel %vm569, %v3207, %v3222
        %v3225 = vunpack.c.l.s4 1934713408
        %v3226 = vunpack.c.0.s8 %v3225
        %v3227 = vperm.slane %v3221, %v3226
        %v3229 = vunpack.c.l.s4 1934713408
        %v3230 = vunpack.c.0.s8 %v3229
        %v3231 = vperm.slane %v3223, %v3230
        %v3232 = vrot.slane %v3215, 4
        %v3233 = vsel %vm569, 0.0, %v3232
        %v3234 = vrot.slane %v3219, 4
        %v3235 = vsel %vm569, 0.0, %v3234
        %v3236 = vrot.slane %v3227, 4
        %v3237 = vsel %vm569, 0.0, %v3236
        %v3238 = vrot.slane %v3231, 4
        %v3239 = vsel %vm569, 0.0, %v3238
        %v3240 = vrot.slane %v3185, 4
        %v3241 = vsel %vm569, %v3240, %v3181
        %v3242 = vrot.slane %v3181, 4
        %v3243 = vsel %vm569, %v3185, %v3242
        %v3245 = vunpack.c.l.s4 1983009808
        %v3246 = vunpack.c.0.s8 %v3245
        %v3247 = vperm.slane %v3241, %v3246
        %v3249 = vunpack.c.l.s4 1983009808
        %v3250 = vunpack.c.0.s8 %v3249
        %v3251 = vperm.slane %v3243, %v3250
        %v3252 = vrot.slane %v3183, 4
        %v3253 = vsel %vm569, 0.0, %v3252
        %v3255 = vunpack.c.l.s4 1983009808
        %v3256 = vunpack.c.0.s8 %v3255
        %v3257 = vperm.slane %v3183, %v3256
        %v3259 = vunpack.c.l.s4 1983009808
        %v3260 = vunpack.c.0.s8 %v3259
        %v3261 = vperm.slane %v3253, %v3260
        %v3262 = vrot.slane %v3257, 4
        %v3263 = vsel %vm569, %v3262, %v3247
        %v3264 = vrot.slane %v3247, 4
        %v3265 = vsel %vm569, %v3257, %v3264
        %v3267 = vunpack.c.l.s4 1934713408
        %v3268 = vunpack.c.0.s8 %v3267
        %v3269 = vperm.slane %v3263, %v3268
        %v3271 = vunpack.c.l.s4 1934713408
        %v3272 = vunpack.c.0.s8 %v3271
        %v3273 = vperm.slane %v3265, %v3272
        %v3274 = vrot.slane %v3261, 4
        %v3275 = vsel %vm569, %v3274, %v3251
        %v3276 = vrot.slane %v3251, 4
        %v3277 = vsel %vm569, %v3261, %v3276
        %v3279 = vunpack.c.l.s4 1934713408
        %v3280 = vunpack.c.0.s8 %v3279
        %v3281 = vperm.slane %v3275, %v3280
        %v3283 = vunpack.c.l.s4 1934713408
        %v3284 = vunpack.c.0.s8 %v3283
        %v3285 = vperm.slane %v3277, %v3284
        %v3286 = vrot.slane %v3269, 4
        %v3287 = vsel %vm569, 0.0, %v3286
        %v3288 = vrot.slane %v3273, 4
        %v3289 = vsel %vm569, 0.0, %v3288
        %v3290 = vrot.slane %v3281, 4
        %v3291 = vsel %vm569, 0.0, %v3290
        %v3292 = vrot.slane %v3285, 4
        %v3293 = vsel %vm569, 0.0, %v3292
        %3295 = vrot.lane.b32.xlu0 %v3233, 16
        %v3296 = vpop.permute.xlu0 %3295
        %3299 = vrot.lane.b32.xlu0 %v3219, 32
        %v3300 = vpop.permute.xlu0 %3299
        %3303 = vrot.lane.b32.xlu0 %v3235, 48
        %v3304 = vpop.permute.xlu0 %3303
        %3307 = vrot.lane.b32.xlu0 %v3227, 64
        %v3308 = vpop.permute.xlu0 %3307
        %3311 = vrot.lane.b32.xlu0 %v3237, 80
        %v3312 = vpop.permute.xlu0 %3311
        %3315 = vrot.lane.b32.xlu0 %v3231, 96
        %v3316 = vpop.permute.xlu0 %3315
        %3319 = vrot.lane.b32.xlu0 %v3239, 112
        %v3320 = vpop.permute.xlu0 %3319
        %3323 = vrot.lane.b32.xlu0 %v3287, 16
        %v3324 = vpop.permute.xlu0 %3323
        %3327 = vrot.lane.b32.xlu0 %v3273, 32
        %v3328 = vpop.permute.xlu0 %3327
        %3331 = vrot.lane.b32.xlu0 %v3289, 48
        %v3332 = vpop.permute.xlu0 %3331
        %3335 = vrot.lane.b32.xlu0 %v3281, 64
        %v3336 = vpop.permute.xlu0 %3335
        %3339 = vrot.lane.b32.xlu0 %v3291, 80
        %v3340 = vpop.permute.xlu0 %3339
        %3343 = vrot.lane.b32.xlu0 %v3285, 96
        %v3344 = vpop.permute.xlu0 %3343
        %3347 = vrot.lane.b32.xlu0 %v3293, 112
        %v3348 = vpop.permute.xlu0 %3347
        %v3350 = vsel %vm653, %v3215, %v3296
        %v3351 = vsel %vm657, %v3350, %v3300
        %v3352 = vsel %vm661, %v3351, %v3304
        %v3353 = vsel %vm550, %v3352, %v3308
        %vm3354 = vcmask 654336
        %v3355 = vsel %vm3354, %v3353, %v3312
        %vm3356 = vcmask 785408
        %v3357 = vsel %vm3356, %v3355, %v3316
        %vm3358 = vcmask 916480
        %v3359 = vsel %vm3358, %v3357, %v3320
        %v3360 = vsel %vm653, %v3269, %v3324
        %v3361 = vsel %vm657, %v3360, %v3328
        %v3362 = vsel %vm661, %v3361, %v3332
        %v3363 = vsel %vm550, %v3362, %v3336
        %v3364 = vsel %vm3354, %v3363, %v3340
        %v3365 = vsel %vm3356, %v3364, %v3344
        %v3366 = vsel %vm3358, %v3365, %v3348
        %v3367 = vld [vmem:[#allocation9] sm:$0x77]
        %3369 = vst [vmem:[#allocation1] ss:$2 sm:$0xff] %v3367
        %v3370 = vld.sshfl [vmem:[#allocation1] sm:$0xff pattern:$0x75316420]
        %v3371 = vld.sshfl [vmem:[#allocation1 + $0x8] sm:$0xff pattern:$0x75316420]
        %v3374 = vmul.f32 %v3359, %v3370
        %v3375 = vmul.f32 %v3366, %v3371
        %v3378 = vrot.slane %v3375, 4
        %vm3379 = vcmask 1043456
        %v3380 = vsel %vm3379, %v3374, %v3378
        %3382 = vst [vmem:[%s549] sm:$0x77] %v3380
        %p3383 = scmp.lt.s32.totalorder %s30, 1
        %s3384 = scalar_select %p3383, %s30, 1
        %s3385 = smul.addr %s3384, 2
        %s3386 = smul.addr %s3385, 4
        %s3387 = scalar_lea.vmem %s12, %s3386
        // Predicated region
        $region101: #{tpu_custom_call.1} parent=67 // pred_check
          %p3388 = pneg %p305
        $region102: #{tpu_custom_call.1} parent=67 // pred_check_branch
          %3390 = sbr.rel (%p3388) target = $region104
        $region103: #{tpu_custom_call.1} parent=67 // pred_region
          _
        $region104: #{tpu_custom_call.1} parent=67 // pred_fallthru
          _
      $region68: #{tpu_custom_call.1} parent=5 // pred_fallthru
        _
      %p3391 = scmp.le.s32.totalorder 2, %s25
      // Predicated region
      $region105: #{tpu_custom_call.1} parent=5 // pred_check
        %p3392 = pneg %p3391
      $region106: #{tpu_custom_call.1} parent=5 // pred_check_branch
        %3394 = sbr.rel (%p3392) target = $region108
      $region107: #{tpu_custom_call.1} parent=5 // pred_region
        %s3395 = ssub.s32 %s25, 2
        // Predicated region
        $region109: #{tpu_custom_call.1} parent=107 // pred_check
          %p3396 = pneg %p311
        $region110: #{tpu_custom_call.1} parent=107 // pred_check_branch
          %3398 = sbr.rel (%p3396) target = $region112
        $region111: #{tpu_custom_call.1} parent=107 // pred_region
          %p3399 = scmp.lt.s32.totalorder %s31, 1
          %s3400 = scalar_select %p3399, %s31, 1
          %s3401 = smul.addr %s3400, 2
          %s3402 = smul.addr %s3401, 4
          %s3403 = scalar_lea.vmem %s12, %s3402
        $region112: #{tpu_custom_call.1} parent=107 // pred_fallthru
          _
      $region108: #{tpu_custom_call.1} parent=5 // pred_fallthru
        _
    $region6: #{tpu_custom_call.1} parent=1 // loop_footer
      %s29 = sadd.s32 1, %s25
    $region7: #{tpu_custom_call.1} parent=1 // loop_footer_branch
      %24 = sbr.rel target = $region3
    $region8: #{tpu_custom_call.1} parent=1 // loop_exit
      _
    %3404 = vsyncpa [#allocation5], 1
    %s3405 = scalar_lea.sflag [#allocation5], 1
    %3406 = vsyncpa %s3405, 1
    %3407 = vsyncpa [#allocation7], 1
    %3408 = vsyncpa [#allocation10], 1
    %3409 = vsyncpa [#allocation13], 1
    %3410 = vsyncpa [#allocation16], 1

</llo_original>
